<compile_context>
chip_gen: v7x
topology: tpu7x:2x2x1
jax: 0.10.0
libtpu: 0.0.40
codegen_flags: <defaults>
</compile_context>

<pallas_src>
import functools
import math

import jax
import jax.numpy as jnp
from jax.experimental import pallas as pl
from jax.experimental.pallas import tpu as pltpu


def _layernorm_torch(x, gamma, beta, eps=1e-6):
    """PyTorch-module LayerNorm: unbiased std (N-1), eps added to the std."""
    d = x.shape[-1]
    mean = jnp.mean(x, axis=-1, keepdims=True)
    var = jnp.sum((x - mean) ** 2, axis=-1, keepdims=True) / (d - 1)
    std = jnp.sqrt(var) + eps
    return gamma * (x - mean) / std + beta


def _encoder_layer_kernel(
    x_ref, bias_ref,
    ln1g_ref, ln1b_ref,
    wqkv_ref, bqkv_ref, wo_ref, bo_ref,
    ln2g_ref, ln2b_ref,
    w1_ref, b1_ref, w2_ref, b2_ref,
    out_ref,
    acc_ref, xn2_ref,
    *, n_heads,
):
    Bb, S, D = x_ref.shape
    M = Bb * S
    H = n_heads
    dk = D // H
    scale = 1.0 / math.sqrt(dk)
    mdt = wqkv_ref.dtype            # MXU operand dtype (bf16 prod / f32 check)

    j = pl.program_id(1)            # d_ff tile index (reduction axis, last)

    # ---- j == 0: whole attention sublayer + FFN-accumulator init -----------
    @pl.when(j == 0)
    def _():
        x = x_ref[...].astype(jnp.float32).reshape(M, D)
        bias = bias_ref[...].astype(jnp.float32)          # [Bb,S,S] dist+mask

        # sublayer 0: x + self_attn(LN(x))
        xn = _layernorm_torch(x, ln1g_ref[...], ln1b_ref[...])
        qkv = jnp.dot(xn.astype(mdt), wqkv_ref[...],
                      preferred_element_type=jnp.float32) + bqkv_ref[...]

        # Head-major [H*Bb, S, dk] layout: lane slices + leading-dim stacking.
        def split_heads(t):                               # t: [M, D]
            return jnp.stack(
                [t[:, h * dk:(h + 1) * dk].reshape(Bb, S, dk) for h in range(H)],
                axis=0).reshape(H * Bb, S, dk)

        q3 = split_heads(qkv[:, 0 * D:1 * D]).astype(mdt)
        k3 = split_heads(qkv[:, 1 * D:2 * D]).astype(mdt)
        v3 = split_heads(qkv[:, 2 * D:3 * D]).astype(mdt)

        # One batched MXU pass for all (head, batch) score matrices.
        scores = jnp.einsum("bqd,bkd->bqk", q3, k3,
                            preferred_element_type=jnp.float32) * scale
        # Bias (dist with mask folded in) is head-invariant: broadcast add via
        # leading-dim reshapes only.
        scores = (scores.reshape(H, Bb, S, S) + bias[None]).reshape(H * Bb, S, S)

        # Exact softmax (f32), identical math to the reference.
        m = jnp.max(scores, axis=-1, keepdims=True)
        e = jnp.exp(scores - m)
        p = e / jnp.sum(e, axis=-1, keepdims=True)

        ctx = jnp.einsum("bqk,bkd->bqd", p.astype(mdt), v3,
                         preferred_element_type=jnp.float32)   # [H*Bb, S, dk]
        ctx = ctx.reshape(H, M, dk)
        attn_in = jnp.concatenate([ctx[h] for h in range(H)], axis=-1)  # [M,D]

        attn = jnp.dot(attn_in.astype(mdt), wo_ref[...],
                       preferred_element_type=jnp.float32) + bo_ref[...]
        x1 = x + attn                          # residual; dropout == identity

        # sublayer-1 carries: accumulator starts at x1 + b2 (FFN bias once),
        # LN(x1) is stored once and re-used by every d_ff tile.
        acc_ref[...] = x1 + b2_ref[...]
        xn2_ref[...] = _layernorm_torch(
            x1, ln2g_ref[...], ln2b_ref[...]).astype(xn2_ref.dtype)

    # ---- every step: one d_ff tile of the FFN, accumulated into acc_ref ----
    xn2 = xn2_ref[...]
    h1 = jnp.dot(xn2, w1_ref[...], preferred_element_type=jnp.float32) + b1_ref[...]
    h1 = jnp.maximum(h1, 0.0)
    acc_ref[...] += jnp.dot(h1.astype(mdt), w2_ref[...],
                            preferred_element_type=jnp.float32)

    @pl.when(j == pl.num_programs(1) - 1)
    def _():
        out_ref[...] = acc_ref[...].reshape(Bb, S, D).astype(out_ref.dtype)


def _pick_vmem_limit(block_b, S, D, d_ff, block_ff, n_heads, mdt_bytes):
    """Footprint-based VMEM limit, capped per chip generation."""
    f32b = 4
    M = block_b * S
    resident = (3 * D * D + D * D) * mdt_bytes + (3 * D + 6 * D + d_ff) * f32b
    streamed = 2 * (2 * M * D * f32b + block_b * S * S * mdt_bytes
                    + 2 * D * block_ff * mdt_bytes + block_ff * f32b)
    temps = (M * D * (f32b + mdt_bytes)                 # scratch acc + xn2
             + M * 3 * D * f32b + 3 * M * D * mdt_bytes  # qkv, q/k/v
             + 3 * n_heads * block_b * S * S * f32b      # scores/exp/probs
             + 2 * M * D * f32b)                         # ctx, attn
    need = int((resident + streamed + temps) * 1.5) + (2 << 20)
    try:
        cap = int(pltpu.get_tpu_info().vmem_capacity_bytes)
    except Exception:
        cap = 64 << 20        # conservative (v7x-sized) fallback
    return max(32 << 20, min(need, int(cap * 0.8)))


def encoder_layer(x, dist, mask, params, *, n_heads,
                  block_b=1, block_ff=None, matmul_dtype=jnp.bfloat16):
    B, S, D = x.shape
    d_ff = params["w1"].shape[1]
    assert D % n_heads == 0
    assert B % block_b == 0, "block_b must divide the batch"
    if block_ff is None:
        block_ff = min(d_ff, 512)
    assert d_ff % block_ff == 0
    assert block_ff == d_ff or block_ff % 128 == 0
    n_b, n_ff = B // block_b, d_ff // block_ff
    grid = (n_b, n_ff)

    f32 = jnp.float32
    # Fold the mask into the additive distance bias on the host: one [B,S,S]
    # stream (in the matmul dtype) and no compare/select in the kernel.
    bias = (dist.astype(f32)
            + jnp.where(mask > 0, 0.0, -1e9).astype(f32)).astype(matmul_dtype)

    # Fused QKV weight + pre-cast MXU-operand weights (accumulation stays f32).
    wqkv = jnp.concatenate([params["wq"], params["wk"], params["wv"]],
                           axis=1).astype(matmul_dtype)
    bqkv = jnp.concatenate([params["bq"], params["bk"], params["bv"]],
                           axis=1).astype(f32)
    wo = params["wo"].astype(matmul_dtype)
    w1 = params["w1"].astype(matmul_dtype)
    w2 = params["w2"].astype(matmul_dtype)

    kernel = functools.partial(_encoder_layer_kernel, n_heads=n_heads)
    vmem_limit = _pick_vmem_limit(block_b, S, D, d_ff, block_ff, n_heads,
                                  jnp.dtype(matmul_dtype).itemsize)

    x_spec = pl.BlockSpec((block_b, S, D), lambda b, j: (b, 0, 0))
    bias_spec = pl.BlockSpec((block_b, S, S), lambda b, j: (b, 0, 0))
    w1_spec = pl.BlockSpec((D, block_ff), lambda b, j: (0, j))
    b1_spec = pl.BlockSpec((1, block_ff), lambda b, j: (0, j))
    w2_spec = pl.BlockSpec((block_ff, D), lambda b, j: (j, 0))
    out_spec = pl.BlockSpec((block_b, S, D), lambda b, j: (b, 0, 0))

    def build_call(single_buffer_weights):
        def const_spec(shape):
            idx = lambda b, j: (0,) * len(shape)
            if single_buffer_weights:
                # Grid-invariant: one VMEM copy instead of the default double
                # buffer (halves resident weight VMEM; matters on v7x 64 MiB).
                return pl.BlockSpec(shape, idx, pipeline_mode=pl.Buffered(1))
            return pl.BlockSpec(shape, idx)

        in_specs = [
            x_spec, bias_spec,
            const_spec((1, D)), const_spec((1, D)),            # LN1 gamma/beta
            const_spec((D, 3 * D)), const_spec((1, 3 * D)),    # Wqkv, bqkv
            const_spec((D, D)), const_spec((1, D)),            # Wo, bo
            const_spec((1, D)), const_spec((1, D)),            # LN2 gamma/beta
            w1_spec, b1_spec,                                  # W1 / b1 tiles
            w2_spec,                                           # W2 tile
            const_spec((1, D)),                                # b2
        ]
        return pl.pallas_call(
            kernel,
            out_shape=jax.ShapeDtypeStruct((B, S, D), x.dtype),
            grid=grid,
            in_specs=in_specs,
            out_specs=out_spec,
            scratch_shapes=[
                pltpu.VMEM((block_b * S, D), jnp.float32),     # x1 + FFN acc
                pltpu.VMEM((block_b * S, D), matmul_dtype),    # LN2(x1)
            ],
            compiler_params=pltpu.CompilerParams(
                dimension_semantics=("parallel", "arbitrary"),
                vmem_limit_bytes=vmem_limit,
            ),
        )

    args = (x, bias,
            params["ln1_g"].astype(f32), params["ln1_b"].astype(f32),
            wqkv, bqkv, wo, params["bo"].astype(f32),
            params["ln2_g"].astype(f32), params["ln2_b"].astype(f32),
            w1, params["b1"].astype(f32), w2, params["b2"].astype(f32))

    try:
        return build_call(True)(*args)
    except Exception:
        # pipeline_mode=pl.Buffered(1) not supported in this build: fall back
        # to default double-buffered weight blocks (correctness unaffected).
        return build_call(False)(*args)


def _reference(x, dist, mask, p, n_heads):
    """Plain-JAX f32 reference with the PyTorch module's math."""
    B, S, D = x.shape
    dk = D // n_heads
    xn = _layernorm_torch(x, p["ln1_g"], p["ln1_b"])
    q = xn @ p["wq"] + p["bq"]
    k = xn @ p["wk"] + p["bk"]
    v = xn @ p["wv"] + p["bv"]
    q = q.reshape(B, S, n_heads, dk).transpose(0, 2, 1, 3)
    k = k.reshape(B, S, n_heads, dk).transpose(0, 2, 1, 3)
    v = v.reshape(B, S, n_heads, dk).transpose(0, 2, 1, 3)
    scores = jnp.einsum("bhqd,bhkd->bhqk", q, k) / math.sqrt(dk)
    scores = scores + dist[:, None, :, :]
    scores = jnp.where(mask[:, None, :, :] > 0, scores, -1e9)
    pr = jax.nn.softmax(scores, axis=-1)
    attn = jnp.einsum("bhqk,bhkd->bhqd", pr, v).transpose(0, 2, 1, 3).reshape(B, S, D)
    x1 = x + (attn @ p["wo"] + p["bo"])
    xn2 = _layernorm_torch(x1, p["ln2_g"], p["ln2_b"])
    ff = jnp.maximum(xn2 @ p["w1"] + p["b1"], 0.0) @ p["w2"] + p["b2"]
    return x1 + ff


def make_params(key, D, d_ff):
    ks = jax.random.split(key, 6)
    s_d = 1.0 / math.sqrt(D)
    s_f = 1.0 / math.sqrt(d_ff)
    return {
        "ln1_g": jnp.ones((1, D), jnp.float32),
        "ln1_b": jnp.zeros((1, D), jnp.float32),
        "wq": jax.random.normal(ks[0], (D, D), jnp.float32) * s_d,
        "bq": jnp.zeros((1, D), jnp.float32),
        "wk": jax.random.normal(ks[1], (D, D), jnp.float32) * s_d,
        "bk": jnp.zeros((1, D), jnp.float32),
        "wv": jax.random.normal(ks[2], (D, D), jnp.float32) * s_d,
        "bv": jnp.zeros((1, D), jnp.float32),
        "wo": jax.random.normal(ks[3], (D, D), jnp.float32) * s_d,
        "bo": jnp.zeros((1, D), jnp.float32),
        "ln2_g": jnp.ones((1, D), jnp.float32),
        "ln2_b": jnp.zeros((1, D), jnp.float32),
        "w1": jax.random.normal(ks[4], (D, d_ff), jnp.float32) * s_d,
        "b1": jnp.zeros((1, d_ff), jnp.float32),
        "w2": jax.random.normal(ks[5], (d_ff, D), jnp.float32) * s_f,
        "b2": jnp.zeros((1, D), jnp.float32),
    }


if __name__ == "__main__":
    # Small lane-friendly demo shapes: D, d_ff multiples of 128, S multiple of
    # 8; grid = (B, d_ff/block_ff) = (4, 2) = 8 steps.
    B, S, D, H, d_ff = 4, 16, 128, 4, 256

    key = jax.random.PRNGKey(0)
    kx, kd, kp = jax.random.split(key, 3)

    x = jax.random.normal(kx, (B, S, D), jnp.float32)
    dist = jax.random.normal(kd, (B, S, S), jnp.float32) * 0.1
    # mask: 1 = attend, 0 = masked; mask out the last key position of batch 1.
    mask = jnp.ones((B, S, S), jnp.float32).at[1, :, -1].set(0.0)

    params = make_params(kp, D, d_ff)
    ref = _reference(x, dist, mask, params, H)

    # f32 MXU operands: tight semantic check (exact softmax, f32 everywhere).
    out_f32 = encoder_layer(x, dist, mask, params, n_heads=H,
                            block_b=1, block_ff=128, matmul_dtype=jnp.float32)
    jax.block_until_ready(out_f32)
    err_f32 = float(jnp.max(jnp.abs(out_f32 - ref)))
    assert jnp.allclose(out_f32, ref, atol=2e-2, rtol=1e-2), (
        f"f32 kernel mismatch vs reference (max abs err {err_f32})")

    # bf16 MXU operands + f32 accumulation (production path): loose check.
    out_bf16 = encoder_layer(x, dist, mask, params, n_heads=H,
                             block_b=1, block_ff=128, matmul_dtype=jnp.bfloat16)
    jax.block_until_ready(out_bf16)
    err_bf16 = float(jnp.max(jnp.abs(out_bf16 - ref)))
    assert jnp.allclose(out_bf16, ref, atol=2e-1, rtol=2e-1), (
        f"bf16 kernel mismatch vs reference (max abs err {err_bf16})")

    print("KERNEL_OK")
</pallas_src>

<mosaic_0001>
module attributes {stable_mosaic.version = 11 : i64} {
  func.func @_encoder_layer_kernel(%arg0: i32, %arg1: i32, %arg2: memref<1x16x128xf32, #tpu.memory_space<vmem>>, %arg3: memref<1x16x16xf32, #tpu.memory_space<vmem>>, %arg4: memref<1x128xf32, #tpu.memory_space<vmem>>, %arg5: memref<1x128xf32, #tpu.memory_space<vmem>>, %arg6: memref<128x384xf32, #tpu.memory_space<vmem>>, %arg7: memref<1x384xf32, #tpu.memory_space<vmem>>, %arg8: memref<128x128xf32, #tpu.memory_space<vmem>>, %arg9: memref<1x128xf32, #tpu.memory_space<vmem>>, %arg10: memref<1x128xf32, #tpu.memory_space<vmem>>, %arg11: memref<1x128xf32, #tpu.memory_space<vmem>>, %arg12: memref<128x128xf32, #tpu.memory_space<vmem>>, %arg13: memref<1x128xf32, #tpu.memory_space<vmem>>, %arg14: memref<128x128xf32, #tpu.memory_space<vmem>>, %arg15: memref<1x128xf32, #tpu.memory_space<vmem>>, %arg16: memref<1x16x128xf32, #tpu.memory_space<vmem>>, %arg17: memref<16x128xf32, #tpu.memory_space<vmem>>, %arg18: memref<16x128xf32, #tpu.memory_space<vmem>>) attributes {dimension_semantics = [#tpu.dimension_semantics<parallel>, #tpu.dimension_semantics<arbitrary>], iteration_bounds = array<i64: 4, 2>, scalar_prefetch = 0 : i64, scratch_operands = 2 : i64, tpu.core_type = #tpu.core_type<tc>, window_params = [{transform_indices = @transform_0, window_bounds = array<i64: 1, 16, 128>}, {transform_indices = @transform_1, window_bounds = array<i64: 1, 16, 16>}, {pipeline_mode = #tpu.pipeline_mode<synchronous>, transform_indices = @transform_2, window_bounds = array<i64: 1, 128>}, {pipeline_mode = #tpu.pipeline_mode<synchronous>, transform_indices = @transform_3, window_bounds = array<i64: 1, 128>}, {pipeline_mode = #tpu.pipeline_mode<synchronous>, transform_indices = @transform_4, window_bounds = array<i64: 128, 384>}, {pipeline_mode = #tpu.pipeline_mode<synchronous>, transform_indices = @transform_5, window_bounds = array<i64: 1, 384>}, {pipeline_mode = #tpu.pipeline_mode<synchronous>, transform_indices = @transform_6, window_bounds = array<i64: 128, 128>}, {pipeline_mode = #tpu.pipeline_mode<synchronous>, transform_indices = @transform_7, window_bounds = array<i64: 1, 128>}, {pipeline_mode = #tpu.pipeline_mode<synchronous>, transform_indices = @transform_8, window_bounds = array<i64: 1, 128>}, {pipeline_mode = #tpu.pipeline_mode<synchronous>, transform_indices = @transform_9, window_bounds = array<i64: 1, 128>}, {transform_indices = @transform_10, window_bounds = array<i64: 128, 128>}, {transform_indices = @transform_11, window_bounds = array<i64: 1, 128>}, {transform_indices = @transform_12, window_bounds = array<i64: 128, 128>}, {pipeline_mode = #tpu.pipeline_mode<synchronous>, transform_indices = @transform_13, window_bounds = array<i64: 1, 128>}, {transform_indices = @transform_14, window_bounds = array<i64: 1, 16, 128>}]} {
    %c0_i32 = arith.constant 0 : i32
    %0 = arith.cmpi eq, %arg1, %c0_i32 : i32
    %1 = arith.extui %0 : i1 to i32
    %c0_i32_0 = arith.constant 0 : i32
    %2 = arith.cmpi ne, %1, %c0_i32_0 : i32
    scf.if %2 {
      %c0_15 = arith.constant 0 : index
      %c0_16 = arith.constant 0 : index
      %c0_17 = arith.constant 0 : index
      %19 = vector.load %arg2[%c0_15, %c0_16, %c0_17] : memref<1x16x128xf32, #tpu.memory_space<vmem>>, vector<1x16x128xf32>
      %20 = vector.shape_cast %19 : vector<1x16x128xf32> to vector<16x128xf32>
      %c0_18 = arith.constant 0 : index
      %c0_19 = arith.constant 0 : index
      %c0_20 = arith.constant 0 : index
      %21 = vector.load %arg3[%c0_18, %c0_19, %c0_20] : memref<1x16x16xf32, #tpu.memory_space<vmem>>, vector<1x16x16xf32>
      %c0_21 = arith.constant 0 : index
      %c0_22 = arith.constant 0 : index
      %22 = vector.load %arg4[%c0_21, %c0_22] : memref<1x128xf32, #tpu.memory_space<vmem>>, vector<1x128xf32>
      %c0_23 = arith.constant 0 : index
      %c0_24 = arith.constant 0 : index
      %23 = vector.load %arg5[%c0_23, %c0_24] : memref<1x128xf32, #tpu.memory_space<vmem>>, vector<1x128xf32>
      %cst_25 = arith.constant dense<0.000000e+00> : vector<16xf32>
      %24 = vector.multi_reduction <add>, %20, %cst_25 [1] : vector<16x128xf32> to vector<16xf32>
      %25 = vector.shape_cast %24 : vector<16xf32> to vector<16x1xf32>
      %cst_26 = arith.constant 1.280000e+02 : f32
      %26 = vector.broadcast %cst_26 : f32 to vector<16x1xf32>
      %27 = arith.divf %25, %26 : vector<16x1xf32>
      %28 = vector.broadcast %27 : vector<16x1xf32> to vector<16x128xf32>
      %29 = arith.subf %20, %28 : vector<16x128xf32>
      %30 = arith.mulf %29, %29 : vector<16x128xf32>
      %cst_27 = arith.constant dense<0.000000e+00> : vector<16xf32>
      %31 = vector.multi_reduction <add>, %30, %cst_27 [1] : vector<16x128xf32> to vector<16xf32>
      %32 = vector.shape_cast %31 : vector<16xf32> to vector<16x1xf32>
      %cst_28 = arith.constant 1.270000e+02 : f32
      %33 = vector.broadcast %cst_28 : f32 to vector<16x1xf32>
      %34 = arith.divf %32, %33 : vector<16x1xf32>
      %35 = math.sqrt %34 : vector<16x1xf32>
      %cst_29 = arith.constant 9.99999997E-7 : f32
      %36 = vector.broadcast %cst_29 : f32 to vector<16x1xf32>
      %37 = arith.addf %35, %36 : vector<16x1xf32>
      %38 = vector.broadcast %27 : vector<16x1xf32> to vector<16x128xf32>
      %39 = arith.subf %20, %38 : vector<16x128xf32>
      %40 = vector.broadcast %22 : vector<1x128xf32> to vector<16x128xf32>
      %41 = arith.mulf %40, %39 : vector<16x128xf32>
      %42 = vector.broadcast %37 : vector<16x1xf32> to vector<16x128xf32>
      %43 = arith.divf %41, %42 : vector<16x128xf32>
      %44 = vector.broadcast %23 : vector<1x128xf32> to vector<16x128xf32>
      %45 = arith.addf %43, %44 : vector<16x128xf32>
      %c0_30 = arith.constant 0 : index
      %c0_31 = arith.constant 0 : index
      %46 = vector.load %arg6[%c0_30, %c0_31] : memref<128x384xf32, #tpu.memory_space<vmem>>, vector<128x384xf32>
      %cst_32 = arith.constant dense<0.000000e+00> : vector<16x384xf32>
      %47 = tpu.matmul %45, %46, %cst_32 {dimension_numbers = #tpu.dot_dimension_numbers<[1], [0], [0], [1], [0, 0, 1, 1], [], []>} : vector<16x128xf32>, vector<128x384xf32>, vector<16x384xf32> -> vector<16x384xf32>
      %c0_33 = arith.constant 0 : index
      %c0_34 = arith.constant 0 : index
      %48 = vector.load %arg7[%c0_33, %c0_34] : memref<1x384xf32, #tpu.memory_space<vmem>>, vector<1x384xf32>
      %49 = vector.broadcast %48 : vector<1x384xf32> to vector<16x384xf32>
      %50 = arith.addf %47, %49 : vector<16x384xf32>
      %51 = vector.extract_strided_slice %50 {offsets = [0, 0], sizes = [16, 128], strides = [1, 1]} : vector<16x384xf32> to vector<16x128xf32>
      %52 = vector.extract_strided_slice %51 {offsets = [0, 0], sizes = [16, 32], strides = [1, 1]} : vector<16x128xf32> to vector<16x32xf32>
      %53 = vector.shape_cast %52 : vector<16x32xf32> to vector<1x16x32xf32>
      %54 = vector.extract_strided_slice %51 {offsets = [0, 32], sizes = [16, 32], strides = [1, 1]} : vector<16x128xf32> to vector<16x32xf32>
      %55 = vector.shape_cast %54 : vector<16x32xf32> to vector<1x16x32xf32>
      %56 = vector.extract_strided_slice %51 {offsets = [0, 64], sizes = [16, 32], strides = [1, 1]} : vector<16x128xf32> to vector<16x32xf32>
      %57 = vector.shape_cast %56 : vector<16x32xf32> to vector<1x16x32xf32>
      %58 = vector.extract_strided_slice %51 {offsets = [0, 96], sizes = [16, 32], strides = [1, 1]} : vector<16x128xf32> to vector<16x32xf32>
      %59 = vector.shape_cast %58 : vector<16x32xf32> to vector<1x16x32xf32>
      %60 = vector.shape_cast %53 : vector<1x16x32xf32> to vector<1x1x16x32xf32>
      %61 = vector.shape_cast %55 : vector<1x16x32xf32> to vector<1x1x16x32xf32>
      %62 = vector.shape_cast %57 : vector<1x16x32xf32> to vector<1x1x16x32xf32>
      %63 = vector.shape_cast %59 : vector<1x16x32xf32> to vector<1x1x16x32xf32>
      %64 = tpu.concatenate %60, %61, %62, %63 in 0 : vector<1x1x16x32xf32>, vector<1x1x16x32xf32>, vector<1x1x16x32xf32>, vector<1x1x16x32xf32> -> vector<4x1x16x32xf32>
      %65 = vector.shape_cast %64 : vector<4x1x16x32xf32> to vector<4x16x32xf32>
      %66 = vector.extract_strided_slice %50 {offsets = [0, 128], sizes = [16, 128], strides = [1, 1]} : vector<16x384xf32> to vector<16x128xf32>
      %67 = vector.extract_strided_slice %66 {offsets = [0, 0], sizes = [16, 32], strides = [1, 1]} : vector<16x128xf32> to vector<16x32xf32>
      %68 = vector.shape_cast %67 : vector<16x32xf32> to vector<1x16x32xf32>
      %69 = vector.extract_strided_slice %66 {offsets = [0, 32], sizes = [16, 32], strides = [1, 1]} : vector<16x128xf32> to vector<16x32xf32>
      %70 = vector.shape_cast %69 : vector<16x32xf32> to vector<1x16x32xf32>
      %71 = vector.extract_strided_slice %66 {offsets = [0, 64], sizes = [16, 32], strides = [1, 1]} : vector<16x128xf32> to vector<16x32xf32>
      %72 = vector.shape_cast %71 : vector<16x32xf32> to vector<1x16x32xf32>
      %73 = vector.extract_strided_slice %66 {offsets = [0, 96], sizes = [16, 32], strides = [1, 1]} : vector<16x128xf32> to vector<16x32xf32>
      %74 = vector.shape_cast %73 : vector<16x32xf32> to vector<1x16x32xf32>
      %75 = vector.shape_cast %68 : vector<1x16x32xf32> to vector<1x1x16x32xf32>
      %76 = vector.shape_cast %70 : vector<1x16x32xf32> to vector<1x1x16x32xf32>
      %77 = vector.shape_cast %72 : vector<1x16x32xf32> to vector<1x1x16x32xf32>
      %78 = vector.shape_cast %74 : vector<1x16x32xf32> to vector<1x1x16x32xf32>
      %79 = tpu.concatenate %75, %76, %77, %78 in 0 : vector<1x1x16x32xf32>, vector<1x1x16x32xf32>, vector<1x1x16x32xf32>, vector<1x1x16x32xf32> -> vector<4x1x16x32xf32>
      %80 = vector.shape_cast %79 : vector<4x1x16x32xf32> to vector<4x16x32xf32>
      %81 = vector.extract_strided_slice %50 {offsets = [0, 256], sizes = [16, 128], strides = [1, 1]} : vector<16x384xf32> to vector<16x128xf32>
      %82 = vector.extract_strided_slice %81 {offsets = [0, 0], sizes = [16, 32], strides = [1, 1]} : vector<16x128xf32> to vector<16x32xf32>
      %83 = vector.shape_cast %82 : vector<16x32xf32> to vector<1x16x32xf32>
      %84 = vector.extract_strided_slice %81 {offsets = [0, 32], sizes = [16, 32], strides = [1, 1]} : vector<16x128xf32> to vector<16x32xf32>
      %85 = vector.shape_cast %84 : vector<16x32xf32> to vector<1x16x32xf32>
      %86 = vector.extract_strided_slice %81 {offsets = [0, 64], sizes = [16, 32], strides = [1, 1]} : vector<16x128xf32> to vector<16x32xf32>
      %87 = vector.shape_cast %86 : vector<16x32xf32> to vector<1x16x32xf32>
      %88 = vector.extract_strided_slice %81 {offsets = [0, 96], sizes = [16, 32], strides = [1, 1]} : vector<16x128xf32> to vector<16x32xf32>
      %89 = vector.shape_cast %88 : vector<16x32xf32> to vector<1x16x32xf32>
      %90 = vector.shape_cast %83 : vector<1x16x32xf32> to vector<1x1x16x32xf32>
      %91 = vector.shape_cast %85 : vector<1x16x32xf32> to vector<1x1x16x32xf32>
      %92 = vector.shape_cast %87 : vector<1x16x32xf32> to vector<1x1x16x32xf32>
      %93 = vector.shape_cast %89 : vector<1x16x32xf32> to vector<1x1x16x32xf32>
      %94 = tpu.concatenate %90, %91, %92, %93 in 0 : vector<1x1x16x32xf32>, vector<1x1x16x32xf32>, vector<1x1x16x32xf32>, vector<1x1x16x32xf32> -> vector<4x1x16x32xf32>
      %95 = vector.shape_cast %94 : vector<4x1x16x32xf32> to vector<4x16x32xf32>
      "tpu.trace_start"() <{level = 10 : i32, message = "bqd,bkd->bqk"}> : () -> ()
      %cst_35 = arith.constant dense<0.000000e+00> : vector<4x16x16xf32>
      %96 = tpu.matmul %65, %80, %cst_35 {dimension_numbers = #tpu.dot_dimension_numbers<[2], [2], [1], [1], [0, 0, 0, 1, 1, 1], [0], [0]>} : vector<4x16x32xf32>, vector<4x16x32xf32>, vector<4x16x16xf32> -> vector<4x16x16xf32>
      "tpu.trace_stop"() : () -> ()
      %cst_36 = arith.constant 0.176776692 : f32
      %97 = vector.broadcast %cst_36 : f32 to vector<4x16x16xf32>
      %98 = arith.mulf %96, %97 : vector<4x16x16xf32>
      %99 = vector.shape_cast %98 : vector<4x16x16xf32> to vector<4x1x16x16xf32>
      %100 = vector.shape_cast %21 : vector<1x16x16xf32> to vector<1x1x16x16xf32>
      %101 = vector.broadcast %100 : vector<1x1x16x16xf32> to vector<4x1x16x16xf32>
      %102 = arith.addf %99, %101 : vector<4x1x16x16xf32>
      %103 = vector.shape_cast %102 : vector<4x1x16x16xf32> to vector<4x16x16xf32>
      %cst_37 = arith.constant dense<0xFF800000> : vector<4x16xf32>
      %104 = vector.multi_reduction <maximumf>, %103, %cst_37 [2] : vector<4x16x16xf32> to vector<4x16xf32>
      %105 = vector.shape_cast %104 : vector<4x16xf32> to vector<4x16x1xf32>
      %106 = vector.broadcast %105 : vector<4x16x1xf32> to vector<4x16x16xf32>
      %107 = arith.subf %103, %106 : vector<4x16x16xf32>
      %108 = math.exp %107 : vector<4x16x16xf32>
      %cst_38 = arith.constant dense<0.000000e+00> : vector<4x16xf32>
      %109 = vector.multi_reduction <add>, %108, %cst_38 [2] : vector<4x16x16xf32> to vector<4x16xf32>
      %110 = vector.shape_cast %109 : vector<4x16xf32> to vector<4x16x1xf32>
      %111 = vector.broadcast %110 : vector<4x16x1xf32> to vector<4x16x16xf32>
      %112 = arith.divf %108, %111 : vector<4x16x16xf32>
      "tpu.trace_start"() <{level = 10 : i32, message = "bqk,bkd->bqd"}> : () -> ()
      %cst_39 = arith.constant dense<0.000000e+00> : vector<4x16x32xf32>
      %113 = tpu.matmul %112, %95, %cst_39 {dimension_numbers = #tpu.dot_dimension_numbers<[2], [1], [1], [2], [0, 0, 0, 1, 1, 2], [0], [0]>} : vector<4x16x16xf32>, vector<4x16x32xf32>, vector<4x16x32xf32> -> vector<4x16x32xf32>
      "tpu.trace_stop"() : () -> ()
      %114 = vector.extract_strided_slice %113 {offsets = [0, 0, 0], sizes = [1, 16, 32], strides = [1, 1, 1]} : vector<4x16x32xf32> to vector<1x16x32xf32>
      %115 = vector.shape_cast %114 : vector<1x16x32xf32> to vector<16x32xf32>
      %116 = vector.extract_strided_slice %113 {offsets = [1, 0, 0], sizes = [1, 16, 32], strides = [1, 1, 1]} : vector<4x16x32xf32> to vector<1x16x32xf32>
      %117 = vector.shape_cast %116 : vector<1x16x32xf32> to vector<16x32xf32>
      %118 = vector.extract_strided_slice %113 {offsets = [2, 0, 0], sizes = [1, 16, 32], strides = [1, 1, 1]} : vector<4x16x32xf32> to vector<1x16x32xf32>
      %119 = vector.shape_cast %118 : vector<1x16x32xf32> to vector<16x32xf32>
      %120 = vector.extract_strided_slice %113 {offsets = [3, 0, 0], sizes = [1, 16, 32], strides = [1, 1, 1]} : vector<4x16x32xf32> to vector<1x16x32xf32>
      %121 = vector.shape_cast %120 : vector<1x16x32xf32> to vector<16x32xf32>
      %122 = tpu.concatenate %115, %117, %119, %121 in 1 : vector<16x32xf32>, vector<16x32xf32>, vector<16x32xf32>, vector<16x32xf32> -> vector<16x128xf32>
      %c0_40 = arith.constant 0 : index
      %c0_41 = arith.constant 0 : index
      %123 = vector.load %arg8[%c0_40, %c0_41] : memref<128x128xf32, #tpu.memory_space<vmem>>, vector<128x128xf32>
      %cst_42 = arith.constant dense<0.000000e+00> : vector<16x128xf32>
      %124 = tpu.matmul %122, %123, %cst_42 {dimension_numbers = #tpu.dot_dimension_numbers<[1], [0], [0], [1], [0, 0, 1, 1], [], []>} : vector<16x128xf32>, vector<128x128xf32>, vector<16x128xf32> -> vector<16x128xf32>
      %c0_43 = arith.constant 0 : index
      %c0_44 = arith.constant 0 : index
      %125 = vector.load %arg9[%c0_43, %c0_44] : memref<1x128xf32, #tpu.memory_space<vmem>>, vector<1x128xf32>
      %126 = vector.broadcast %125 : vector<1x128xf32> to vector<16x128xf32>
      %127 = arith.addf %124, %126 : vector<16x128xf32>
      %128 = arith.addf %20, %127 : vector<16x128xf32>
      %c0_45 = arith.constant 0 : index
      %c0_46 = arith.constant 0 : index
      %129 = vector.load %arg15[%c0_45, %c0_46] : memref<1x128xf32, #tpu.memory_space<vmem>>, vector<1x128xf32>
      %130 = vector.broadcast %129 : vector<1x128xf32> to vector<16x128xf32>
      %131 = arith.addf %128, %130 : vector<16x128xf32>
      %c0_47 = arith.constant 0 : index
      %c0_48 = arith.constant 0 : index
      %132 = vector.load %arg17[%c0_47, %c0_48] : memref<16x128xf32, #tpu.memory_space<vmem>>, vector<16x128xf32>
      tpu.vector_store %arg17[%c0_47, %c0_48], %131 {strides = array<i32>} : memref<16x128xf32, #tpu.memory_space<vmem>>, vector<16x128xf32>,
      %c0_49 = arith.constant 0 : index
      %c0_50 = arith.constant 0 : index
      %133 = vector.load %arg10[%c0_49, %c0_50] : memref<1x128xf32, #tpu.memory_space<vmem>>, vector<1x128xf32>
      %c0_51 = arith.constant 0 : index
      %c0_52 = arith.constant 0 : index
      %134 = vector.load %arg11[%c0_51, %c0_52] : memref<1x128xf32, #tpu.memory_space<vmem>>, vector<1x128xf32>
      %cst_53 = arith.constant dense<0.000000e+00> : vector<16xf32>
      %135 = vector.multi_reduction <add>, %128, %cst_53 [1] : vector<16x128xf32> to vector<16xf32>
      %136 = vector.shape_cast %135 : vector<16xf32> to vector<16x1xf32>
      %cst_54 = arith.constant 1.280000e+02 : f32
      %137 = vector.broadcast %cst_54 : f32 to vector<16x1xf32>
      %138 = arith.divf %136, %137 : vector<16x1xf32>
      %139 = vector.broadcast %138 : vector<16x1xf32> to vector<16x128xf32>
      %140 = arith.subf %128, %139 : vector<16x128xf32>
      %141 = arith.mulf %140, %140 : vector<16x128xf32>
      %cst_55 = arith.constant dense<0.000000e+00> : vector<16xf32>
      %142 = vector.multi_reduction <add>, %141, %cst_55 [1] : vector<16x128xf32> to vector<16xf32>
      %143 = vector.shape_cast %142 : vector<16xf32> to vector<16x1xf32>
      %cst_56 = arith.constant 1.270000e+02 : f32
      %144 = vector.broadcast %cst_56 : f32 to vector<16x1xf32>
      %145 = arith.divf %143, %144 : vector<16x1xf32>
      %146 = math.sqrt %145 : vector<16x1xf32>
      %cst_57 = arith.constant 9.99999997E-7 : f32
      %147 = vector.broadcast %cst_57 : f32 to vector<16x1xf32>
      %148 = arith.addf %146, %147 : vector<16x1xf32>
      %149 = vector.broadcast %138 : vector<16x1xf32> to vector<16x128xf32>
      %150 = arith.subf %128, %149 : vector<16x128xf32>
      %151 = vector.broadcast %133 : vector<1x128xf32> to vector<16x128xf32>
      %152 = arith.mulf %151, %150 : vector<16x128xf32>
      %153 = vector.broadcast %148 : vector<16x1xf32> to vector<16x128xf32>
      %154 = arith.divf %152, %153 : vector<16x128xf32>
      %155 = vector.broadcast %134 : vector<1x128xf32> to vector<16x128xf32>
      %156 = arith.addf %154, %155 : vector<16x128xf32>
      %c0_58 = arith.constant 0 : index
      %c0_59 = arith.constant 0 : index
      %157 = vector.load %arg18[%c0_58, %c0_59] : memref<16x128xf32, #tpu.memory_space<vmem>>, vector<16x128xf32>
      tpu.vector_store %arg18[%c0_58, %c0_59], %156 {strides = array<i32>} : memref<16x128xf32, #tpu.memory_space<vmem>>, vector<16x128xf32>,
    } else {
    }
    %c0 = arith.constant 0 : index
    %c0_1 = arith.constant 0 : index
    %3 = vector.load %arg18[%c0, %c0_1] : memref<16x128xf32, #tpu.memory_space<vmem>>, vector<16x128xf32>
    %c0_2 = arith.constant 0 : index
    %c0_3 = arith.constant 0 : index
    %4 = vector.load %arg12[%c0_2, %c0_3] : memref<128x128xf32, #tpu.memory_space<vmem>>, vector<128x128xf32>
    %cst = arith.constant dense<0.000000e+00> : vector<16x128xf32>
    %5 = tpu.matmul %3, %4, %cst {dimension_numbers = #tpu.dot_dimension_numbers<[1], [0], [0], [1], [0, 0, 1, 1], [], []>} : vector<16x128xf32>, vector<128x128xf32>, vector<16x128xf32> -> vector<16x128xf32>
    %c0_4 = arith.constant 0 : index
    %c0_5 = arith.constant 0 : index
    %6 = vector.load %arg13[%c0_4, %c0_5] : memref<1x128xf32, #tpu.memory_space<vmem>>, vector<1x128xf32>
    %7 = vector.broadcast %6 : vector<1x128xf32> to vector<16x128xf32>
    %8 = arith.addf %5, %7 : vector<16x128xf32>
    %cst_6 = arith.constant 0.000000e+00 : f32
    %9 = vector.broadcast %cst_6 : f32 to vector<16x128xf32>
    %10 = arith.maximumf %8, %9 : vector<16x128xf32>
    %c0_7 = arith.constant 0 : index
    %c0_8 = arith.constant 0 : index
    %11 = vector.load %arg17[%c0_7, %c0_8] : memref<16x128xf32, #tpu.memory_space<vmem>>, vector<16x128xf32>
    %c0_9 = arith.constant 0 : index
    %c0_10 = arith.constant 0 : index
    %12 = vector.load %arg14[%c0_9, %c0_10] : memref<128x128xf32, #tpu.memory_space<vmem>>, vector<128x128xf32>
    %cst_11 = arith.constant dense<0.000000e+00> : vector<16x128xf32>
    %13 = tpu.matmul %10, %12, %cst_11 {dimension_numbers = #tpu.dot_dimension_numbers<[1], [0], [0], [1], [0, 0, 1, 1], [], []>} : vector<16x128xf32>, vector<128x128xf32>, vector<16x128xf32> -> vector<16x128xf32>
    %14 = arith.addf %11, %13 : vector<16x128xf32>
    %c0_12 = arith.constant 0 : index
    %c0_13 = arith.constant 0 : index
    %15 = vector.load %arg17[%c0_12, %c0_13] : memref<16x128xf32, #tpu.memory_space<vmem>>, vector<16x128xf32>
    tpu.vector_store %arg17[%c0_12, %c0_13], %14 {strides = array<i32>} : memref<16x128xf32, #tpu.memory_space<vmem>>, vector<16x128xf32>,
    %c1_i32 = arith.constant 1 : i32
    %16 = arith.cmpi eq, %arg1, %c1_i32 : i32
    %17 = arith.extui %16 : i1 to i32
    %c0_i32_14 = arith.constant 0 : i32
    %18 = arith.cmpi ne, %17, %c0_i32_14 : i32
    scf.if %18 {
      %c0_15 = arith.constant 0 : index
      %c0_16 = arith.constant 0 : index
      %19 = vector.load %arg17[%c0_15, %c0_16] : memref<16x128xf32, #tpu.memory_space<vmem>>, vector<16x128xf32>
      %20 = vector.shape_cast %19 : vector<16x128xf32> to vector<1x16x128xf32>
      %c0_17 = arith.constant 0 : index
      %c0_18 = arith.constant 0 : index
      %c0_19 = arith.constant 0 : index
      %21 = vector.load %arg16[%c0_17, %c0_18, %c0_19] : memref<1x16x128xf32, #tpu.memory_space<vmem>>, vector<1x16x128xf32>
      tpu.vector_store %arg16[%c0_17, %c0_18, %c0_19], %20 {strides = array<i32>} : memref<1x16x128xf32, #tpu.memory_space<vmem>>, vector<1x16x128xf32>,
    } else {
    }
    return
  }
  func.func @transform_0(%arg0: i32, %arg1: i32) -> (i32, i32, i32) {
    %c0_i32 = arith.constant 0 : i32
    %c0_i32_0 = arith.constant 0 : i32
    %c0_i32_1 = arith.constant 0 : i32
    return %arg0, %c0_i32, %c0_i32_0 : i32, i32, i32
  }
  func.func @transform_1(%arg0: i32, %arg1: i32) -> (i32, i32, i32) {
    %c0_i32 = arith.constant 0 : i32
    %c0_i32_0 = arith.constant 0 : i32
    %c0_i32_1 = arith.constant 0 : i32
    return %arg0, %c0_i32, %c0_i32_0 : i32, i32, i32
  }
  func.func @transform_2(%arg0: i32, %arg1: i32) -> (i32, i32) {
    %c0_i32 = arith.constant 0 : i32
    %c0_i32_0 = arith.constant 0 : i32
    %c0_i32_1 = arith.constant 0 : i32
    return %c0_i32, %c0_i32_0 : i32, i32
  }
  func.func @transform_3(%arg0: i32, %arg1: i32) -> (i32, i32) {
    %c0_i32 = arith.constant 0 : i32
    %c0_i32_0 = arith.constant 0 : i32
    %c0_i32_1 = arith.constant 0 : i32
    return %c0_i32, %c0_i32_0 : i32, i32
  }
  func.func @transform_4(%arg0: i32, %arg1: i32) -> (i32, i32) {
    %c0_i32 = arith.constant 0 : i32
    %c0_i32_0 = arith.constant 0 : i32
    %c0_i32_1 = arith.constant 0 : i32
    return %c0_i32, %c0_i32_0 : i32, i32
  }
  func.func @transform_5(%arg0: i32, %arg1: i32) -> (i32, i32) {
    %c0_i32 = arith.constant 0 : i32
    %c0_i32_0 = arith.constant 0 : i32
    %c0_i32_1 = arith.constant 0 : i32
    return %c0_i32, %c0_i32_0 : i32, i32
  }
  func.func @transform_6(%arg0: i32, %arg1: i32) -> (i32, i32) {
    %c0_i32 = arith.constant 0 : i32
    %c0_i32_0 = arith.constant 0 : i32
    %c0_i32_1 = arith.constant 0 : i32
    return %c0_i32, %c0_i32_0 : i32, i32
  }
  func.func @transform_7(%arg0: i32, %arg1: i32) -> (i32, i32) {
    %c0_i32 = arith.constant 0 : i32
    %c0_i32_0 = arith.constant 0 : i32
    %c0_i32_1 = arith.constant 0 : i32
    return %c0_i32, %c0_i32_0 : i32, i32
  }
  func.func @transform_8(%arg0: i32, %arg1: i32) -> (i32, i32) {
    %c0_i32 = arith.constant 0 : i32
    %c0_i32_0 = arith.constant 0 : i32
    %c0_i32_1 = arith.constant 0 : i32
    return %c0_i32, %c0_i32_0 : i32, i32
  }
  func.func @transform_9(%arg0: i32, %arg1: i32) -> (i32, i32) {
    %c0_i32 = arith.constant 0 : i32
    %c0_i32_0 = arith.constant 0 : i32
    %c0_i32_1 = arith.constant 0 : i32
    return %c0_i32, %c0_i32_0 : i32, i32
  }
  func.func @transform_10(%arg0: i32, %arg1: i32) -> (i32, i32) {
    %c0_i32 = arith.constant 0 : i32
    %c0_i32_0 = arith.constant 0 : i32
    return %c0_i32, %arg1 : i32, i32
  }
  func.func @transform_11(%arg0: i32, %arg1: i32) -> (i32, i32) {
    %c0_i32 = arith.constant 0 : i32
    %c0_i32_0 = arith.constant 0 : i32
    return %c0_i32, %arg1 : i32, i32
  }
  func.func @transform_12(%arg0: i32, %arg1: i32) -> (i32, i32) {
    %c0_i32 = arith.constant 0 : i32
    %c0_i32_0 = arith.constant 0 : i32
    return %arg1, %c0_i32 : i32, i32
  }
  func.func @transform_13(%arg0: i32, %arg1: i32) -> (i32, i32) {
    %c0_i32 = arith.constant 0 : i32
    %c0_i32_0 = arith.constant 0 : i32
    %c0_i32_1 = arith.constant 0 : i32
    return %c0_i32, %c0_i32_0 : i32, i32
  }
  func.func @transform_14(%arg0: i32, %arg1: i32) -> (i32, i32, i32) {
    %c0_i32 = arith.constant 0 : i32
    %c0_i32_0 = arith.constant 0 : i32
    %c0_i32_1 = arith.constant 0 : i32
    return %arg0, %c0_i32, %c0_i32_0 : i32, i32, i32
  }
}

module attributes {stable_mosaic.version = 11 : i64} {
  func.func @_encoder_layer_kernel(%arg0: i32, %arg1: i32, %arg2: memref<1x16x128xf32, #tpu.memory_space<vmem>>, %arg3: memref<1x16x16xf32, #tpu.memory_space<vmem>>, %arg4: memref<1x128xf32, #tpu.memory_space<vmem>>, %arg5: memref<1x128xf32, #tpu.memory_space<vmem>>, %arg6: memref<128x384xf32, #tpu.memory_space<vmem>>, %arg7: memref<1x384xf32, #tpu.memory_space<vmem>>, %arg8: memref<128x128xf32, #tpu.memory_space<vmem>>, %arg9: memref<1x128xf32, #tpu.memory_space<vmem>>, %arg10: memref<1x128xf32, #tpu.memory_space<vmem>>, %arg11: memref<1x128xf32, #tpu.memory_space<vmem>>, %arg12: memref<128x128xf32, #tpu.memory_space<vmem>>, %arg13: memref<1x128xf32, #tpu.memory_space<vmem>>, %arg14: memref<128x128xf32, #tpu.memory_space<vmem>>, %arg15: memref<1x128xf32, #tpu.memory_space<vmem>>, %arg16: memref<1x16x128xf32, #tpu.memory_space<vmem>>, %arg17: memref<16x128xf32, #tpu.memory_space<vmem>>, %arg18: memref<16x128xf32, #tpu.memory_space<vmem>>) attributes {dimension_semantics = [#tpu.dimension_semantics<parallel>, #tpu.dimension_semantics<arbitrary>], iteration_bounds = array<i64: 4, 2>, scalar_prefetch = 0 : i64, scratch_operands = 2 : i64, tpu.core_type = #tpu.core_type<tc>, window_params = [{transform_indices = @transform_0, window_bounds = array<i64: 1, 16, 128>}, {transform_indices = @transform_1, window_bounds = array<i64: 1, 16, 16>}, {pipeline_mode = #tpu.pipeline_mode<synchronous>, transform_indices = @transform_2, window_bounds = array<i64: 1, 128>}, {pipeline_mode = #tpu.pipeline_mode<synchronous>, transform_indices = @transform_3, window_bounds = array<i64: 1, 128>}, {pipeline_mode = #tpu.pipeline_mode<synchronous>, transform_indices = @transform_4, window_bounds = array<i64: 128, 384>}, {pipeline_mode = #tpu.pipeline_mode<synchronous>, transform_indices = @transform_5, window_bounds = array<i64: 1, 384>}, {pipeline_mode = #tpu.pipeline_mode<synchronous>, transform_indices = @transform_6, window_bounds = array<i64: 128, 128>}, {pipeline_mode = #tpu.pipeline_mode<synchronous>, transform_indices = @transform_7, window_bounds = array<i64: 1, 128>}, {pipeline_mode = #tpu.pipeline_mode<synchronous>, transform_indices = @transform_8, window_bounds = array<i64: 1, 128>}, {pipeline_mode = #tpu.pipeline_mode<synchronous>, transform_indices = @transform_9, window_bounds = array<i64: 1, 128>}, {transform_indices = @transform_10, window_bounds = array<i64: 128, 128>}, {transform_indices = @transform_11, window_bounds = array<i64: 1, 128>}, {transform_indices = @transform_12, window_bounds = array<i64: 128, 128>}, {pipeline_mode = #tpu.pipeline_mode<synchronous>, transform_indices = @transform_13, window_bounds = array<i64: 1, 128>}, {transform_indices = @transform_14, window_bounds = array<i64: 1, 16, 128>}]} {
    %c0_i32 = arith.constant 0 : i32
    %0 = arith.cmpi eq, %arg1, %c0_i32 : i32
    %1 = arith.extui %0 : i1 to i32
    %c0_i32_0 = arith.constant 0 : i32
    %2 = arith.cmpi ne, %1, %c0_i32_0 : i32
    scf.if %2 {
      %c0_15 = arith.constant 0 : index
      %c0_16 = arith.constant 0 : index
      %c0_17 = arith.constant 0 : index
      %19 = vector.load %arg2[%c0_15, %c0_16, %c0_17] : memref<1x16x128xf32, #tpu.memory_space<vmem>>, vector<1x16x128xf32>
      %20 = vector.shape_cast %19 : vector<1x16x128xf32> to vector<16x128xf32>
      %c0_18 = arith.constant 0 : index
      %c0_19 = arith.constant 0 : index
      %c0_20 = arith.constant 0 : index
      %21 = vector.load %arg3[%c0_18, %c0_19, %c0_20] : memref<1x16x16xf32, #tpu.memory_space<vmem>>, vector<1x16x16xf32>
      %c0_21 = arith.constant 0 : index
      %c0_22 = arith.constant 0 : index
      %22 = vector.load %arg4[%c0_21, %c0_22] : memref<1x128xf32, #tpu.memory_space<vmem>>, vector<1x128xf32>
      %c0_23 = arith.constant 0 : index
      %c0_24 = arith.constant 0 : index
      %23 = vector.load %arg5[%c0_23, %c0_24] : memref<1x128xf32, #tpu.memory_space<vmem>>, vector<1x128xf32>
      %cst_25 = arith.constant dense<0.000000e+00> : vector<16xf32>
      %24 = vector.multi_reduction <add>, %20, %cst_25 [1] : vector<16x128xf32> to vector<16xf32>
      %25 = vector.shape_cast %24 : vector<16xf32> to vector<16x1xf32>
      %cst_26 = arith.constant 1.280000e+02 : f32
      %26 = vector.broadcast %cst_26 : f32 to vector<16x1xf32>
      %27 = arith.divf %25, %26 : vector<16x1xf32>
      %28 = vector.broadcast %27 : vector<16x1xf32> to vector<16x128xf32>
      %29 = arith.subf %20, %28 : vector<16x128xf32>
      %30 = arith.mulf %29, %29 : vector<16x128xf32>
      %cst_27 = arith.constant dense<0.000000e+00> : vector<16xf32>
      %31 = vector.multi_reduction <add>, %30, %cst_27 [1] : vector<16x128xf32> to vector<16xf32>
      %32 = vector.shape_cast %31 : vector<16xf32> to vector<16x1xf32>
      %cst_28 = arith.constant 1.270000e+02 : f32
      %33 = vector.broadcast %cst_28 : f32 to vector<16x1xf32>
      %34 = arith.divf %32, %33 : vector<16x1xf32>
      %35 = math.sqrt %34 : vector<16x1xf32>
      %cst_29 = arith.constant 9.99999997E-7 : f32
      %36 = vector.broadcast %cst_29 : f32 to vector<16x1xf32>
      %37 = arith.addf %35, %36 : vector<16x1xf32>
      %38 = vector.broadcast %27 : vector<16x1xf32> to vector<16x128xf32>
      %39 = arith.subf %20, %38 : vector<16x128xf32>
      %40 = vector.broadcast %22 : vector<1x128xf32> to vector<16x128xf32>
      %41 = arith.mulf %40, %39 : vector<16x128xf32>
      %42 = vector.broadcast %37 : vector<16x1xf32> to vector<16x128xf32>
      %43 = arith.divf %41, %42 : vector<16x128xf32>
      %44 = vector.broadcast %23 : vector<1x128xf32> to vector<16x128xf32>
      %45 = arith.addf %43, %44 : vector<16x128xf32>
      %c0_30 = arith.constant 0 : index
      %c0_31 = arith.constant 0 : index
      %46 = vector.load %arg6[%c0_30, %c0_31] : memref<128x384xf32, #tpu.memory_space<vmem>>, vector<128x384xf32>
      %cst_32 = arith.constant dense<0.000000e+00> : vector<16x384xf32>
      %47 = tpu.matmul %45, %46, %cst_32 {dimension_numbers = #tpu.dot_dimension_numbers<[1], [0], [0], [1], [0, 0, 1, 1], [], []>} : vector<16x128xf32>, vector<128x384xf32>, vector<16x384xf32> -> vector<16x384xf32>
      %c0_33 = arith.constant 0 : index
      %c0_34 = arith.constant 0 : index
      %48 = vector.load %arg7[%c0_33, %c0_34] : memref<1x384xf32, #tpu.memory_space<vmem>>, vector<1x384xf32>
      %49 = vector.broadcast %48 : vector<1x384xf32> to vector<16x384xf32>
      %50 = arith.addf %47, %49 : vector<16x384xf32>
      %51 = vector.extract_strided_slice %50 {offsets = [0, 0], sizes = [16, 128], strides = [1, 1]} : vector<16x384xf32> to vector<16x128xf32>
      %52 = vector.extract_strided_slice %51 {offsets = [0, 0], sizes = [16, 32], strides = [1, 1]} : vector<16x128xf32> to vector<16x32xf32>
      %53 = vector.shape_cast %52 : vector<16x32xf32> to vector<1x16x32xf32>
      %54 = vector.extract_strided_slice %51 {offsets = [0, 32], sizes = [16, 32], strides = [1, 1]} : vector<16x128xf32> to vector<16x32xf32>
      %55 = vector.shape_cast %54 : vector<16x32xf32> to vector<1x16x32xf32>
      %56 = vector.extract_strided_slice %51 {offsets = [0, 64], sizes = [16, 32], strides = [1, 1]} : vector<16x128xf32> to vector<16x32xf32>
      %57 = vector.shape_cast %56 : vector<16x32xf32> to vector<1x16x32xf32>
      %58 = vector.extract_strided_slice %51 {offsets = [0, 96], sizes = [16, 32], strides = [1, 1]} : vector<16x128xf32> to vector<16x32xf32>
      %59 = vector.shape_cast %58 : vector<16x32xf32> to vector<1x16x32xf32>
      %60 = vector.shape_cast %53 : vector<1x16x32xf32> to vector<1x1x16x32xf32>
      %61 = vector.shape_cast %55 : vector<1x16x32xf32> to vector<1x1x16x32xf32>
      %62 = vector.shape_cast %57 : vector<1x16x32xf32> to vector<1x1x16x32xf32>
      %63 = vector.shape_cast %59 : vector<1x16x32xf32> to vector<1x1x16x32xf32>
      %64 = tpu.concatenate %60, %61, %62, %63 in 0 : vector<1x1x16x32xf32>, vector<1x1x16x32xf32>, vector<1x1x16x32xf32>, vector<1x1x16x32xf32> -> vector<4x1x16x32xf32>
      %65 = vector.shape_cast %64 : vector<4x1x16x32xf32> to vector<4x16x32xf32>
      %66 = vector.extract_strided_slice %50 {offsets = [0, 128], sizes = [16, 128], strides = [1, 1]} : vector<16x384xf32> to vector<16x128xf32>
      %67 = vector.extract_strided_slice %66 {offsets = [0, 0], sizes = [16, 32], strides = [1, 1]} : vector<16x128xf32> to vector<16x32xf32>
      %68 = vector.shape_cast %67 : vector<16x32xf32> to vector<1x16x32xf32>
      %69 = vector.extract_strided_slice %66 {offsets = [0, 32], sizes = [16, 32], strides = [1, 1]} : vector<16x128xf32> to vector<16x32xf32>
      %70 = vector.shape_cast %69 : vector<16x32xf32> to vector<1x16x32xf32>
      %71 = vector.extract_strided_slice %66 {offsets = [0, 64], sizes = [16, 32], strides = [1, 1]} : vector<16x128xf32> to vector<16x32xf32>
      %72 = vector.shape_cast %71 : vector<16x32xf32> to vector<1x16x32xf32>
      %73 = vector.extract_strided_slice %66 {offsets = [0, 96], sizes = [16, 32], strides = [1, 1]} : vector<16x128xf32> to vector<16x32xf32>
      %74 = vector.shape_cast %73 : vector<16x32xf32> to vector<1x16x32xf32>
      %75 = vector.shape_cast %68 : vector<1x16x32xf32> to vector<1x1x16x32xf32>
      %76 = vector.shape_cast %70 : vector<1x16x32xf32> to vector<1x1x16x32xf32>
      %77 = vector.shape_cast %72 : vector<1x16x32xf32> to vector<1x1x16x32xf32>
      %78 = vector.shape_cast %74 : vector<1x16x32xf32> to vector<1x1x16x32xf32>
      %79 = tpu.concatenate %75, %76, %77, %78 in 0 : vector<1x1x16x32xf32>, vector<1x1x16x32xf32>, vector<1x1x16x32xf32>, vector<1x1x16x32xf32> -> vector<4x1x16x32xf32>
      %80 = vector.shape_cast %79 : vector<4x1x16x32xf32> to vector<4x16x32xf32>
      %81 = vector.extract_strided_slice %50 {offsets = [0, 256], sizes = [16, 128], strides = [1, 1]} : vector<16x384xf32> to vector<16x128xf32>
      %82 = vector.extract_strided_slice %81 {offsets = [0, 0], sizes = [16, 32], strides = [1, 1]} : vector<16x128xf32> to vector<16x32xf32>
      %83 = vector.shape_cast %82 : vector<16x32xf32> to vector<1x16x32xf32>
      %84 = vector.extract_strided_slice %81 {offsets = [0, 32], sizes = [16, 32], strides = [1, 1]} : vector<16x128xf32> to vector<16x32xf32>
      %85 = vector.shape_cast %84 : vector<16x32xf32> to vector<1x16x32xf32>
      %86 = vector.extract_strided_slice %81 {offsets = [0, 64], sizes = [16, 32], strides = [1, 1]} : vector<16x128xf32> to vector<16x32xf32>
      %87 = vector.shape_cast %86 : vector<16x32xf32> to vector<1x16x32xf32>
      %88 = vector.extract_strided_slice %81 {offsets = [0, 96], sizes = [16, 32], strides = [1, 1]} : vector<16x128xf32> to vector<16x32xf32>
      %89 = vector.shape_cast %88 : vector<16x32xf32> to vector<1x16x32xf32>
      %90 = vector.shape_cast %83 : vector<1x16x32xf32> to vector<1x1x16x32xf32>
      %91 = vector.shape_cast %85 : vector<1x16x32xf32> to vector<1x1x16x32xf32>
      %92 = vector.shape_cast %87 : vector<1x16x32xf32> to vector<1x1x16x32xf32>
      %93 = vector.shape_cast %89 : vector<1x16x32xf32> to vector<1x1x16x32xf32>
      %94 = tpu.concatenate %90, %91, %92, %93 in 0 : vector<1x1x16x32xf32>, vector<1x1x16x32xf32>, vector<1x1x16x32xf32>, vector<1x1x16x32xf32> -> vector<4x1x16x32xf32>
      %95 = vector.shape_cast %94 : vector<4x1x16x32xf32> to vector<4x16x32xf32>
      "tpu.trace_start"() <{level = 10 : i32, message = "bqd,bkd->bqk"}> : () -> ()
      %cst_35 = arith.constant dense<0.000000e+00> : vector<4x16x16xf32>
      %96 = tpu.matmul %65, %80, %cst_35 {dimension_numbers = #tpu.dot_dimension_numbers<[2], [2], [1], [1], [0, 0, 0, 1, 1, 1], [0], [0]>} : vector<4x16x32xf32>, vector<4x16x32xf32>, vector<4x16x16xf32> -> vector<4x16x16xf32>
      "tpu.trace_stop"() : () -> ()
      %cst_36 = arith.constant 0.176776692 : f32
      %97 = vector.broadcast %cst_36 : f32 to vector<4x16x16xf32>
      %98 = arith.mulf %96, %97 : vector<4x16x16xf32>
      %99 = vector.shape_cast %98 : vector<4x16x16xf32> to vector<4x1x16x16xf32>
      %100 = vector.shape_cast %21 : vector<1x16x16xf32> to vector<1x1x16x16xf32>
      %101 = vector.broadcast %100 : vector<1x1x16x16xf32> to vector<4x1x16x16xf32>
      %102 = arith.addf %99, %101 : vector<4x1x16x16xf32>
      %103 = vector.shape_cast %102 : vector<4x1x16x16xf32> to vector<4x16x16xf32>
      %cst_37 = arith.constant dense<0xFF800000> : vector<4x16xf32>
      %104 = vector.multi_reduction <maximumf>, %103, %cst_37 [2] : vector<4x16x16xf32> to vector<4x16xf32>
      %105 = vector.shape_cast %104 : vector<4x16xf32> to vector<4x16x1xf32>
      %106 = vector.broadcast %105 : vector<4x16x1xf32> to vector<4x16x16xf32>
      %107 = arith.subf %103, %106 : vector<4x16x16xf32>
      %108 = math.exp %107 : vector<4x16x16xf32>
      %cst_38 = arith.constant dense<0.000000e+00> : vector<4x16xf32>
      %109 = vector.multi_reduction <add>, %108, %cst_38 [2] : vector<4x16x16xf32> to vector<4x16xf32>
      %110 = vector.shape_cast %109 : vector<4x16xf32> to vector<4x16x1xf32>
      %111 = vector.broadcast %110 : vector<4x16x1xf32> to vector<4x16x16xf32>
      %112 = arith.divf %108, %111 : vector<4x16x16xf32>
      "tpu.trace_start"() <{level = 10 : i32, message = "bqk,bkd->bqd"}> : () -> ()
      %cst_39 = arith.constant dense<0.000000e+00> : vector<4x16x32xf32>
      %113 = tpu.matmul %112, %95, %cst_39 {dimension_numbers = #tpu.dot_dimension_numbers<[2], [1], [1], [2], [0, 0, 0, 1, 1, 2], [0], [0]>} : vector<4x16x16xf32>, vector<4x16x32xf32>, vector<4x16x32xf32> -> vector<4x16x32xf32>
      "tpu.trace_stop"() : () -> ()
      %114 = vector.extract_strided_slice %113 {offsets = [0, 0, 0], sizes = [1, 16, 32], strides = [1, 1, 1]} : vector<4x16x32xf32> to vector<1x16x32xf32>
      %115 = vector.shape_cast %114 : vector<1x16x32xf32> to vector<16x32xf32>
      %116 = vector.extract_strided_slice %113 {offsets = [1, 0, 0], sizes = [1, 16, 32], strides = [1, 1, 1]} : vector<4x16x32xf32> to vector<1x16x32xf32>
      %117 = vector.shape_cast %116 : vector<1x16x32xf32> to vector<16x32xf32>
      %118 = vector.extract_strided_slice %113 {offsets = [2, 0, 0], sizes = [1, 16, 32], strides = [1, 1, 1]} : vector<4x16x32xf32> to vector<1x16x32xf32>
      %119 = vector.shape_cast %118 : vector<1x16x32xf32> to vector<16x32xf32>
      %120 = vector.extract_strided_slice %113 {offsets = [3, 0, 0], sizes = [1, 16, 32], strides = [1, 1, 1]} : vector<4x16x32xf32> to vector<1x16x32xf32>
      %121 = vector.shape_cast %120 : vector<1x16x32xf32> to vector<16x32xf32>
      %122 = tpu.concatenate %115, %117, %119, %121 in 1 : vector<16x32xf32>, vector<16x32xf32>, vector<16x32xf32>, vector<16x32xf32> -> vector<16x128xf32>
      %c0_40 = arith.constant 0 : index
      %c0_41 = arith.constant 0 : index
      %123 = vector.load %arg8[%c0_40, %c0_41] : memref<128x128xf32, #tpu.memory_space<vmem>>, vector<128x128xf32>
      %cst_42 = arith.constant dense<0.000000e+00> : vector<16x128xf32>
      %124 = tpu.matmul %122, %123, %cst_42 {dimension_numbers = #tpu.dot_dimension_numbers<[1], [0], [0], [1], [0, 0, 1, 1], [], []>} : vector<16x128xf32>, vector<128x128xf32>, vector<16x128xf32> -> vector<16x128xf32>
      %c0_43 = arith.constant 0 : index
      %c0_44 = arith.constant 0 : index
      %125 = vector.load %arg9[%c0_43, %c0_44] : memref<1x128xf32, #tpu.memory_space<vmem>>, vector<1x128xf32>
      %126 = vector.broadcast %125 : vector<1x128xf32> to vector<16x128xf32>
      %127 = arith.addf %124, %126 : vector<16x128xf32>
      %128 = arith.addf %20, %127 : vector<16x128xf32>
      %c0_45 = arith.constant 0 : index
      %c0_46 = arith.constant 0 : index
      %129 = vector.load %arg15[%c0_45, %c0_46] : memref<1x128xf32, #tpu.memory_space<vmem>>, vector<1x128xf32>
      %130 = vector.broadcast %129 : vector<1x128xf32> to vector<16x128xf32>
      %131 = arith.addf %128, %130 : vector<16x128xf32>
      %c0_47 = arith.constant 0 : index
      %c0_48 = arith.constant 0 : index
      %132 = vector.load %arg17[%c0_47, %c0_48] : memref<16x128xf32, #tpu.memory_space<vmem>>, vector<16x128xf32>
      tpu.vector_store %arg17[%c0_47, %c0_48], %131 {strides = array<i32>} : memref<16x128xf32, #tpu.memory_space<vmem>>, vector<16x128xf32>,
      %c0_49 = arith.constant 0 : index
      %c0_50 = arith.constant 0 : index
      %133 = vector.load %arg10[%c0_49, %c0_50] : memref<1x128xf32, #tpu.memory_space<vmem>>, vector<1x128xf32>
      %c0_51 = arith.constant 0 : index
      %c0_52 = arith.constant 0 : index
      %134 = vector.load %arg11[%c0_51, %c0_52] : memref<1x128xf32, #tpu.memory_space<vmem>>, vector<1x128xf32>
      %cst_53 = arith.constant dense<0.000000e+00> : vector<16xf32>
      %135 = vector.multi_reduction <add>, %128, %cst_53 [1] : vector<16x128xf32> to vector<16xf32>
      %136 = vector.shape_cast %135 : vector<16xf32> to vector<16x1xf32>
      %cst_54 = arith.constant 1.280000e+02 : f32
      %137 = vector.broadcast %cst_54 : f32 to vector<16x1xf32>
      %138 = arith.divf %136, %137 : vector<16x1xf32>
      %139 = vector.broadcast %138 : vector<16x1xf32> to vector<16x128xf32>
      %140 = arith.subf %128, %139 : vector<16x128xf32>
      %141 = arith.mulf %140, %140 : vector<16x128xf32>
      %cst_55 = arith.constant dense<0.000000e+00> : vector<16xf32>
      %142 = vector.multi_reduction <add>, %141, %cst_55 [1] : vector<16x128xf32> to vector<16xf32>
      %143 = vector.shape_cast %142 : vector<16xf32> to vector<16x1xf32>
      %cst_56 = arith.constant 1.270000e+02 : f32
      %144 = vector.broadcast %cst_56 : f32 to vector<16x1xf32>
      %145 = arith.divf %143, %144 : vector<16x1xf32>
      %146 = math.sqrt %145 : vector<16x1xf32>
      %cst_57 = arith.constant 9.99999997E-7 : f32
      %147 = vector.broadcast %cst_57 : f32 to vector<16x1xf32>
      %148 = arith.addf %146, %147 : vector<16x1xf32>
      %149 = vector.broadcast %138 : vector<16x1xf32> to vector<16x128xf32>
      %150 = arith.subf %128, %149 : vector<16x128xf32>
      %151 = vector.broadcast %133 : vector<1x128xf32> to vector<16x128xf32>
      %152 = arith.mulf %151, %150 : vector<16x128xf32>
      %153 = vector.broadcast %148 : vector<16x1xf32> to vector<16x128xf32>
      %154 = arith.divf %152, %153 : vector<16x128xf32>
      %155 = vector.broadcast %134 : vector<1x128xf32> to vector<16x128xf32>
      %156 = arith.addf %154, %155 : vector<16x128xf32>
      %c0_58 = arith.constant 0 : index
      %c0_59 = arith.constant 0 : index
      %157 = vector.load %arg18[%c0_58, %c0_59] : memref<16x128xf32, #tpu.memory_space<vmem>>, vector<16x128xf32>
      tpu.vector_store %arg18[%c0_58, %c0_59], %156 {strides = array<i32>} : memref<16x128xf32, #tpu.memory_space<vmem>>, vector<16x128xf32>,
    } else {
    }
    %c0 = arith.constant 0 : index
    %c0_1 = arith.constant 0 : index
    %3 = vector.load %arg18[%c0, %c0_1] : memref<16x128xf32, #tpu.memory_space<vmem>>, vector<16x128xf32>
    %c0_2 = arith.constant 0 : index
    %c0_3 = arith.constant 0 : index
    %4 = vector.load %arg12[%c0_2, %c0_3] : memref<128x128xf32, #tpu.memory_space<vmem>>, vector<128x128xf32>
    %cst = arith.constant dense<0.000000e+00> : vector<16x128xf32>
    %5 = tpu.matmul %3, %4, %cst {dimension_numbers = #tpu.dot_dimension_numbers<[1], [0], [0], [1], [0, 0, 1, 1], [], []>} : vector<16x128xf32>, vector<128x128xf32>, vector<16x128xf32> -> vector<16x128xf32>
    %c0_4 = arith.constant 0 : index
    %c0_5 = arith.constant 0 : index
    %6 = vector.load %arg13[%c0_4, %c0_5] : memref<1x128xf32, #tpu.memory_space<vmem>>, vector<1x128xf32>
    %7 = vector.broadcast %6 : vector<1x128xf32> to vector<16x128xf32>
    %8 = arith.addf %5, %7 : vector<16x128xf32>
    %cst_6 = arith.constant 0.000000e+00 : f32
    %9 = vector.broadcast %cst_6 : f32 to vector<16x128xf32>
    %10 = arith.maximumf %8, %9 : vector<16x128xf32>
    %c0_7 = arith.constant 0 : index
    %c0_8 = arith.constant 0 : index
    %11 = vector.load %arg17[%c0_7, %c0_8] : memref<16x128xf32, #tpu.memory_space<vmem>>, vector<16x128xf32>
    %c0_9 = arith.constant 0 : index
    %c0_10 = arith.constant 0 : index
    %12 = vector.load %arg14[%c0_9, %c0_10] : memref<128x128xf32, #tpu.memory_space<vmem>>, vector<128x128xf32>
    %cst_11 = arith.constant dense<0.000000e+00> : vector<16x128xf32>
    %13 = tpu.matmul %10, %12, %cst_11 {dimension_numbers = #tpu.dot_dimension_numbers<[1], [0], [0], [1], [0, 0, 1, 1], [], []>} : vector<16x128xf32>, vector<128x128xf32>, vector<16x128xf32> -> vector<16x128xf32>
    %14 = arith.addf %11, %13 : vector<16x128xf32>
    %c0_12 = arith.constant 0 : index
    %c0_13 = arith.constant 0 : index
    %15 = vector.load %arg17[%c0_12, %c0_13] : memref<16x128xf32, #tpu.memory_space<vmem>>, vector<16x128xf32>
    tpu.vector_store %arg17[%c0_12, %c0_13], %14 {strides = array<i32>} : memref<16x128xf32, #tpu.memory_space<vmem>>, vector<16x128xf32>,
    %c1_i32 = arith.constant 1 : i32
    %16 = arith.cmpi eq, %arg1, %c1_i32 : i32
    %17 = arith.extui %16 : i1 to i32
    %c0_i32_14 = arith.constant 0 : i32
    %18 = arith.cmpi ne, %17, %c0_i32_14 : i32
    scf.if %18 {
      %c0_15 = arith.constant 0 : index
      %c0_16 = arith.constant 0 : index
      %19 = vector.load %arg17[%c0_15, %c0_16] : memref<16x128xf32, #tpu.memory_space<vmem>>, vector<16x128xf32>
      %20 = vector.shape_cast %19 : vector<16x128xf32> to vector<1x16x128xf32>
      %c0_17 = arith.constant 0 : index
      %c0_18 = arith.constant 0 : index
      %c0_19 = arith.constant 0 : index
      %21 = vector.load %arg16[%c0_17, %c0_18, %c0_19] : memref<1x16x128xf32, #tpu.memory_space<vmem>>, vector<1x16x128xf32>
      tpu.vector_store %arg16[%c0_17, %c0_18, %c0_19], %20 {strides = array<i32>} : memref<1x16x128xf32, #tpu.memory_space<vmem>>, vector<1x16x128xf32>,
    } else {
    }
    return
  }
  func.func @transform_0(%arg0: i32, %arg1: i32) -> (i32, i32, i32) {
    %c0_i32 = arith.constant 0 : i32
    %c0_i32_0 = arith.constant 0 : i32
    %c0_i32_1 = arith.constant 0 : i32
    return %arg0, %c0_i32, %c0_i32_0 : i32, i32, i32
  }
  func.func @transform_1(%arg0: i32, %arg1: i32) -> (i32, i32, i32) {
    %c0_i32 = arith.constant 0 : i32
    %c0_i32_0 = arith.constant 0 : i32
    %c0_i32_1 = arith.constant 0 : i32
    return %arg0, %c0_i32, %c0_i32_0 : i32, i32, i32
  }
  func.func @transform_2(%arg0: i32, %arg1: i32) -> (i32, i32) {
    %c0_i32 = arith.constant 0 : i32
    %c0_i32_0 = arith.constant 0 : i32
    %c0_i32_1 = arith.constant 0 : i32
    return %c0_i32, %c0_i32_0 : i32, i32
  }
  func.func @transform_3(%arg0: i32, %arg1: i32) -> (i32, i32) {
    %c0_i32 = arith.constant 0 : i32
    %c0_i32_0 = arith.constant 0 : i32
    %c0_i32_1 = arith.constant 0 : i32
    return %c0_i32, %c0_i32_0 : i32, i32
  }
  func.func @transform_4(%arg0: i32, %arg1: i32) -> (i32, i32) {
    %c0_i32 = arith.constant 0 : i32
    %c0_i32_0 = arith.constant 0 : i32
    %c0_i32_1 = arith.constant 0 : i32
    return %c0_i32, %c0_i32_0 : i32, i32
  }
  func.func @transform_5(%arg0: i32, %arg1: i32) -> (i32, i32) {
    %c0_i32 = arith.constant 0 : i32
    %c0_i32_0 = arith.constant 0 : i32
    %c0_i32_1 = arith.constant 0 : i32
    return %c0_i32, %c0_i32_0 : i32, i32
  }
  func.func @transform_6(%arg0: i32, %arg1: i32) -> (i32, i32) {
    %c0_i32 = arith.constant 0 : i32
    %c0_i32_0 = arith.constant 0 : i32
    %c0_i32_1 = arith.constant 0 : i32
    return %c0_i32, %c0_i32_0 : i32, i32
  }
  func.func @transform_7(%arg0: i32, %arg1: i32) -> (i32, i32) {
    %c0_i32 = arith.constant 0 : i32
    %c0_i32_0 = arith.constant 0 : i32
    %c0_i32_1 = arith.constant 0 : i32
    return %c0_i32, %c0_i32_0 : i32, i32
  }
  func.func @transform_8(%arg0: i32, %arg1: i32) -> (i32, i32) {
    %c0_i32 = arith.constant 0 : i32
    %c0_i32_0 = arith.constant 0 : i32
    %c0_i32_1 = arith.constant 0 : i32
    return %c0_i32, %c0_i32_0 : i32, i32
  }
  func.func @transform_9(%arg0: i32, %arg1: i32) -> (i32, i32) {
    %c0_i32 = arith.constant 0 : i32
    %c0_i32_0 = arith.constant 0 : i32
    %c0_i32_1 = arith.constant 0 : i32
    return %c0_i32, %c0_i32_0 : i32, i32
  }
  func.func @transform_10(%arg0: i32, %arg1: i32) -> (i32, i32) {
    %c0_i32 = arith.constant 0 : i32
    %c0_i32_0 = arith.constant 0 : i32
    return %c0_i32, %arg1 : i32, i32
  }
  func.func @transform_11(%arg0: i32, %arg1: i32) -> (i32, i32) {
    %c0_i32 = arith.constant 0 : i32
    %c0_i32_0 = arith.constant 0 : i32
    return %c0_i32, %arg1 : i32, i32
  }
  func.func @transform_12(%arg0: i32, %arg1: i32) -> (i32, i32) {
    %c0_i32 = arith.constant 0 : i32
    %c0_i32_0 = arith.constant 0 : i32
    return %arg1, %c0_i32 : i32, i32
  }
  func.func @transform_13(%arg0: i32, %arg1: i32) -> (i32, i32) {
    %c0_i32 = arith.constant 0 : i32
    %c0_i32_0 = arith.constant 0 : i32
    %c0_i32_1 = arith.constant 0 : i32
    return %c0_i32, %c0_i32_0 : i32, i32
  }
  func.func @transform_14(%arg0: i32, %arg1: i32) -> (i32, i32, i32) {
    %c0_i32 = arith.constant 0 : i32
    %c0_i32_0 = arith.constant 0 : i32
    %c0_i32_1 = arith.constant 0 : i32
    return %arg0, %c0_i32, %c0_i32_0 : i32, i32, i32
  }
}

</mosaic_0001>

<llo_original>
// kernel: tpu_custom_call.1
$region0: #{tpu_custom_call.1}
  #allocation0 [shape = 'u32[]', space=smem, size = 0x4, offset = 0x4, fixed_abs, tag = 'smem constant byte address 0x4 - core index']
  #allocation1 [shape = 'u32[144,128]{1,0:T(1,128)}', space=vmem, size = 0x12000, scoped, tag = 'internal scratch']
  #allocation2 [shape = 'f32[16,128]{1,0:T(8,128)}', space=vmem, size = 0x2000, scoped, tag = 'scratch operand']
  #allocation3 [shape = 'f32[16,128]{1,0:T(8,128)}', space=vmem, size = 0x2000, scoped, tag = 'scratch operand']
  %s0 = inlined_call_operand.hbm [shape: f32[4,16,128], index: 0, kind: input, shape index: {}]
  %s1 = inlined_call_operand.hbm [shape: f32[4,16,16], index: 1, kind: input, shape index: {}]
  %s2 = inlined_call_operand.vmem [shape: f32[1,128], index: 2, kind: input, shape index: {}]
  %s3 = inlined_call_operand.vmem [shape: f32[1,128], index: 3, kind: input, shape index: {}]
  %s4 = inlined_call_operand.hbm [shape: f32[128,384], index: 4, kind: input, shape index: {}]
  %s5 = inlined_call_operand.vmem [shape: f32[1,384], index: 5, kind: input, shape index: {}]
  %s6 = inlined_call_operand.hbm [shape: f32[128,128], index: 6, kind: input, shape index: {}]
  %s7 = inlined_call_operand.vmem [shape: f32[1,128], index: 7, kind: input, shape index: {}]
  %s8 = inlined_call_operand.vmem [shape: f32[1,128], index: 8, kind: input, shape index: {}]
  %s9 = inlined_call_operand.vmem [shape: f32[1,128], index: 9, kind: input, shape index: {}]
  %s10 = inlined_call_operand.hbm [shape: f32[128,256], index: 10, kind: input, shape index: {}]
  %s11 = inlined_call_operand.vmem [shape: f32[1,256], index: 11, kind: input, shape index: {}]
  %s12 = inlined_call_operand.hbm [shape: f32[256,128], index: 12, kind: input, shape index: {}]
  %s13 = inlined_call_operand.vmem [shape: f32[1,128], index: 13, kind: input, shape index: {}]
  %s14 = inlined_call_operand.hbm [shape: f32[4,16,128], index: 14, kind: output, shape index: {}]
  %s15 = sld [smem:[#allocation0]]
  $region121: #{tpu_custom_call.1} parent=0
    _
  %s17 = ssub.s32 1, %s15
  %s18 = scalar_select 0, %s17, %s15
  $region1: #{tpu_custom_call.1} parent=0
    #allocation4 [shape = 'u8[16384]{0}', space=vmem, size = 0x4000, scoped, tag = 'input window, operand 0']
    #allocation5 [shape = 's32[2]{0}', space=sflag, size = 0x8, scoped, tag = 'scoped memory for tpu_custom_call.1']
    #allocation6 [shape = 's32[2]{0}', space=sflag, size = 0x8, scoped, tag = 'scoped memory for tpu_custom_call.1']
    #allocation7 [shape = 'u8[16384]{0}', space=vmem, size = 0x4000, scoped, tag = 'input window, operand 1']
    #allocation8 [shape = 's32[2]{0}', space=sflag, size = 0x8, scoped, tag = 'scoped memory for tpu_custom_call.1']
    #allocation9 [shape = 'u8[196608]{0}', space=vmem, size = 0x30000, scoped, tag = 'input window, operand 4, single buffered']
    #allocation10 [shape = 'u8[65536]{0}', space=vmem, size = 0x10000, scoped, tag = 'input window, operand 6, single buffered']
    #allocation11 [shape = 's32[1]{0}', space=sflag, size = 0x4, scoped, tag = 'scoped memory for tpu_custom_call.1']
    #allocation12 [shape = 'u8[131072]{0}', space=vmem, size = 0x20000, scoped, tag = 'input window, operand 10']
    #allocation13 [shape = 'u8[131072]{0}', space=vmem, size = 0x20000, scoped, tag = 'input window, operand 12']
    #allocation14 [shape = 'u8[16384]{0}', space=vmem, size = 0x4000, scoped, tag = 'output window, operand 0']
    %19 = vsyncpa [#allocation5], 0
    %s20 = scalar_lea.sflag [#allocation5], 1
    %21 = vsyncpa %s20, 0
    %22 = vsyncpa [#allocation8], 0
    %s23 = scalar_lea.sflag [#allocation8], 1
    %24 = vsyncpa %s23, 0
    %25 = vsyncpa [#allocation11], 0
    %26 = vsyncpa [#allocation6], 0
    %s27 = scalar_lea.sflag [#allocation6], 1
    %28 = vsyncpa %s27, 0
    loop: start=0, step=1, limit=10
    $region2: #{tpu_custom_call.1} parent=1 // loop_pre_header
      _
    $region3: #{tpu_custom_call.1} parent=1 // loop_header
      %s30 = sphi 0, %s34
      %p31 = scmp.ge.s32.totalorder %s30, 10
      %s37 = sphi 0, %s49
      %s38 = sphi 0, %s45
      %s39 = sphi 0, %s37
      %s40 = sphi 0, %s38
      %s41 = sphi 0, %s39
      %s42 = sphi 0, %s40
      %s52 = sphi 0, %s54
      %s55 = sphi 0, %s52
      %s56 = sphi 0, %s55
      %s72 = sphi 0, %s56
      %s78 = sphi 0, %s80
      %s81 = sphi 0, %s78
      %s82 = sphi 0, %s81
      %s98 = sphi 0, %s82
      %s102 = sphi 0, %s102
      %s104 = sphi 0, %s102
      %s105 = sphi 0, %s104
      %s119 = sphi 0, %s105
      %s123 = sphi 0, %s123
      %s125 = sphi 0, %s123
      %s126 = sphi 0, %s125
      %s140 = sphi 0, %s126
      %s144 = sphi 0, %s144
      %s146 = sphi 0, %s144
      %s147 = sphi 0, %s146
      %s161 = sphi 0, %s147
      %s165 = sphi 0, %s165
      %s167 = sphi 0, %s165
      %s168 = sphi 0, %s167
      %s182 = sphi 0, %s168
      %s186 = sphi 0, %s186
      %s188 = sphi 0, %s186
      %s189 = sphi 0, %s188
      %s203 = sphi 0, %s189
      %s207 = sphi 0, %s207
      %s209 = sphi 0, %s207
      %s210 = sphi 0, %s209
      %s224 = sphi 0, %s210
      %s228 = sphi 0, %s228
      %s230 = sphi 0, %s228
      %s231 = sphi 0, %s230
      %s245 = sphi 0, %s231
      %s249 = sphi 0, %s249
      %s251 = sphi 0, %s249
      %s252 = sphi 0, %s251
      %s266 = sphi 0, %s252
      %s272 = sphi 0, %s274
      %s275 = sphi 0, %s272
      %s276 = sphi 0, %s275
      %s292 = sphi 0, %s276
      %s298 = sphi 0, %s300
      %s301 = sphi 0, %s298
      %s302 = sphi 0, %s301
      %s318 = sphi 0, %s302
      %s324 = sphi 0, %s326
      %s327 = sphi 0, %s324
      %s328 = sphi 0, %s327
      %s344 = sphi 0, %s328
      %s348 = sphi 0, %s348
      %s350 = sphi 0, %s348
      %s351 = sphi 0, %s350
      %s365 = sphi 0, %s351
      %s371 = sphi 0, %s373
      %s374 = sphi 0, %s371
      %s375 = sphi 0, %s374
      %s391 = sphi 0, %s375
    $region4: #{tpu_custom_call.1} parent=1 // loop_header_branch
      %33 = sbr.rel (%p31) target = $region8
    $region5: #{tpu_custom_call.1} parent=1 // loop_body
      %s35 = ssub.s32 %s30, 1
      %s36 = ssub.s32 %s30, 2
      %s43 = sadd.s32 1, %s38
      %p44 = scmp.ge.s32.totalorder %s43, 2
      %s45 = scalar_select %p44, 0, %s43
      %s46 = sadd.s32 1, %s37
      %s47 = scalar_select %p44, %s46, %s37
      %p48 = scmp.ge.s32.totalorder %s47, 4
      %s49 = scalar_select %p48, 0, %s47
      %s50 = ssub.s32 %s37, %s49
      %p51 = scmp.eq.s32.totalorder %s50, 0
      %s53 = sadd.s32 %s52, 1
      %s54 = scalar_select %p51, %s52, %s53
      %p57 = pneg %p51
      %p58 = scmp.eq.s32.totalorder %s30, 7
      %p59 = por %p57, %p58
      %p60 = scmp.ne.s32.totalorder %s52, %s55
      %p61 = scmp.eq.s32.totalorder %s30, 0
      %p62 = por %p60, %p61
      %p63 = scmp.ne.s32.totalorder %s52, %s55
      %p64 = scmp.eq.s32.totalorder %s35, 7
      %p65 = por %p63, %p64
      %p66 = scmp.ne.s32.totalorder %s55, %s56
      %p67 = scmp.eq.s32.totalorder %s35, 0
      %p68 = por %p66, %p67
      %p69 = scmp.ne.s32.totalorder %s55, %s56
      %p70 = scmp.eq.s32.totalorder %s36, 7
      %p71 = por %p69, %p70
      %p73 = scmp.ne.s32.totalorder %s56, %s72
      %p74 = scmp.eq.s32.totalorder %s36, 0
      %p75 = por %p73, %p74
      %s76 = ssub.s32 %s37, %s49
      %p77 = scmp.eq.s32.totalorder %s76, 0
      %s79 = sadd.s32 %s78, 1
      %s80 = scalar_select %p77, %s78, %s79
      %p83 = pneg %p77
      %p84 = scmp.eq.s32.totalorder %s30, 7
      %p85 = por %p83, %p84
      %p86 = scmp.ne.s32.totalorder %s78, %s81
      %p87 = scmp.eq.s32.totalorder %s30, 0
      %p88 = por %p86, %p87
      %p89 = scmp.ne.s32.totalorder %s78, %s81
      %p90 = scmp.eq.s32.totalorder %s35, 7
      %p91 = por %p89, %p90
      %p92 = scmp.ne.s32.totalorder %s81, %s82
      %p93 = scmp.eq.s32.totalorder %s35, 0
      %p94 = por %p92, %p93
      %p95 = scmp.ne.s32.totalorder %s81, %s82
      %p96 = scmp.eq.s32.totalorder %s36, 7
      %p97 = por %p95, %p96
      %p99 = scmp.ne.s32.totalorder %s82, %s98
      %p100 = scmp.eq.s32.totalorder %s36, 0
      %p101 = por %p99, %p100
      %s103 = sadd.s32 %s102, 1
      %p106 = scmp.eq.s32.totalorder %s30, 7
      %p107 = scmp.ne.s32.totalorder %s102, %s104
      %p108 = scmp.eq.s32.totalorder %s30, 0
      %p109 = por %p107, %p108
      %p110 = scmp.ne.s32.totalorder %s102, %s104
      %p111 = scmp.eq.s32.totalorder %s35, 7
      %p112 = por %p110, %p111
      %p113 = scmp.ne.s32.totalorder %s104, %s105
      %p114 = scmp.eq.s32.totalorder %s35, 0
      %p115 = por %p113, %p114
      %p116 = scmp.ne.s32.totalorder %s104, %s105
      %p117 = scmp.eq.s32.totalorder %s36, 7
      %p118 = por %p116, %p117
      %p120 = scmp.ne.s32.totalorder %s105, %s119
      %p121 = scmp.eq.s32.totalorder %s36, 0
      %p122 = por %p120, %p121
      %s124 = sadd.s32 %s123, 1
      %p127 = scmp.eq.s32.totalorder %s30, 7
      %p128 = scmp.ne.s32.totalorder %s123, %s125
      %p129 = scmp.eq.s32.totalorder %s30, 0
      %p130 = por %p128, %p129
      %p131 = scmp.ne.s32.totalorder %s123, %s125
      %p132 = scmp.eq.s32.totalorder %s35, 7
      %p133 = por %p131, %p132
      %p134 = scmp.ne.s32.totalorder %s125, %s126
      %p135 = scmp.eq.s32.totalorder %s35, 0
      %p136 = por %p134, %p135
      %p137 = scmp.ne.s32.totalorder %s125, %s126
      %p138 = scmp.eq.s32.totalorder %s36, 7
      %p139 = por %p137, %p138
      %p141 = scmp.ne.s32.totalorder %s126, %s140
      %p142 = scmp.eq.s32.totalorder %s36, 0
      %p143 = por %p141, %p142
      %s145 = sadd.s32 %s144, 1
      %p148 = scmp.eq.s32.totalorder %s30, 7
      %p149 = scmp.ne.s32.totalorder %s144, %s146
      %p150 = scmp.eq.s32.totalorder %s30, 0
      %p151 = por %p149, %p150
      %p152 = scmp.ne.s32.totalorder %s144, %s146
      %p153 = scmp.eq.s32.totalorder %s35, 7
      %p154 = por %p152, %p153
      %p155 = scmp.ne.s32.totalorder %s146, %s147
      %p156 = scmp.eq.s32.totalorder %s35, 0
      %p157 = por %p155, %p156
      %p158 = scmp.ne.s32.totalorder %s146, %s147
      %p159 = scmp.eq.s32.totalorder %s36, 7
      %p160 = por %p158, %p159
      %p162 = scmp.ne.s32.totalorder %s147, %s161
      %p163 = scmp.eq.s32.totalorder %s36, 0
      %p164 = por %p162, %p163
      %s166 = sadd.s32 %s165, 1
      %p169 = scmp.eq.s32.totalorder %s30, 7
      %p170 = scmp.ne.s32.totalorder %s165, %s167
      %p171 = scmp.eq.s32.totalorder %s30, 0
      %p172 = por %p170, %p171
      %p173 = scmp.ne.s32.totalorder %s165, %s167
      %p174 = scmp.eq.s32.totalorder %s35, 7
      %p175 = por %p173, %p174
      %p176 = scmp.ne.s32.totalorder %s167, %s168
      %p177 = scmp.eq.s32.totalorder %s35, 0
      %p178 = por %p176, %p177
      %p179 = scmp.ne.s32.totalorder %s167, %s168
      %p180 = scmp.eq.s32.totalorder %s36, 7
      %p181 = por %p179, %p180
      %p183 = scmp.ne.s32.totalorder %s168, %s182
      %p184 = scmp.eq.s32.totalorder %s36, 0
      %p185 = por %p183, %p184
      %s187 = sadd.s32 %s186, 1
      %p190 = scmp.eq.s32.totalorder %s30, 7
      %p191 = scmp.ne.s32.totalorder %s186, %s188
      %p192 = scmp.eq.s32.totalorder %s30, 0
      %p193 = por %p191, %p192
      %p194 = scmp.ne.s32.totalorder %s186, %s188
      %p195 = scmp.eq.s32.totalorder %s35, 7
      %p196 = por %p194, %p195
      %p197 = scmp.ne.s32.totalorder %s188, %s189
      %p198 = scmp.eq.s32.totalorder %s35, 0
      %p199 = por %p197, %p198
      %p200 = scmp.ne.s32.totalorder %s188, %s189
      %p201 = scmp.eq.s32.totalorder %s36, 7
      %p202 = por %p200, %p201
      %p204 = scmp.ne.s32.totalorder %s189, %s203
      %p205 = scmp.eq.s32.totalorder %s36, 0
      %p206 = por %p204, %p205
      %s208 = sadd.s32 %s207, 1
      %p211 = scmp.eq.s32.totalorder %s30, 7
      %p212 = scmp.ne.s32.totalorder %s207, %s209
      %p213 = scmp.eq.s32.totalorder %s30, 0
      %p214 = por %p212, %p213
      %p215 = scmp.ne.s32.totalorder %s207, %s209
      %p216 = scmp.eq.s32.totalorder %s35, 7
      %p217 = por %p215, %p216
      %p218 = scmp.ne.s32.totalorder %s209, %s210
      %p219 = scmp.eq.s32.totalorder %s35, 0
      %p220 = por %p218, %p219
      %p221 = scmp.ne.s32.totalorder %s209, %s210
      %p222 = scmp.eq.s32.totalorder %s36, 7
      %p223 = por %p221, %p222
      %p225 = scmp.ne.s32.totalorder %s210, %s224
      %p226 = scmp.eq.s32.totalorder %s36, 0
      %p227 = por %p225, %p226
      %s229 = sadd.s32 %s228, 1
      %p232 = scmp.eq.s32.totalorder %s30, 7
      %p233 = scmp.ne.s32.totalorder %s228, %s230
      %p234 = scmp.eq.s32.totalorder %s30, 0
      %p235 = por %p233, %p234
      %p236 = scmp.ne.s32.totalorder %s228, %s230
      %p237 = scmp.eq.s32.totalorder %s35, 7
      %p238 = por %p236, %p237
      %p239 = scmp.ne.s32.totalorder %s230, %s231
      %p240 = scmp.eq.s32.totalorder %s35, 0
      %p241 = por %p239, %p240
      %p242 = scmp.ne.s32.totalorder %s230, %s231
      %p243 = scmp.eq.s32.totalorder %s36, 7
      %p244 = por %p242, %p243
      %p246 = scmp.ne.s32.totalorder %s231, %s245
      %p247 = scmp.eq.s32.totalorder %s36, 0
      %p248 = por %p246, %p247
      %s250 = sadd.s32 %s249, 1
      %p253 = scmp.eq.s32.totalorder %s30, 7
      %p254 = scmp.ne.s32.totalorder %s249, %s251
      %p255 = scmp.eq.s32.totalorder %s30, 0
      %p256 = por %p254, %p255
      %p257 = scmp.ne.s32.totalorder %s249, %s251
      %p258 = scmp.eq.s32.totalorder %s35, 7
      %p259 = por %p257, %p258
      %p260 = scmp.ne.s32.totalorder %s251, %s252
      %p261 = scmp.eq.s32.totalorder %s35, 0
      %p262 = por %p260, %p261
      %p263 = scmp.ne.s32.totalorder %s251, %s252
      %p264 = scmp.eq.s32.totalorder %s36, 7
      %p265 = por %p263, %p264
      %p267 = scmp.ne.s32.totalorder %s252, %s266
      %p268 = scmp.eq.s32.totalorder %s36, 0
      %p269 = por %p267, %p268
      %s270 = ssub.s32 %s38, %s45
      %p271 = scmp.eq.s32.totalorder %s270, 0
      %s273 = sadd.s32 %s272, 1
      %s274 = scalar_select %p271, %s272, %s273
      %p277 = pneg %p271
      %p278 = scmp.eq.s32.totalorder %s30, 7
      %p279 = por %p277, %p278
      %p280 = scmp.ne.s32.totalorder %s272, %s275
      %p281 = scmp.eq.s32.totalorder %s30, 0
      %p282 = por %p280, %p281
      %p283 = scmp.ne.s32.totalorder %s272, %s275
      %p284 = scmp.eq.s32.totalorder %s35, 7
      %p285 = por %p283, %p284
      %p286 = scmp.ne.s32.totalorder %s275, %s276
      %p287 = scmp.eq.s32.totalorder %s35, 0
      %p288 = por %p286, %p287
      %p289 = scmp.ne.s32.totalorder %s275, %s276
      %p290 = scmp.eq.s32.totalorder %s36, 7
      %p291 = por %p289, %p290
      %p293 = scmp.ne.s32.totalorder %s276, %s292
      %p294 = scmp.eq.s32.totalorder %s36, 0
      %p295 = por %p293, %p294
      %s296 = ssub.s32 %s38, %s45
      %p297 = scmp.eq.s32.totalorder %s296, 0
      %s299 = sadd.s32 %s298, 1
      %s300 = scalar_select %p297, %s298, %s299
      %p303 = pneg %p297
      %p304 = scmp.eq.s32.totalorder %s30, 7
      %p305 = por %p303, %p304
      %p306 = scmp.ne.s32.totalorder %s298, %s301
      %p307 = scmp.eq.s32.totalorder %s30, 0
      %p308 = por %p306, %p307
      %p309 = scmp.ne.s32.totalorder %s298, %s301
      %p310 = scmp.eq.s32.totalorder %s35, 7
      %p311 = por %p309, %p310
      %p312 = scmp.ne.s32.totalorder %s301, %s302
      %p313 = scmp.eq.s32.totalorder %s35, 0
      %p314 = por %p312, %p313
      %p315 = scmp.ne.s32.totalorder %s301, %s302
      %p316 = scmp.eq.s32.totalorder %s36, 7
      %p317 = por %p315, %p316
      %p319 = scmp.ne.s32.totalorder %s302, %s318
      %p320 = scmp.eq.s32.totalorder %s36, 0
      %p321 = por %p319, %p320
      %s322 = ssub.s32 %s38, %s45
      %p323 = scmp.eq.s32.totalorder %s322, 0
      %s325 = sadd.s32 %s324, 1
      %s326 = scalar_select %p323, %s324, %s325
      %p329 = pneg %p323
      %p330 = scmp.eq.s32.totalorder %s30, 7
      %p331 = por %p329, %p330
      %p332 = scmp.ne.s32.totalorder %s324, %s327
      %p333 = scmp.eq.s32.totalorder %s30, 0
      %p334 = por %p332, %p333
      %p335 = scmp.ne.s32.totalorder %s324, %s327
      %p336 = scmp.eq.s32.totalorder %s35, 7
      %p337 = por %p335, %p336
      %p338 = scmp.ne.s32.totalorder %s327, %s328
      %p339 = scmp.eq.s32.totalorder %s35, 0
      %p340 = por %p338, %p339
      %p341 = scmp.ne.s32.totalorder %s327, %s328
      %p342 = scmp.eq.s32.totalorder %s36, 7
      %p343 = por %p341, %p342
      %p345 = scmp.ne.s32.totalorder %s328, %s344
      %p346 = scmp.eq.s32.totalorder %s36, 0
      %p347 = por %p345, %p346
      %s349 = sadd.s32 %s348, 1
      %p352 = scmp.eq.s32.totalorder %s30, 7
      %p353 = scmp.ne.s32.totalorder %s348, %s350
      %p354 = scmp.eq.s32.totalorder %s30, 0
      %p355 = por %p353, %p354
      %p356 = scmp.ne.s32.totalorder %s348, %s350
      %p357 = scmp.eq.s32.totalorder %s35, 7
      %p358 = por %p356, %p357
      %p359 = scmp.ne.s32.totalorder %s350, %s351
      %p360 = scmp.eq.s32.totalorder %s35, 0
      %p361 = por %p359, %p360
      %p362 = scmp.ne.s32.totalorder %s350, %s351
      %p363 = scmp.eq.s32.totalorder %s36, 7
      %p364 = por %p362, %p363
      %p366 = scmp.ne.s32.totalorder %s351, %s365
      %p367 = scmp.eq.s32.totalorder %s36, 0
      %p368 = por %p366, %p367
      %s369 = ssub.s32 %s37, %s49
      %p370 = scmp.eq.s32.totalorder %s369, 0
      %s372 = sadd.s32 %s371, 1
      %s373 = scalar_select %p370, %s371, %s372
      %p376 = pneg %p370
      %p377 = scmp.eq.s32.totalorder %s30, 7
      %p378 = por %p376, %p377
      %p379 = scmp.ne.s32.totalorder %s371, %s374
      %p380 = scmp.eq.s32.totalorder %s30, 0
      %p381 = por %p379, %p380
      %p382 = scmp.ne.s32.totalorder %s371, %s374
      %p383 = scmp.eq.s32.totalorder %s35, 7
      %p384 = por %p382, %p383
      %p385 = scmp.ne.s32.totalorder %s374, %s375
      %p386 = scmp.eq.s32.totalorder %s35, 0
      %p387 = por %p385, %p386
      %p388 = scmp.ne.s32.totalorder %s374, %s375
      %p389 = scmp.eq.s32.totalorder %s36, 7
      %p390 = por %p388, %p389
      %p392 = scmp.ne.s32.totalorder %s375, %s391
      %p393 = scmp.eq.s32.totalorder %s36, 0
      %p394 = por %p392, %p393
      %p395 = scmp.le.s32.totalorder 1, %s30
      %p396 = scmp.lt.s32.totalorder %s30, 9
      %p397 = pnand %p395, %p396
      %p398 = pneg %p397
      // Predicated region
      $region9: #{tpu_custom_call.1} parent=5 // pred_check
        _
      $region10: #{tpu_custom_call.1} parent=5 // pred_check_branch
        %400 = sbr.rel (%p397) target = $region12
      $region11: #{tpu_custom_call.1} parent=5 // pred_region
        %s401 = ssub.s32 %s30, 1
        // Predicated region
        $region13: #{tpu_custom_call.1} parent=11 // pred_check
          %p402 = pneg %p115
        $region14: #{tpu_custom_call.1} parent=11 // pred_check_branch
          %404 = sbr.rel (%p402) target = $region16
        $region15: #{tpu_custom_call.1} parent=11 // pred_region
          _
        $region16: #{tpu_custom_call.1} parent=11 // pred_fallthru
          _
        // Predicated region
        $region17: #{tpu_custom_call.1} parent=11 // pred_check
          %p405 = pneg %p136
        $region18: #{tpu_custom_call.1} parent=11 // pred_check_branch
          %407 = sbr.rel (%p405) target = $region20
        $region19: #{tpu_custom_call.1} parent=11 // pred_region
          _
        $region20: #{tpu_custom_call.1} parent=11 // pred_fallthru
          _
        // Predicated region
        $region21: #{tpu_custom_call.1} parent=11 // pred_check
          %p408 = pneg %p157
        $region22: #{tpu_custom_call.1} parent=11 // pred_check_branch
          %410 = sbr.rel (%p408) target = $region24
        $region23: #{tpu_custom_call.1} parent=11 // pred_region
          %s412 = ssub.s32 6144, 6144
          %413 = vsyncadd [#allocation8], %s412
          %s414 = sshll.u32 [#allocation9], 4
          %s415 = int_to_ptr.vmem [resolvable:$true] %s414
          %420 = dma.hbm_to_vmem [thread:$0]  %s4, 6144, %s415, [#allocation8], 384, 384, 24
        $region24: #{tpu_custom_call.1} parent=11 // pred_fallthru
          _
        // Predicated region
        $region25: #{tpu_custom_call.1} parent=11 // pred_check
          %p421 = pneg %p178
        $region26: #{tpu_custom_call.1} parent=11 // pred_check_branch
          %423 = sbr.rel (%p421) target = $region28
        $region27: #{tpu_custom_call.1} parent=11 // pred_region
          _
        $region28: #{tpu_custom_call.1} parent=11 // pred_fallthru
          _
        // Predicated region
        $region29: #{tpu_custom_call.1} parent=11 // pred_check
          %p424 = pneg %p199
        $region30: #{tpu_custom_call.1} parent=11 // pred_check_branch
          %426 = sbr.rel (%p424) target = $region32
        $region31: #{tpu_custom_call.1} parent=11 // pred_region
          %s428 = ssub.s32 2048, 2048
          %429 = vsyncadd [#allocation11], %s428
          %s430 = sshll.u32 [#allocation10], 4
          %s431 = int_to_ptr.vmem [resolvable:$true] %s430
          %436 = dma.hbm_to_vmem [thread:$0]  %s6, 2048, %s431, [#allocation11], 128, 128, 8
        $region32: #{tpu_custom_call.1} parent=11 // pred_fallthru
          _
        // Predicated region
        $region33: #{tpu_custom_call.1} parent=11 // pred_check
          %p437 = pneg %p220
        $region34: #{tpu_custom_call.1} parent=11 // pred_check_branch
          %439 = sbr.rel (%p437) target = $region36
        $region35: #{tpu_custom_call.1} parent=11 // pred_region
          _
        $region36: #{tpu_custom_call.1} parent=11 // pred_fallthru
          _
        // Predicated region
        $region37: #{tpu_custom_call.1} parent=11 // pred_check
          %p440 = pneg %p241
        $region38: #{tpu_custom_call.1} parent=11 // pred_check_branch
          %442 = sbr.rel (%p440) target = $region40
        $region39: #{tpu_custom_call.1} parent=11 // pred_region
          _
        $region40: #{tpu_custom_call.1} parent=11 // pred_fallthru
          _
        // Predicated region
        $region41: #{tpu_custom_call.1} parent=11 // pred_check
          %p443 = pneg %p262
        $region42: #{tpu_custom_call.1} parent=11 // pred_check_branch
          %445 = sbr.rel (%p443) target = $region44
        $region43: #{tpu_custom_call.1} parent=11 // pred_region
          _
        $region44: #{tpu_custom_call.1} parent=11 // pred_fallthru
          _
        // Predicated region
        $region45: #{tpu_custom_call.1} parent=11 // pred_check
          %p446 = pneg %p361
        $region46: #{tpu_custom_call.1} parent=11 // pred_check_branch
          %448 = sbr.rel (%p446) target = $region48
        $region47: #{tpu_custom_call.1} parent=11 // pred_region
          _
        $region48: #{tpu_custom_call.1} parent=11 // pred_fallthru
          _
      $region12: #{tpu_custom_call.1} parent=5 // pred_fallthru
        _
      %p449 = scmp.lt.s32.totalorder %s30, 8
      // Predicated region
      $region49: #{tpu_custom_call.1} parent=5 // pred_check
        %p450 = pneg %p449
      $region50: #{tpu_custom_call.1} parent=5 // pred_check_branch
        %452 = sbr.rel (%p450) target = $region52
      $region51: #{tpu_custom_call.1} parent=5 // pred_region
        // Predicated region
        $region53: #{tpu_custom_call.1} parent=51 // pred_check
          %p453 = pneg %p62
        $region54: #{tpu_custom_call.1} parent=51 // pred_check_branch
          %455 = sbr.rel (%p453) target = $region56
        $region55: #{tpu_custom_call.1} parent=51 // pred_region
          %s456 = sand.u32 %s30, 1
          %s457 = scalar_lea.sflag [#allocation5], %s456
          %s458 = sand.u32 %s52, 1
          %s459 = smul.addr %s458, 16
          %s460 = scalar_lea.vmem [#allocation4], %s459
          %s462 = ssub.s32 256, 256
          %463 = vsyncadd %s457, %s462
          %s464 = smul.addr %s37, 2
          %s465 = smul.addr %s464, 128
          %s466 = scalar_lea.hbm %s0, %s465
          %s467 = sshll.u32 %s460, 4
          %s468 = int_to_ptr.vmem [resolvable:$true] %s467
          %473 = dma.hbm_to_vmem [thread:$0]  %s466, 256, %s468, %s457, 128, 128, 8
        $region56: #{tpu_custom_call.1} parent=51 // pred_fallthru
          _
        // Predicated region
        $region57: #{tpu_custom_call.1} parent=51 // pred_check
          %p474 = pneg %p88
        $region58: #{tpu_custom_call.1} parent=51 // pred_check_branch
          %476 = sbr.rel (%p474) target = $region60
        $region59: #{tpu_custom_call.1} parent=51 // pred_region
          %s477 = sand.u32 %s30, 1
          %s478 = scalar_lea.sflag [#allocation8], %s477
          %s479 = sand.u32 %s78, 1
          %s480 = smul.addr %s479, 16
          %s481 = scalar_lea.vmem [#allocation7], %s480
          %s483 = ssub.s32 256, 256
          %484 = vsyncadd %s478, %s483
          %s485 = smul.addr %s37, 2
          %s486 = smul.addr %s485, 128
          %s487 = scalar_lea.hbm %s1, %s486
          %s488 = sshll.u32 %s481, 4
          %s489 = int_to_ptr.vmem [resolvable:$true] %s488
          %494 = dma.hbm_to_vmem [thread:$0]  %s487, 256, %s489, %s478, 128, 128, 8
        $region60: #{tpu_custom_call.1} parent=51 // pred_fallthru
          _
        // Predicated region
        $region61: #{tpu_custom_call.1} parent=51 // pred_check
          %p495 = pneg %p282
        $region62: #{tpu_custom_call.1} parent=51 // pred_check_branch
          %497 = sbr.rel (%p495) target = $region64
        $region63: #{tpu_custom_call.1} parent=51 // pred_region
          %s498 = sand.u32 %s30, 1
          %s499 = scalar_lea.sflag [#allocation5], %s498
          %s500 = sand.u32 %s272, 1
          %s501 = smul.addr %s500, 128
          %s502 = scalar_lea.vmem [#allocation12], %s501
          %s504 = ssub.s32 2048, 2048
          %505 = vsyncadd %s499, %s504
          %s506 = smul.addr %s38, 128
          %s507 = scalar_lea.hbm %s10, %s506
          %s508 = sshll.u32 %s502, 4
          %s509 = int_to_ptr.vmem [resolvable:$true] %s508
          %514 = dma.hbm_to_vmem [thread:$0]  %s507, 2048, %s509, %s499, 256, 128, 8
        $region64: #{tpu_custom_call.1} parent=51 // pred_fallthru
          _
        // Predicated region
        $region65: #{tpu_custom_call.1} parent=51 // pred_check
          %p515 = pneg %p308
        $region66: #{tpu_custom_call.1} parent=51 // pred_check_branch
          %517 = sbr.rel (%p515) target = $region68
        $region67: #{tpu_custom_call.1} parent=51 // pred_region
          %p518 = scmp.lt.s32.totalorder %s38, 1
          %s519 = scalar_select %p518, %s38, 1
          %s520 = scalar_lea.vmem %s11, %s519
        $region68: #{tpu_custom_call.1} parent=51 // pred_fallthru
          _
        // Predicated region
        $region69: #{tpu_custom_call.1} parent=51 // pred_check
          %p521 = pneg %p334
        $region70: #{tpu_custom_call.1} parent=51 // pred_check_branch
          %523 = sbr.rel (%p521) target = $region72
        $region71: #{tpu_custom_call.1} parent=51 // pred_region
          %s524 = sand.u32 %s30, 1
          %s525 = scalar_lea.sflag [#allocation8], %s524
          %s526 = sand.u32 %s324, 1
          %s527 = smul.addr %s526, 128
          %s528 = scalar_lea.vmem [#allocation13], %s527
          %s529 = smul.u32 16, %s38
          %s531 = ssub.s32 2048, 2048
          %532 = vsyncadd %s525, %s531
          %s533 = smul.addr %s529, 128
          %s534 = scalar_lea.hbm %s12, %s533
          %s535 = sshll.u32 %s528, 4
          %s536 = int_to_ptr.vmem [resolvable:$true] %s535
          %541 = dma.hbm_to_vmem [thread:$0]  %s534, 2048, %s536, %s525, 128, 128, 8
        $region72: #{tpu_custom_call.1} parent=51 // pred_fallthru
          _
      $region52: #{tpu_custom_call.1} parent=5 // pred_fallthru
        _
      %p542 = scmp.le.s32.totalorder 1, %s30
      %p543 = scmp.lt.s32.totalorder %s30, 9
      %p544 = pnand %p542, %p543
      %p545 = pneg %p544
      // Predicated region
      $region73: #{tpu_custom_call.1} parent=5 // pred_check
        _
      $region74: #{tpu_custom_call.1} parent=5 // pred_check_branch
        %547 = sbr.rel (%p544) target = $region76
      $region75: #{tpu_custom_call.1} parent=5 // pred_region
        %s548 = ssub.s32 %s30, 1
        %s549 = sand.u32 %s35, 1
        %s550 = scalar_lea.sflag [#allocation5], %s549
        %s551 = sand.u32 %s55, 1
        %s552 = smul.addr %s551, 16
        %s553 = scalar_lea.vmem [#allocation4], %s552
        // Predicated region
        $region77: #{tpu_custom_call.1} parent=75 // pred_check
          %p554 = pneg %p68
        $region78: #{tpu_custom_call.1} parent=75 // pred_check_branch
          %556 = sbr.rel (%p554) target = $region80
        $region79: #{tpu_custom_call.1} parent=75 // pred_region
          %557 = dma.done %s550, 256
        $region80: #{tpu_custom_call.1} parent=75 // pred_fallthru
          _
        %s558 = sand.u32 %s35, 1
        %s559 = scalar_lea.sflag [#allocation8], %s558
        %s560 = sand.u32 %s81, 1
        %s561 = smul.addr %s560, 16
        %s562 = scalar_lea.vmem [#allocation7], %s561
        // Predicated region
        $region81: #{tpu_custom_call.1} parent=75 // pred_check
          %p563 = pneg %p94
        $region82: #{tpu_custom_call.1} parent=75 // pred_check_branch
          %565 = sbr.rel (%p563) target = $region84
        $region83: #{tpu_custom_call.1} parent=75 // pred_region
          %566 = dma.done %s559, 256
        $region84: #{tpu_custom_call.1} parent=75 // pred_fallthru
          _
        // Predicated region
        $region85: #{tpu_custom_call.1} parent=75 // pred_check
          %p567 = pneg %p157
        $region86: #{tpu_custom_call.1} parent=75 // pred_check_branch
          %569 = sbr.rel (%p567) target = $region88
        $region87: #{tpu_custom_call.1} parent=75 // pred_region
          %570 = dma.done [#allocation8], 6144
        $region88: #{tpu_custom_call.1} parent=75 // pred_fallthru
          _
        // Predicated region
        $region89: #{tpu_custom_call.1} parent=75 // pred_check
          %p571 = pneg %p199
        $region90: #{tpu_custom_call.1} parent=75 // pred_check_branch
          %573 = sbr.rel (%p571) target = $region92
        $region91: #{tpu_custom_call.1} parent=75 // pred_region
          %574 = dma.done [#allocation11], 2048
        $region92: #{tpu_custom_call.1} parent=75 // pred_fallthru
          _
        %s575 = sand.u32 %s35, 1
        %s576 = scalar_lea.sflag [#allocation5], %s575
        %s577 = sand.u32 %s275, 1
        %s578 = smul.addr %s577, 128
        %s579 = scalar_lea.vmem [#allocation12], %s578
        // Predicated region
        $region93: #{tpu_custom_call.1} parent=75 // pred_check
          %p580 = pneg %p288
        $region94: #{tpu_custom_call.1} parent=75 // pred_check_branch
          %582 = sbr.rel (%p580) target = $region96
        $region95: #{tpu_custom_call.1} parent=75 // pred_region
          %583 = dma.done %s576, 2048
        $region96: #{tpu_custom_call.1} parent=75 // pred_fallthru
          _
        %s584 = sand.u32 %s35, 1
        %s585 = scalar_lea.sflag [#allocation8], %s584
        %s586 = sand.u32 %s327, 1
        %s587 = smul.addr %s586, 128
        %s588 = scalar_lea.vmem [#allocation13], %s587
        // Predicated region
        $region97: #{tpu_custom_call.1} parent=75 // pred_check
          %p589 = pneg %p340
        $region98: #{tpu_custom_call.1} parent=75 // pred_check_branch
          %591 = sbr.rel (%p589) target = $region100
        $region99: #{tpu_custom_call.1} parent=75 // pred_region
          %592 = dma.done %s585, 2048
        $region100: #{tpu_custom_call.1} parent=75 // pred_fallthru
          _
        %s593 = sand.u32 %s35, 1
        %s594 = scalar_lea.sflag [#allocation5], %s593
        %s595 = sand.u32 %s55, 1
        %s596 = smul.addr %s595, 16
        %s597 = scalar_lea.vmem [#allocation4], %s596
        %p598 = pneg %p68
        %p599 = pneg %p65
        %s600 = sand.u32 %s35, 1
        %s601 = scalar_lea.sflag [#allocation8], %s600
        %s602 = sand.u32 %s81, 1
        %s603 = smul.addr %s602, 16
        %s604 = scalar_lea.vmem [#allocation7], %s603
        %p605 = pneg %p94
        %p606 = pneg %p91
        %p607 = pneg %p115
        %p608 = pneg %p112
        %p609 = pneg %p136
        %p610 = pneg %p133
        %p611 = pneg %p157
        %p612 = pneg %p154
        %p613 = pneg %p178
        %p614 = pneg %p175
        %p615 = pneg %p199
        %p616 = pneg %p196
        %p617 = pneg %p220
        %p618 = pneg %p217
        %p619 = pneg %p241
        %p620 = pneg %p238
        %p621 = pneg %p262
        %p622 = pneg %p259
        %s623 = sand.u32 %s35, 1
        %s624 = scalar_lea.sflag [#allocation5], %s623
        %s625 = sand.u32 %s275, 1
        %s626 = smul.addr %s625, 128
        %s627 = scalar_lea.vmem [#allocation12], %s626
        %p628 = pneg %p288
        %p629 = pneg %p285
        %p630 = scmp.lt.s32.totalorder %s40, 1
        %s631 = scalar_select %p630, %s40, 1
        %s632 = scalar_lea.vmem %s11, %s631
        %p633 = pneg %p314
        %p634 = pneg %p311
        %s635 = sand.u32 %s35, 1
        %s636 = scalar_lea.sflag [#allocation8], %s635
        %s637 = sand.u32 %s327, 1
        %s638 = smul.addr %s637, 128
        %s639 = scalar_lea.vmem [#allocation13], %s638
        %p640 = pneg %p340
        %p641 = pneg %p337
        %p642 = pneg %p361
        %p643 = pneg %p358
        %p644 = pneg %p387
        %p645 = pneg %p384
        %s646 = sand.u32 %s374, 1
        %s647 = scalar_lea.sflag [#allocation6], %s646
        %s648 = sand.u32 %s374, 1
        %s649 = smul.addr %s648, 16
        %s650 = scalar_lea.vmem [#allocation14], %s649
        %p651 = scmp.lt.s32.totalorder %s40, 1
        %s652 = scalar_select %p651, %s40, 1
        %s653 = scalar_lea.vmem %s11, %s652
        %s654 = smul.u32 16, %s40
        %p655 = scmp.eq.s32.totalorder %s40, 0
        // Predicated region
        $region101: #{tpu_custom_call.1} parent=75 // pred_check
          %p656 = pneg %p655
        $region102: #{tpu_custom_call.1} parent=75 // pred_check_branch
          %658 = sbr.rel (%p656) target = $region104
        $region103: #{tpu_custom_call.1} parent=75 // pred_region
          %v659 = vld [vmem:[%s553] sm:$0xff]
          %v660 = vld [vmem:[%s553 + $0x8] sm:$0xff]
          %v661 = vld [vmem:[%s562] sm:$0xff]
          %v662 = vld [vmem:[%s562 + $0x8] sm:$0xff]
          %v663 = vld [vmem:[%s2] sm:$0x1]
          %v664 = vld [vmem:[%s3] sm:$0x1]
          %665 = vadd.xlane.f32.xlu0 %v659
          %v666 = vpop.xlane.xlu0 %665
          %667 = vadd.xlane.f32.xlu0 %v660
          %v668 = vpop.xlane.xlu0 %667
          %v669 = vrcp.pop 128.0
          %v670 = vmul.f32 %v666, %v669
          %v671 = vmul.f32 %v668, %v669
          %v672 = vsub.f32 %v659, %v670
          %v673 = vsub.f32 %v660, %v671
          %v674 = vmul.f32 %v672, %v672
          %v675 = vmul.f32 %v673, %v673
          %676 = vadd.xlane.f32.xlu0 %v674
          %v677 = vpop.xlane.xlu0 %676
          %678 = vadd.xlane.f32.xlu0 %v675
          %v679 = vpop.xlane.xlu0 %678
          %v680 = vrcp.pop 127.0
          %v681 = vmul.f32 %v677, %v680
          %v682 = vmul.f32 %v679, %v680
          %v683 = vrsqrt.pop %v681
          %v684 = vmul.f32 %v681, %v683
          %vm685 = vcmp.eq.f32.partialorder %v681, inf
          %v686 = vsel %vm685, %v681, %v684
          %vm687 = vcmp.eq.f32.partialorder %v681, 0.0
          %v688 = vand.u32 %v681, 2147483648
          %v689 = vsel %vm687, %v688, %v686
          %v690 = vrsqrt.pop %v682
          %v691 = vmul.f32 %v682, %v690
          %vm692 = vcmp.eq.f32.partialorder %v682, inf
          %v693 = vsel %vm692, %v682, %v691
          %vm694 = vcmp.eq.f32.partialorder %v682, 0.0
          %v695 = vand.u32 %v682, 2147483648
          %v696 = vsel %vm694, %v695, %v693
          %v697 = vadd.f32 %v689, 1e-06
          %v698 = vadd.f32 %v696, 1e-06
          %v700 = vlaneseq
          %v701 = vshrl.u32 %v700, 7
          %v702 = vsub.s32 0, %v701
          %v703 = vrot.slane %v663, %v702
          %v705 = vmul.f32 %v703, %v672
          %v706 = vmul.f32 %v703, %v673
          %v707 = vrcp.pop %v697
          %v708 = vmul.f32 %v705, %v707
          %v709 = vrcp.pop %v698
          %v710 = vmul.f32 %v706, %v709
          %v712 = vlaneseq
          %v713 = vshrl.u32 %v712, 7
          %v714 = vsub.s32 0, %v713
          %v715 = vrot.slane %v664, %v714
          %v717 = vadd.f32 %v708, %v715
          %v718 = vadd.f32 %v710, %v715
          %v719 = vld [vmem:[#allocation9] sm:$0xff]
          %v720 = vld [vmem:[#allocation9 + $0x8] sm:$0xff]
          %v721 = vld [vmem:[#allocation9 + $0x10] sm:$0xff]
          %v722 = vld [vmem:[#allocation9 + $0x18] sm:$0xff]
          %v723 = vld [vmem:[#allocation9 + $0x20] sm:$0xff]
          %v724 = vld [vmem:[#allocation9 + $0x28] sm:$0xff]
          %v725 = vld [vmem:[#allocation9 + $0x30] sm:$0xff]
          %v726 = vld [vmem:[#allocation9 + $0x38] sm:$0xff]
          %v727 = vld [vmem:[#allocation9 + $0x40] sm:$0xff]
          %v728 = vld [vmem:[#allocation9 + $0x48] sm:$0xff]
          %v729 = vld [vmem:[#allocation9 + $0x50] sm:$0xff]
          %v730 = vld [vmem:[#allocation9 + $0x58] sm:$0xff]
          %v731 = vld [vmem:[#allocation9 + $0x60] sm:$0xff]
          %v732 = vld [vmem:[#allocation9 + $0x68] sm:$0xff]
          %v733 = vld [vmem:[#allocation9 + $0x70] sm:$0xff]
          %v734 = vld [vmem:[#allocation9 + $0x78] sm:$0xff]
          %v735 = vld [vmem:[#allocation9 + $0x80] sm:$0xff]
          %v736 = vld [vmem:[#allocation9 + $0x88] sm:$0xff]
          %v737 = vld [vmem:[#allocation9 + $0x90] sm:$0xff]
          %v738 = vld [vmem:[#allocation9 + $0x98] sm:$0xff]
          %v739 = vld [vmem:[#allocation9 + $0xa0] sm:$0xff]
          %v740 = vld [vmem:[#allocation9 + $0xa8] sm:$0xff]
          %v741 = vld [vmem:[#allocation9 + $0xb0] sm:$0xff]
          %v742 = vld [vmem:[#allocation9 + $0xb8] sm:$0xff]
          %v743 = vld [vmem:[#allocation9 + $0xc0] sm:$0xff]
          %v744 = vld [vmem:[#allocation9 + $0xc8] sm:$0xff]
          %v745 = vld [vmem:[#allocation9 + $0xd0] sm:$0xff]
          %v746 = vld [vmem:[#allocation9 + $0xd8] sm:$0xff]
          %v747 = vld [vmem:[#allocation9 + $0xe0] sm:$0xff]
          %v748 = vld [vmem:[#allocation9 + $0xe8] sm:$0xff]
          %v749 = vld [vmem:[#allocation9 + $0xf0] sm:$0xff]
          %v750 = vld [vmem:[#allocation9 + $0xf8] sm:$0xff]
          %v751 = vld [vmem:[#allocation9 + $0x100] sm:$0xff]
          %v752 = vld [vmem:[#allocation9 + $0x108] sm:$0xff]
          %v753 = vld [vmem:[#allocation9 + $0x110] sm:$0xff]
          %v754 = vld [vmem:[#allocation9 + $0x118] sm:$0xff]
          %v755 = vld [vmem:[#allocation9 + $0x120] sm:$0xff]
          %v756 = vld [vmem:[#allocation9 + $0x128] sm:$0xff]
          %v757 = vld [vmem:[#allocation9 + $0x130] sm:$0xff]
          %v758 = vld [vmem:[#allocation9 + $0x138] sm:$0xff]
          %v759 = vld [vmem:[#allocation9 + $0x140] sm:$0xff]
          %v760 = vld [vmem:[#allocation9 + $0x148] sm:$0xff]
          %v761 = vld [vmem:[#allocation9 + $0x150] sm:$0xff]
          %v762 = vld [vmem:[#allocation9 + $0x158] sm:$0xff]
          %v763 = vld [vmem:[#allocation9 + $0x160] sm:$0xff]
          %v764 = vld [vmem:[#allocation9 + $0x168] sm:$0xff]
          %v765 = vld [vmem:[#allocation9 + $0x170] sm:$0xff]
          %v766 = vld [vmem:[#allocation9 + $0x178] sm:$0xff]
          %v767 = vld [vmem:[%s5] sm:$0x7]
          %v769 = vlaneseq
          %v770 = vshrl.u32 %v769, 7
          %v771 = vsub.s32 0, %v770
          %v772 = vrot.slane %v767, %v771
          %v773 = vlaneseq
          %v774 = vshrl.u32 %v773, 7
          %v775 = vsub.s32 1, %v774
          %v776 = vrot.slane %v767, %v775
          %v777 = vlaneseq
          %v778 = vshrl.u32 %v777, 7
          %v779 = vsub.s32 2, %v778
          %v780 = vrot.slane %v767, %v779
          %784 = vmatprep.subr.mxu0 %v720
          %785 = vmatpush1.msra.mxu0 %v719
          %786 = vmatprep.subr.mxu0 %v723
          %787 = vmatpush1.msra.mxu0 %v722
          %788 = vmatprep.subr.mxu0 %v726
          %789 = vmatpush1.msra.mxu0 %v725
          %790 = vmatprep.subr.mxu0 %v729
          %791 = vmatpush1.msra.mxu0 %v728
          %792 = vmatprep.subr.mxu0 %v732
          %793 = vmatpush1.msra.mxu0 %v731
          %794 = vmatprep.subr.mxu0 %v735
          %795 = vmatpush1.msra.mxu0 %v734
          %796 = vmatprep.subr.mxu0 %v738
          %797 = vmatpush1.msra.mxu0 %v737
          %798 = vmatprep.subr.mxu0 %v741
          %799 = vmatpush1.msra.mxu0 %v740
          %800 = vmatprep.subr.mxu0 %v744
          %801 = vmatpush1.msra.mxu0 %v743
          %802 = vmatprep.subr.mxu0 %v747
          %803 = vmatpush1.msra.mxu0 %v746
          %804 = vmatprep.subr.mxu0 %v750
          %805 = vmatpush1.msra.mxu0 %v749
          %806 = vmatprep.subr.mxu0 %v753
          %807 = vmatpush1.msra.mxu0 %v752
          %808 = vmatprep.subr.mxu0 %v756
          %809 = vmatpush1.msra.mxu0 %v755
          %810 = vmatprep.subr.mxu0 %v759
          %811 = vmatpush1.msra.mxu0 %v758
          %812 = vmatprep.subr.mxu0 %v762
          %813 = vmatpush1.msra.mxu0 %v761
          %814 = vmatprep.subr.mxu0 %v765
          %815 = vmatpush1.msra.mxu0 %v764
          %816 = vmatprep.subr.mxu0 0.0
          %817 = vmatpush1.msra.mxu0 0.0
          %818 = vmatprep.subr.mxu0 0.0
          %819 = vmatpush1.msra.mxu0 0.0
          %820 = vmatprep.subr.mxu0 0.0
          %821 = vmatpush1.msra.mxu0 0.0
          %822 = vmatprep.subr.mxu0 0.0
          %823 = vmatpush1.msra.mxu0 0.0
          %824 = vmatprep.subr.mxu0 0.0
          %825 = vmatpush1.msra.mxu0 0.0
          %826 = vmatprep.subr.mxu0 0.0
          %827 = vmatpush1.msra.mxu0 0.0
          %828 = vmatprep.subr.mxu0 0.0
          %829 = vmatpush1.msra.mxu0 0.0
          %830 = vmatprep.subr.mxu0 0.0
          %831 = vmatpush1.msra.mxu0 0.0
          %832 = vmatprep.subr.mxu0 0.0
          %833 = vmatpush1.msra.mxu0 0.0
          %834 = vmatprep.subr.mxu0 0.0
          %835 = vmatpush1.msra.mxu0 0.0
          %836 = vmatprep.subr.mxu0 0.0
          %837 = vmatpush1.msra.mxu0 0.0
          %838 = vmatprep.subr.mxu0 0.0
          %839 = vmatpush1.msra.mxu0 0.0
          %840 = vmatprep.subr.mxu0 0.0
          %841 = vmatpush1.msra.mxu0 0.0
          %842 = vmatprep.subr.mxu0 0.0
          %843 = vmatpush1.msra.mxu0 0.0
          %844 = vmatprep.subr.mxu0 0.0
          %845 = vmatpush1.msra.mxu0 0.0
          %846 = vmatprep.subr.mxu0 0.0
          %847 = vmatpush1.msra.mxu0 0.0
          %848 = vmatprep.mubr.f32.mxu0 0.0
          %849 = vmatmul.mubr.f32.gmra.mrb[0].mxu0 %v717
          %v850 = vpop.f32.mrb[0].mxu0
          %v851 = vadd.f32 %v772, %v850
          %v852 = vpop.f32.mrb[0].mxu0
          %v853 = vadd.f32 %v776, %v852
          %854 = vmatprep.mubr.f32.mxu0 0.0
          %855 = vmatmul.mubr.f32.gmra.mrb[0].mxu0 %v718
          %v856 = vpop.f32.mrb[0].mxu0
          %v857 = vadd.f32 %v772, %v856
          %v858 = vpop.f32.mrb[0].mxu0
          %v859 = vadd.f32 %v776, %v858
          %860 = vdwg.mxu0
          %861 = vmatprep.subr.mxu0 0.0
          %862 = vmatpush1.msra.mxu0 %v721
          %863 = vmatprep.subr.mxu0 0.0
          %864 = vmatpush1.msra.mxu0 %v724
          %865 = vmatprep.subr.mxu0 0.0
          %866 = vmatpush1.msra.mxu0 %v727
          %867 = vmatprep.subr.mxu0 0.0
          %868 = vmatpush1.msra.mxu0 %v730
          %869 = vmatprep.subr.mxu0 0.0
          %870 = vmatpush1.msra.mxu0 %v733
          %871 = vmatprep.subr.mxu0 0.0
          %872 = vmatpush1.msra.mxu0 %v736
          %873 = vmatprep.subr.mxu0 0.0
          %874 = vmatpush1.msra.mxu0 %v739
          %875 = vmatprep.subr.mxu0 0.0
          %876 = vmatpush1.msra.mxu0 %v742
          %877 = vmatprep.subr.mxu0 0.0
          %878 = vmatpush1.msra.mxu0 %v745
          %879 = vmatprep.subr.mxu0 0.0
          %880 = vmatpush1.msra.mxu0 %v748
          %881 = vmatprep.subr.mxu0 0.0
          %882 = vmatpush1.msra.mxu0 %v751
          %883 = vmatprep.subr.mxu0 0.0
          %884 = vmatpush1.msra.mxu0 %v754
          %885 = vmatprep.subr.mxu0 0.0
          %886 = vmatpush1.msra.mxu0 %v757
          %887 = vmatprep.subr.mxu0 0.0
          %888 = vmatpush1.msra.mxu0 %v760
          %889 = vmatprep.subr.mxu0 0.0
          %890 = vmatpush1.msra.mxu0 %v763
          %891 = vmatprep.subr.mxu0 0.0
          %892 = vmatpush1.msra.mxu0 %v766
          %893 = vmatprep.subr.mxu0 0.0
          %894 = vmatpush1.msra.mxu0 0.0
          %895 = vmatprep.subr.mxu0 0.0
          %896 = vmatpush1.msra.mxu0 0.0
          %897 = vmatprep.subr.mxu0 0.0
          %898 = vmatpush1.msra.mxu0 0.0
          %899 = vmatprep.subr.mxu0 0.0
          %900 = vmatpush1.msra.mxu0 0.0
          %901 = vmatprep.subr.mxu0 0.0
          %902 = vmatpush1.msra.mxu0 0.0
          %903 = vmatprep.subr.mxu0 0.0
          %904 = vmatpush1.msra.mxu0 0.0
          %905 = vmatprep.subr.mxu0 0.0
          %906 = vmatpush1.msra.mxu0 0.0
          %907 = vmatprep.subr.mxu0 0.0
          %908 = vmatpush1.msra.mxu0 0.0
          %909 = vmatprep.subr.mxu0 0.0
          %910 = vmatpush1.msra.mxu0 0.0
          %911 = vmatprep.subr.mxu0 0.0
          %912 = vmatpush1.msra.mxu0 0.0
          %913 = vmatprep.subr.mxu0 0.0
          %914 = vmatpush1.msra.mxu0 0.0
          %915 = vmatprep.subr.mxu0 0.0
          %916 = vmatpush1.msra.mxu0 0.0
          %917 = vmatprep.subr.mxu0 0.0
          %918 = vmatpush1.msra.mxu0 0.0
          %919 = vmatprep.subr.mxu0 0.0
          %920 = vmatpush1.msra.mxu0 0.0
          %921 = vmatprep.subr.mxu0 0.0
          %922 = vmatpush1.msra.mxu0 0.0
          %923 = vmatprep.subr.mxu0 0.0
          %924 = vmatpush1.msra.mxu0 0.0
          %925 = vmatprep.mubr.f32.mxu0 0.0
          %926 = vmatmul.mubr.f32.gmra.mrb[0].mxu0 %v717
          %v927 = vpop.f32.mrb[0].mxu0
          %v928 = vadd.f32 %v780, %v927
          %v929 = vpop.f32.mrb[0].mxu0
          %930 = vmatprep.mubr.f32.mxu0 0.0
          %931 = vmatmul.mubr.f32.gmra.mrb[0].mxu0 %v718
          %v932 = vpop.f32.mrb[0].mxu0
          %v933 = vadd.f32 %v780, %v932
          %v934 = vpop.f32.mrb[0].mxu0
          %935 = vdwg.mxu0
          %938 = vrot.lane.b32.xlu0 %v851, 96
          %v939 = vpop.permute.xlu0 %938
          %940 = vrot.lane.b32.xlu0 %v857, 96
          %v941 = vpop.permute.xlu0 %940
          %942 = vrot.lane.b32.xlu0 %v851, 64
          %v943 = vpop.permute.xlu0 %942
          %944 = vrot.lane.b32.xlu0 %v857, 64
          %v945 = vpop.permute.xlu0 %944
          %946 = vrot.lane.b32.xlu0 %v851, 32
          %v947 = vpop.permute.xlu0 %946
          %948 = vrot.lane.b32.xlu0 %v857, 32
          %v949 = vpop.permute.xlu0 %948
          %952 = vrot.lane.b32.xlu0 %v853, 96
          %v953 = vpop.permute.xlu0 %952
          %954 = vrot.lane.b32.xlu0 %v859, 96
          %v955 = vpop.permute.xlu0 %954
          %956 = vrot.lane.b32.xlu0 %v853, 64
          %v957 = vpop.permute.xlu0 %956
          %958 = vrot.lane.b32.xlu0 %v859, 64
          %v959 = vpop.permute.xlu0 %958
          %960 = vrot.lane.b32.xlu0 %v853, 32
          %v961 = vpop.permute.xlu0 %960
          %962 = vrot.lane.b32.xlu0 %v859, 32
          %v963 = vpop.permute.xlu0 %962
          %966 = vrot.lane.b32.xlu0 %v928, 96
          %v967 = vpop.permute.xlu0 %966
          %968 = vrot.lane.b32.xlu0 %v933, 96
          %v969 = vpop.permute.xlu0 %968
          %972 = vrot.lane.b32.xlu0 %v928, 64
          %v973 = vpop.permute.xlu0 %972
          %974 = vrot.lane.b32.xlu0 %v933, 64
          %v975 = vpop.permute.xlu0 %974
          %978 = vrot.lane.b32.xlu0 %v928, 32
          %v979 = vpop.permute.xlu0 %978
          %980 = vrot.lane.b32.xlu0 %v933, 32
          %v981 = vpop.permute.xlu0 %980
          %vm984 = vcmask 261120
          %v985 = vsel %vm984, %v851, 0
          %v987 = vsel %vm984, %v857, 0
          %v989 = vsel %vm984, %v853, 0
          %v991 = vsel %vm984, %v859, 0
          %993 = vmatprep.subr.mxu0 0.0
          %994 = vmatpush1.xpose.msra.mxu0 %v989
          %995 = vmatprep.subr.mxu0 0.0
          %996 = vmatpush1.xpose.msra.mxu0 %v991
          %997 = vmatprep.subr.mxu0 0.0
          %998 = vmatpush1.xpose.msra.mxu0 0.0
          %999 = vmatprep.subr.mxu0 0.0
          %1000 = vmatpush1.xpose.msra.mxu0 0.0
          %1001 = vmatprep.subr.mxu0 0.0
          %1002 = vmatpush1.xpose.msra.mxu0 0.0
          %1003 = vmatprep.subr.mxu0 0.0
          %1004 = vmatpush1.xpose.msra.mxu0 0.0
          %1005 = vmatprep.subr.mxu0 0.0
          %1006 = vmatpush1.xpose.msra.mxu0 0.0
          %1007 = vmatprep.subr.mxu0 0.0
          %1008 = vmatpush1.xpose.msra.mxu0 0.0
          %1009 = vmatprep.subr.mxu0 0.0
          %1010 = vmatpush1.xpose.msra.mxu0 0.0
          %1011 = vmatprep.subr.mxu0 0.0
          %1012 = vmatpush1.xpose.msra.mxu0 0.0
          %1013 = vmatprep.subr.mxu0 0.0
          %1014 = vmatpush1.xpose.msra.mxu0 0.0
          %1015 = vmatprep.subr.mxu0 0.0
          %1016 = vmatpush1.xpose.msra.mxu0 0.0
          %1017 = vmatprep.subr.mxu0 0.0
          %1018 = vmatpush1.xpose.msra.mxu0 0.0
          %1019 = vmatprep.subr.mxu0 0.0
          %1020 = vmatpush1.xpose.msra.mxu0 0.0
          %1021 = vmatprep.subr.mxu0 0.0
          %1022 = vmatpush1.xpose.msra.mxu0 0.0
          %1023 = vmatprep.subr.mxu0 0.0
          %1024 = vmatpush1.xpose.msra.mxu0 0.0
          %1025 = vmatprep.subr.mxu0 0.0
          %1026 = vmatpush1.xpose.msra.mxu0 0.0
          %1027 = vmatprep.subr.mxu0 0.0
          %1028 = vmatpush1.xpose.msra.mxu0 0.0
          %1029 = vmatprep.subr.mxu0 0.0
          %1030 = vmatpush1.xpose.msra.mxu0 0.0
          %1031 = vmatprep.subr.mxu0 0.0
          %1032 = vmatpush1.xpose.msra.mxu0 0.0
          %1033 = vmatprep.subr.mxu0 0.0
          %1034 = vmatpush1.xpose.msra.mxu0 0.0
          %1035 = vmatprep.subr.mxu0 0.0
          %1036 = vmatpush1.xpose.msra.mxu0 0.0
          %1037 = vmatprep.subr.mxu0 0.0
          %1038 = vmatpush1.xpose.msra.mxu0 0.0
          %1039 = vmatprep.subr.mxu0 0.0
          %1040 = vmatpush1.xpose.msra.mxu0 0.0
          %1041 = vmatprep.subr.mxu0 0.0
          %1042 = vmatpush1.xpose.msra.mxu0 0.0
          %1043 = vmatprep.subr.mxu0 0.0
          %1044 = vmatpush1.xpose.msra.mxu0 0.0
          %1045 = vmatprep.subr.mxu0 0.0
          %1046 = vmatpush1.xpose.msra.mxu0 0.0
          %1047 = vmatprep.subr.mxu0 0.0
          %1048 = vmatpush1.xpose.msra.mxu0 0.0
          %1049 = vmatprep.subr.mxu0 0.0
          %1050 = vmatpush1.xpose.msra.mxu0 0.0
          %1051 = vmatprep.subr.mxu0 0.0
          %1052 = vmatpush1.xpose.msra.mxu0 0.0
          %1053 = vmatprep.subr.mxu0 0.0
          %1054 = vmatpush1.xpose.msra.mxu0 0.0
          %1055 = vmatprep.subr.mxu0 0.0
          %1056 = vmatpush1.xpose.msra.mxu0 0.0
          %1057 = vmatprep.mubr.f32.mxu0 0.0
          %1058 = vmatmul.mubr.f32.gmra.mrb[0].mxu0 %v985
          %v1059 = vpop.f32.mrb[0].mxu0
          %v1060 = vadd.f32 0.0, %v1059
          %v1061 = vpop.f32.mrb[0].mxu0
          %1062 = vmatprep.mubr.f32.mxu0 0.0
          %1063 = vmatmul.mubr.f32.gmra.mrb[0].mxu0 %v987
          %v1064 = vpop.f32.mrb[0].mxu0
          %v1065 = vadd.f32 0.0, %v1064
          %v1066 = vpop.f32.mrb[0].mxu0
          %1067 = vdwg.mxu0
          %v1068 = vsel %vm984, %v939, 0
          %v1070 = vsel %vm984, %v941, 0
          %v1072 = vsel %vm984, %v953, 0
          %v1074 = vsel %vm984, %v955, 0
          %1076 = vmatprep.subr.mxu0 0.0
          %1077 = vmatpush1.xpose.msra.mxu0 %v1072
          %1078 = vmatprep.subr.mxu0 0.0
          %1079 = vmatpush1.xpose.msra.mxu0 %v1074
          %1080 = vmatprep.subr.mxu0 0.0
          %1081 = vmatpush1.xpose.msra.mxu0 0.0
          %1082 = vmatprep.subr.mxu0 0.0
          %1083 = vmatpush1.xpose.msra.mxu0 0.0
          %1084 = vmatprep.subr.mxu0 0.0
          %1085 = vmatpush1.xpose.msra.mxu0 0.0
          %1086 = vmatprep.subr.mxu0 0.0
          %1087 = vmatpush1.xpose.msra.mxu0 0.0
          %1088 = vmatprep.subr.mxu0 0.0
          %1089 = vmatpush1.xpose.msra.mxu0 0.0
          %1090 = vmatprep.subr.mxu0 0.0
          %1091 = vmatpush1.xpose.msra.mxu0 0.0
          %1092 = vmatprep.subr.mxu0 0.0
          %1093 = vmatpush1.xpose.msra.mxu0 0.0
          %1094 = vmatprep.subr.mxu0 0.0
          %1095 = vmatpush1.xpose.msra.mxu0 0.0
          %1096 = vmatprep.subr.mxu0 0.0
          %1097 = vmatpush1.xpose.msra.mxu0 0.0
          %1098 = vmatprep.subr.mxu0 0.0
          %1099 = vmatpush1.xpose.msra.mxu0 0.0
          %1100 = vmatprep.subr.mxu0 0.0
          %1101 = vmatpush1.xpose.msra.mxu0 0.0
          %1102 = vmatprep.subr.mxu0 0.0
          %1103 = vmatpush1.xpose.msra.mxu0 0.0
          %1104 = vmatprep.subr.mxu0 0.0
          %1105 = vmatpush1.xpose.msra.mxu0 0.0
          %1106 = vmatprep.subr.mxu0 0.0
          %1107 = vmatpush1.xpose.msra.mxu0 0.0
          %1108 = vmatprep.subr.mxu0 0.0
          %1109 = vmatpush1.xpose.msra.mxu0 0.0
          %1110 = vmatprep.subr.mxu0 0.0
          %1111 = vmatpush1.xpose.msra.mxu0 0.0
          %1112 = vmatprep.subr.mxu0 0.0
          %1113 = vmatpush1.xpose.msra.mxu0 0.0
          %1114 = vmatprep.subr.mxu0 0.0
          %1115 = vmatpush1.xpose.msra.mxu0 0.0
          %1116 = vmatprep.subr.mxu0 0.0
          %1117 = vmatpush1.xpose.msra.mxu0 0.0
          %1118 = vmatprep.subr.mxu0 0.0
          %1119 = vmatpush1.xpose.msra.mxu0 0.0
          %1120 = vmatprep.subr.mxu0 0.0
          %1121 = vmatpush1.xpose.msra.mxu0 0.0
          %1122 = vmatprep.subr.mxu0 0.0
          %1123 = vmatpush1.xpose.msra.mxu0 0.0
          %1124 = vmatprep.subr.mxu0 0.0
          %1125 = vmatpush1.xpose.msra.mxu0 0.0
          %1126 = vmatprep.subr.mxu0 0.0
          %1127 = vmatpush1.xpose.msra.mxu0 0.0
          %1128 = vmatprep.subr.mxu0 0.0
          %1129 = vmatpush1.xpose.msra.mxu0 0.0
          %1130 = vmatprep.subr.mxu0 0.0
          %1131 = vmatpush1.xpose.msra.mxu0 0.0
          %1132 = vmatprep.subr.mxu0 0.0
          %1133 = vmatpush1.xpose.msra.mxu0 0.0
          %1134 = vmatprep.subr.mxu0 0.0
          %1135 = vmatpush1.xpose.msra.mxu0 0.0
          %1136 = vmatprep.subr.mxu0 0.0
          %1137 = vmatpush1.xpose.msra.mxu0 0.0
          %1138 = vmatprep.subr.mxu0 0.0
          %1139 = vmatpush1.xpose.msra.mxu0 0.0
          %1140 = vmatprep.mubr.f32.mxu0 0.0
          %1141 = vmatmul.mubr.f32.gmra.mrb[0].mxu0 %v1068
          %v1142 = vpop.f32.mrb[0].mxu0
          %v1143 = vadd.f32 0.0, %v1142
          %v1144 = vpop.f32.mrb[0].mxu0
          %1145 = vmatprep.mubr.f32.mxu0 0.0
          %1146 = vmatmul.mubr.f32.gmra.mrb[0].mxu0 %v1070
          %v1147 = vpop.f32.mrb[0].mxu0
          %v1148 = vadd.f32 0.0, %v1147
          %v1149 = vpop.f32.mrb[0].mxu0
          %1150 = vdwg.mxu0
          %v1151 = vsel %vm984, %v943, 0
          %v1153 = vsel %vm984, %v945, 0
          %v1155 = vsel %vm984, %v957, 0
          %v1157 = vsel %vm984, %v959, 0
          %1159 = vmatprep.subr.mxu0 0.0
          %1160 = vmatpush1.xpose.msra.mxu0 %v1155
          %1161 = vmatprep.subr.mxu0 0.0
          %1162 = vmatpush1.xpose.msra.mxu0 %v1157
          %1163 = vmatprep.subr.mxu0 0.0
          %1164 = vmatpush1.xpose.msra.mxu0 0.0
          %1165 = vmatprep.subr.mxu0 0.0
          %1166 = vmatpush1.xpose.msra.mxu0 0.0
          %1167 = vmatprep.subr.mxu0 0.0
          %1168 = vmatpush1.xpose.msra.mxu0 0.0
          %1169 = vmatprep.subr.mxu0 0.0
          %1170 = vmatpush1.xpose.msra.mxu0 0.0
          %1171 = vmatprep.subr.mxu0 0.0
          %1172 = vmatpush1.xpose.msra.mxu0 0.0
          %1173 = vmatprep.subr.mxu0 0.0
          %1174 = vmatpush1.xpose.msra.mxu0 0.0
          %1175 = vmatprep.subr.mxu0 0.0
          %1176 = vmatpush1.xpose.msra.mxu0 0.0
          %1177 = vmatprep.subr.mxu0 0.0
          %1178 = vmatpush1.xpose.msra.mxu0 0.0
          %1179 = vmatprep.subr.mxu0 0.0
          %1180 = vmatpush1.xpose.msra.mxu0 0.0
          %1181 = vmatprep.subr.mxu0 0.0
          %1182 = vmatpush1.xpose.msra.mxu0 0.0
          %1183 = vmatprep.subr.mxu0 0.0
          %1184 = vmatpush1.xpose.msra.mxu0 0.0
          %1185 = vmatprep.subr.mxu0 0.0
          %1186 = vmatpush1.xpose.msra.mxu0 0.0
          %1187 = vmatprep.subr.mxu0 0.0
          %1188 = vmatpush1.xpose.msra.mxu0 0.0
          %1189 = vmatprep.subr.mxu0 0.0
          %1190 = vmatpush1.xpose.msra.mxu0 0.0
          %1191 = vmatprep.subr.mxu0 0.0
          %1192 = vmatpush1.xpose.msra.mxu0 0.0
          %1193 = vmatprep.subr.mxu0 0.0
          %1194 = vmatpush1.xpose.msra.mxu0 0.0
          %1195 = vmatprep.subr.mxu0 0.0
          %1196 = vmatpush1.xpose.msra.mxu0 0.0
          %1197 = vmatprep.subr.mxu0 0.0
          %1198 = vmatpush1.xpose.msra.mxu0 0.0
          %1199 = vmatprep.subr.mxu0 0.0
          %1200 = vmatpush1.xpose.msra.mxu0 0.0
          %1201 = vmatprep.subr.mxu0 0.0
          %1202 = vmatpush1.xpose.msra.mxu0 0.0
          %1203 = vmatprep.subr.mxu0 0.0
          %1204 = vmatpush1.xpose.msra.mxu0 0.0
          %1205 = vmatprep.subr.mxu0 0.0
          %1206 = vmatpush1.xpose.msra.mxu0 0.0
          %1207 = vmatprep.subr.mxu0 0.0
          %1208 = vmatpush1.xpose.msra.mxu0 0.0
          %1209 = vmatprep.subr.mxu0 0.0
          %1210 = vmatpush1.xpose.msra.mxu0 0.0
          %1211 = vmatprep.subr.mxu0 0.0
          %1212 = vmatpush1.xpose.msra.mxu0 0.0
          %1213 = vmatprep.subr.mxu0 0.0
          %1214 = vmatpush1.xpose.msra.mxu0 0.0
          %1215 = vmatprep.subr.mxu0 0.0
          %1216 = vmatpush1.xpose.msra.mxu0 0.0
          %1217 = vmatprep.subr.mxu0 0.0
          %1218 = vmatpush1.xpose.msra.mxu0 0.0
          %1219 = vmatprep.subr.mxu0 0.0
          %1220 = vmatpush1.xpose.msra.mxu0 0.0
          %1221 = vmatprep.subr.mxu0 0.0
          %1222 = vmatpush1.xpose.msra.mxu0 0.0
          %1223 = vmatprep.mubr.f32.mxu0 0.0
          %1224 = vmatmul.mubr.f32.gmra.mrb[0].mxu0 %v1151
          %v1225 = vpop.f32.mrb[0].mxu0
          %v1226 = vadd.f32 0.0, %v1225
          %v1227 = vpop.f32.mrb[0].mxu0
          %1228 = vmatprep.mubr.f32.mxu0 0.0
          %1229 = vmatmul.mubr.f32.gmra.mrb[0].mxu0 %v1153
          %v1230 = vpop.f32.mrb[0].mxu0
          %v1231 = vadd.f32 0.0, %v1230
          %v1232 = vpop.f32.mrb[0].mxu0
          %1233 = vdwg.mxu0
          %v1234 = vsel %vm984, %v947, 0
          %v1236 = vsel %vm984, %v949, 0
          %v1238 = vsel %vm984, %v961, 0
          %v1240 = vsel %vm984, %v963, 0
          %1242 = vmatprep.subr.mxu0 0.0
          %1243 = vmatpush1.xpose.msra.mxu0 %v1238
          %1244 = vmatprep.subr.mxu0 0.0
          %1245 = vmatpush1.xpose.msra.mxu0 %v1240
          %1246 = vmatprep.subr.mxu0 0.0
          %1247 = vmatpush1.xpose.msra.mxu0 0.0
          %1248 = vmatprep.subr.mxu0 0.0
          %1249 = vmatpush1.xpose.msra.mxu0 0.0
          %1250 = vmatprep.subr.mxu0 0.0
          %1251 = vmatpush1.xpose.msra.mxu0 0.0
          %1252 = vmatprep.subr.mxu0 0.0
          %1253 = vmatpush1.xpose.msra.mxu0 0.0
          %1254 = vmatprep.subr.mxu0 0.0
          %1255 = vmatpush1.xpose.msra.mxu0 0.0
          %1256 = vmatprep.subr.mxu0 0.0
          %1257 = vmatpush1.xpose.msra.mxu0 0.0
          %1258 = vmatprep.subr.mxu0 0.0
          %1259 = vmatpush1.xpose.msra.mxu0 0.0
          %1260 = vmatprep.subr.mxu0 0.0
          %1261 = vmatpush1.xpose.msra.mxu0 0.0
          %1262 = vmatprep.subr.mxu0 0.0
          %1263 = vmatpush1.xpose.msra.mxu0 0.0
          %1264 = vmatprep.subr.mxu0 0.0
          %1265 = vmatpush1.xpose.msra.mxu0 0.0
          %1266 = vmatprep.subr.mxu0 0.0
          %1267 = vmatpush1.xpose.msra.mxu0 0.0
          %1268 = vmatprep.subr.mxu0 0.0
          %1269 = vmatpush1.xpose.msra.mxu0 0.0
          %1270 = vmatprep.subr.mxu0 0.0
          %1271 = vmatpush1.xpose.msra.mxu0 0.0
          %1272 = vmatprep.subr.mxu0 0.0
          %1273 = vmatpush1.xpose.msra.mxu0 0.0
          %1274 = vmatprep.subr.mxu0 0.0
          %1275 = vmatpush1.xpose.msra.mxu0 0.0
          %1276 = vmatprep.subr.mxu0 0.0
          %1277 = vmatpush1.xpose.msra.mxu0 0.0
          %1278 = vmatprep.subr.mxu0 0.0
          %1279 = vmatpush1.xpose.msra.mxu0 0.0
          %1280 = vmatprep.subr.mxu0 0.0
          %1281 = vmatpush1.xpose.msra.mxu0 0.0
          %1282 = vmatprep.subr.mxu0 0.0
          %1283 = vmatpush1.xpose.msra.mxu0 0.0
          %1284 = vmatprep.subr.mxu0 0.0
          %1285 = vmatpush1.xpose.msra.mxu0 0.0
          %1286 = vmatprep.subr.mxu0 0.0
          %1287 = vmatpush1.xpose.msra.mxu0 0.0
          %1288 = vmatprep.subr.mxu0 0.0
          %1289 = vmatpush1.xpose.msra.mxu0 0.0
          %1290 = vmatprep.subr.mxu0 0.0
          %1291 = vmatpush1.xpose.msra.mxu0 0.0
          %1292 = vmatprep.subr.mxu0 0.0
          %1293 = vmatpush1.xpose.msra.mxu0 0.0
          %1294 = vmatprep.subr.mxu0 0.0
          %1295 = vmatpush1.xpose.msra.mxu0 0.0
          %1296 = vmatprep.subr.mxu0 0.0
          %1297 = vmatpush1.xpose.msra.mxu0 0.0
          %1298 = vmatprep.subr.mxu0 0.0
          %1299 = vmatpush1.xpose.msra.mxu0 0.0
          %1300 = vmatprep.subr.mxu0 0.0
          %1301 = vmatpush1.xpose.msra.mxu0 0.0
          %1302 = vmatprep.subr.mxu0 0.0
          %1303 = vmatpush1.xpose.msra.mxu0 0.0
          %1304 = vmatprep.subr.mxu0 0.0
          %1305 = vmatpush1.xpose.msra.mxu0 0.0
          %1306 = vmatprep.mubr.f32.mxu0 0.0
          %1307 = vmatmul.mubr.f32.gmra.mrb[0].mxu0 %v1234
          %v1308 = vpop.f32.mrb[0].mxu0
          %v1309 = vadd.f32 0.0, %v1308
          %v1310 = vpop.f32.mrb[0].mxu0
          %1311 = vmatprep.mubr.f32.mxu0 0.0
          %1312 = vmatmul.mubr.f32.gmra.mrb[0].mxu0 %v1236
          %v1313 = vpop.f32.mrb[0].mxu0
          %v1314 = vadd.f32 0.0, %v1313
          %v1315 = vpop.f32.mrb[0].mxu0
          %1316 = vdwg.mxu0
          %v1317 = vmul.f32 %v1060, 0.17677669
          %v1318 = vmul.f32 %v1065, 0.17677669
          %v1319 = vmul.f32 %v1143, 0.17677669
          %v1320 = vmul.f32 %v1148, 0.17677669
          %v1321 = vmul.f32 %v1226, 0.17677669
          %v1322 = vmul.f32 %v1231, 0.17677669
          %v1323 = vmul.f32 %v1309, 0.17677669
          %v1324 = vmul.f32 %v1314, 0.17677669
          %v1325 = vadd.f32 %v1317, %v661
          %v1326 = vadd.f32 %v1318, %v662
          %v1327 = vadd.f32 %v1319, %v661
          %v1328 = vadd.f32 %v1320, %v662
          %v1329 = vadd.f32 %v1321, %v661
          %v1330 = vadd.f32 %v1322, %v662
          %v1331 = vadd.f32 %v1323, %v661
          %v1332 = vadd.f32 %v1324, %v662
          %vm1333 = vcmask 130048
          %v1334 = vsel %vm1333, %v1325, -inf
          %1335 = vmax.xlane.f32.xlu0 %v1334
          %v1336 = vpop.xlane.xlu0 %1335
          %v1337 = vsel %vm1333, %v1326, -inf
          %1338 = vmax.xlane.f32.xlu0 %v1337
          %v1339 = vpop.xlane.xlu0 %1338
          %v1340 = vsel %vm1333, %v1327, -inf
          %1341 = vmax.xlane.f32.xlu0 %v1340
          %v1342 = vpop.xlane.xlu0 %1341
          %v1343 = vsel %vm1333, %v1328, -inf
          %1344 = vmax.xlane.f32.xlu0 %v1343
          %v1345 = vpop.xlane.xlu0 %1344
          %v1346 = vsel %vm1333, %v1329, -inf
          %1347 = vmax.xlane.f32.xlu0 %v1346
          %v1348 = vpop.xlane.xlu0 %1347
          %v1349 = vsel %vm1333, %v1330, -inf
          %1350 = vmax.xlane.f32.xlu0 %v1349
          %v1351 = vpop.xlane.xlu0 %1350
          %v1352 = vsel %vm1333, %v1331, -inf
          %1353 = vmax.xlane.f32.xlu0 %v1352
          %v1354 = vpop.xlane.xlu0 %1353
          %v1355 = vsel %vm1333, %v1332, -inf
          %1356 = vmax.xlane.f32.xlu0 %v1355
          %v1357 = vpop.xlane.xlu0 %1356
          %v1358 = vsub.f32 %v1325, %v1336
          %v1359 = vsub.f32 %v1326, %v1339
          %v1360 = vsub.f32 %v1327, %v1342
          %v1361 = vsub.f32 %v1328, %v1345
          %v1362 = vsub.f32 %v1329, %v1348
          %v1363 = vsub.f32 %v1330, %v1351
          %v1364 = vsub.f32 %v1331, %v1354
          %v1365 = vsub.f32 %v1332, %v1357
          %v1366 = vmul.f32 %v1358, 1.442695
          %v1367 = vpow.pop %v1366
          %v1368 = vmul.f32 %v1359, 1.442695
          %v1369 = vpow.pop %v1368
          %v1370 = vmul.f32 %v1360, 1.442695
          %v1371 = vpow.pop %v1370
          %v1372 = vmul.f32 %v1361, 1.442695
          %v1373 = vpow.pop %v1372
          %v1374 = vmul.f32 %v1362, 1.442695
          %v1375 = vpow.pop %v1374
          %v1376 = vmul.f32 %v1363, 1.442695
          %v1377 = vpow.pop %v1376
          %v1378 = vmul.f32 %v1364, 1.442695
          %v1379 = vpow.pop %v1378
          %v1380 = vmul.f32 %v1365, 1.442695
          %v1381 = vpow.pop %v1380
          %v1382 = vsel %vm1333, %v1367, 0.0
          %1383 = vadd.xlane.f32.xlu0 %v1382
          %v1384 = vpop.xlane.xlu0 %1383
          %v1385 = vsel %vm1333, %v1369, 0.0
          %1386 = vadd.xlane.f32.xlu0 %v1385
          %v1387 = vpop.xlane.xlu0 %1386
          %v1388 = vsel %vm1333, %v1371, 0.0
          %1389 = vadd.xlane.f32.xlu0 %v1388
          %v1390 = vpop.xlane.xlu0 %1389
          %v1391 = vsel %vm1333, %v1373, 0.0
          %1392 = vadd.xlane.f32.xlu0 %v1391
          %v1393 = vpop.xlane.xlu0 %1392
          %v1394 = vsel %vm1333, %v1375, 0.0
          %1395 = vadd.xlane.f32.xlu0 %v1394
          %v1396 = vpop.xlane.xlu0 %1395
          %v1397 = vsel %vm1333, %v1377, 0.0
          %1398 = vadd.xlane.f32.xlu0 %v1397
          %v1399 = vpop.xlane.xlu0 %1398
          %v1400 = vsel %vm1333, %v1379, 0.0
          %1401 = vadd.xlane.f32.xlu0 %v1400
          %v1402 = vpop.xlane.xlu0 %1401
          %v1403 = vsel %vm1333, %v1381, 0.0
          %1404 = vadd.xlane.f32.xlu0 %v1403
          %v1405 = vpop.xlane.xlu0 %1404
          %v1406 = vrcp.pop %v1384
          %v1407 = vmul.f32 %v1367, %v1406
          %v1408 = vrcp.pop %v1387
          %v1409 = vmul.f32 %v1369, %v1408
          %v1410 = vrcp.pop %v1390
          %v1411 = vmul.f32 %v1371, %v1410
          %v1412 = vrcp.pop %v1393
          %v1413 = vmul.f32 %v1373, %v1412
          %v1414 = vrcp.pop %v1396
          %v1415 = vmul.f32 %v1375, %v1414
          %v1416 = vrcp.pop %v1399
          %v1417 = vmul.f32 %v1377, %v1416
          %v1418 = vrcp.pop %v1402
          %v1419 = vmul.f32 %v1379, %v1418
          %v1420 = vrcp.pop %v1405
          %v1421 = vmul.f32 %v1381, %v1420
          %v1423 = vsel %vm1333, %v1407, 0
          %v1426 = vsel %vm1333, %v1409, 0
          %1428 = vmatprep.subr.mxu0 0.0
          %1429 = vmatpush1.msra.mxu0 %v928
          %1430 = vmatprep.subr.mxu0 0.0
          %1431 = vmatpush1.msra.mxu0 %v933
          %1432 = vmatprep.subr.mxu0 0.0
          %1433 = vmatpush1.msra.mxu0 0.0
          %1434 = vmatprep.subr.mxu0 0.0
          %1435 = vmatpush1.msra.mxu0 0.0
          %1436 = vmatprep.subr.mxu0 0.0
          %1437 = vmatpush1.msra.mxu0 0.0
          %1438 = vmatprep.subr.mxu0 0.0
          %1439 = vmatpush1.msra.mxu0 0.0
          %1440 = vmatprep.subr.mxu0 0.0
          %1441 = vmatpush1.msra.mxu0 0.0
          %1442 = vmatprep.subr.mxu0 0.0
          %1443 = vmatpush1.msra.mxu0 0.0
          %1444 = vmatprep.subr.mxu0 0.0
          %1445 = vmatpush1.msra.mxu0 0.0
          %1446 = vmatprep.subr.mxu0 0.0
          %1447 = vmatpush1.msra.mxu0 0.0
          %1448 = vmatprep.subr.mxu0 0.0
          %1449 = vmatpush1.msra.mxu0 0.0
          %1450 = vmatprep.subr.mxu0 0.0
          %1451 = vmatpush1.msra.mxu0 0.0
          %1452 = vmatprep.subr.mxu0 0.0
          %1453 = vmatpush1.msra.mxu0 0.0
          %1454 = vmatprep.subr.mxu0 0.0
          %1455 = vmatpush1.msra.mxu0 0.0
          %1456 = vmatprep.subr.mxu0 0.0
          %1457 = vmatpush1.msra.mxu0 0.0
          %1458 = vmatprep.subr.mxu0 0.0
          %1459 = vmatpush1.msra.mxu0 0.0
          %1460 = vmatprep.subr.mxu0 0.0
          %1461 = vmatpush1.msra.mxu0 0.0
          %1462 = vmatprep.subr.mxu0 0.0
          %1463 = vmatpush1.msra.mxu0 0.0
          %1464 = vmatprep.subr.mxu0 0.0
          %1465 = vmatpush1.msra.mxu0 0.0
          %1466 = vmatprep.subr.mxu0 0.0
          %1467 = vmatpush1.msra.mxu0 0.0
          %1468 = vmatprep.subr.mxu0 0.0
          %1469 = vmatpush1.msra.mxu0 0.0
          %1470 = vmatprep.subr.mxu0 0.0
          %1471 = vmatpush1.msra.mxu0 0.0
          %1472 = vmatprep.subr.mxu0 0.0
          %1473 = vmatpush1.msra.mxu0 0.0
          %1474 = vmatprep.subr.mxu0 0.0
          %1475 = vmatpush1.msra.mxu0 0.0
          %1476 = vmatprep.subr.mxu0 0.0
          %1477 = vmatpush1.msra.mxu0 0.0
          %1478 = vmatprep.subr.mxu0 0.0
          %1479 = vmatpush1.msra.mxu0 0.0
          %1480 = vmatprep.subr.mxu0 0.0
          %1481 = vmatpush1.msra.mxu0 0.0
          %1482 = vmatprep.subr.mxu0 0.0
          %1483 = vmatpush1.msra.mxu0 0.0
          %1484 = vmatprep.subr.mxu0 0.0
          %1485 = vmatpush1.msra.mxu0 0.0
          %1486 = vmatprep.subr.mxu0 0.0
          %1487 = vmatpush1.msra.mxu0 0.0
          %1488 = vmatprep.subr.mxu0 0.0
          %1489 = vmatpush1.msra.mxu0 0.0
          %1490 = vmatprep.subr.mxu0 0.0
          %1491 = vmatpush1.msra.mxu0 0.0
          %1492 = vmatprep.mubr.f32.mxu0 0.0
          %1493 = vmatmul.mubr.f32.gmra.mrb[0].mxu0 %v1423
          %v1494 = vpop.f32.mrb[0].mxu0
          %v1495 = vadd.f32 0.0, %v1494
          %v1496 = vpop.f32.mrb[0].mxu0
          %1497 = vmatprep.mubr.f32.mxu0 0.0
          %1498 = vmatmul.mubr.f32.gmra.mrb[0].mxu0 %v1426
          %v1499 = vpop.f32.mrb[0].mxu0
          %v1500 = vadd.f32 0.0, %v1499
          %v1501 = vpop.f32.mrb[0].mxu0
          %1502 = vdwg.mxu0
          %v1504 = vsel %vm1333, %v1411, 0
          %v1507 = vsel %vm1333, %v1413, 0
          %1509 = vmatprep.subr.mxu0 0.0
          %1510 = vmatpush1.msra.mxu0 %v967
          %1511 = vmatprep.subr.mxu0 0.0
          %1512 = vmatpush1.msra.mxu0 %v969
          %1513 = vmatprep.subr.mxu0 0.0
          %1514 = vmatpush1.msra.mxu0 0.0
          %1515 = vmatprep.subr.mxu0 0.0
          %1516 = vmatpush1.msra.mxu0 0.0
          %1517 = vmatprep.subr.mxu0 0.0
          %1518 = vmatpush1.msra.mxu0 0.0
          %1519 = vmatprep.subr.mxu0 0.0
          %1520 = vmatpush1.msra.mxu0 0.0
          %1521 = vmatprep.subr.mxu0 0.0
          %1522 = vmatpush1.msra.mxu0 0.0
          %1523 = vmatprep.subr.mxu0 0.0
          %1524 = vmatpush1.msra.mxu0 0.0
          %1525 = vmatprep.subr.mxu0 0.0
          %1526 = vmatpush1.msra.mxu0 0.0
          %1527 = vmatprep.subr.mxu0 0.0
          %1528 = vmatpush1.msra.mxu0 0.0
          %1529 = vmatprep.subr.mxu0 0.0
          %1530 = vmatpush1.msra.mxu0 0.0
          %1531 = vmatprep.subr.mxu0 0.0
          %1532 = vmatpush1.msra.mxu0 0.0
          %1533 = vmatprep.subr.mxu0 0.0
          %1534 = vmatpush1.msra.mxu0 0.0
          %1535 = vmatprep.subr.mxu0 0.0
          %1536 = vmatpush1.msra.mxu0 0.0
          %1537 = vmatprep.subr.mxu0 0.0
          %1538 = vmatpush1.msra.mxu0 0.0
          %1539 = vmatprep.subr.mxu0 0.0
          %1540 = vmatpush1.msra.mxu0 0.0
          %1541 = vmatprep.subr.mxu0 0.0
          %1542 = vmatpush1.msra.mxu0 0.0
          %1543 = vmatprep.subr.mxu0 0.0
          %1544 = vmatpush1.msra.mxu0 0.0
          %1545 = vmatprep.subr.mxu0 0.0
          %1546 = vmatpush1.msra.mxu0 0.0
          %1547 = vmatprep.subr.mxu0 0.0
          %1548 = vmatpush1.msra.mxu0 0.0
          %1549 = vmatprep.subr.mxu0 0.0
          %1550 = vmatpush1.msra.mxu0 0.0
          %1551 = vmatprep.subr.mxu0 0.0
          %1552 = vmatpush1.msra.mxu0 0.0
          %1553 = vmatprep.subr.mxu0 0.0
          %1554 = vmatpush1.msra.mxu0 0.0
          %1555 = vmatprep.subr.mxu0 0.0
          %1556 = vmatpush1.msra.mxu0 0.0
          %1557 = vmatprep.subr.mxu0 0.0
          %1558 = vmatpush1.msra.mxu0 0.0
          %1559 = vmatprep.subr.mxu0 0.0
          %1560 = vmatpush1.msra.mxu0 0.0
          %1561 = vmatprep.subr.mxu0 0.0
          %1562 = vmatpush1.msra.mxu0 0.0
          %1563 = vmatprep.subr.mxu0 0.0
          %1564 = vmatpush1.msra.mxu0 0.0
          %1565 = vmatprep.subr.mxu0 0.0
          %1566 = vmatpush1.msra.mxu0 0.0
          %1567 = vmatprep.subr.mxu0 0.0
          %1568 = vmatpush1.msra.mxu0 0.0
          %1569 = vmatprep.subr.mxu0 0.0
          %1570 = vmatpush1.msra.mxu0 0.0
          %1571 = vmatprep.subr.mxu0 0.0
          %1572 = vmatpush1.msra.mxu0 0.0
          %1573 = vmatprep.mubr.f32.mxu0 0.0
          %1574 = vmatmul.mubr.f32.gmra.mrb[0].mxu0 %v1504
          %v1575 = vpop.f32.mrb[0].mxu0
          %v1576 = vadd.f32 0.0, %v1575
          %v1577 = vpop.f32.mrb[0].mxu0
          %1578 = vmatprep.mubr.f32.mxu0 0.0
          %1579 = vmatmul.mubr.f32.gmra.mrb[0].mxu0 %v1507
          %v1580 = vpop.f32.mrb[0].mxu0
          %v1581 = vadd.f32 0.0, %v1580
          %v1582 = vpop.f32.mrb[0].mxu0
          %1583 = vdwg.mxu0
          %v1585 = vsel %vm1333, %v1415, 0
          %v1588 = vsel %vm1333, %v1417, 0
          %1590 = vmatprep.subr.mxu0 0.0
          %1591 = vmatpush1.msra.mxu0 %v973
          %1592 = vmatprep.subr.mxu0 0.0
          %1593 = vmatpush1.msra.mxu0 %v975
          %1594 = vmatprep.subr.mxu0 0.0
          %1595 = vmatpush1.msra.mxu0 0.0
          %1596 = vmatprep.subr.mxu0 0.0
          %1597 = vmatpush1.msra.mxu0 0.0
          %1598 = vmatprep.subr.mxu0 0.0
          %1599 = vmatpush1.msra.mxu0 0.0
          %1600 = vmatprep.subr.mxu0 0.0
          %1601 = vmatpush1.msra.mxu0 0.0
          %1602 = vmatprep.subr.mxu0 0.0
          %1603 = vmatpush1.msra.mxu0 0.0
          %1604 = vmatprep.subr.mxu0 0.0
          %1605 = vmatpush1.msra.mxu0 0.0
          %1606 = vmatprep.subr.mxu0 0.0
          %1607 = vmatpush1.msra.mxu0 0.0
          %1608 = vmatprep.subr.mxu0 0.0
          %1609 = vmatpush1.msra.mxu0 0.0
          %1610 = vmatprep.subr.mxu0 0.0
          %1611 = vmatpush1.msra.mxu0 0.0
          %1612 = vmatprep.subr.mxu0 0.0
          %1613 = vmatpush1.msra.mxu0 0.0
          %1614 = vmatprep.subr.mxu0 0.0
          %1615 = vmatpush1.msra.mxu0 0.0
          %1616 = vmatprep.subr.mxu0 0.0
          %1617 = vmatpush1.msra.mxu0 0.0
          %1618 = vmatprep.subr.mxu0 0.0
          %1619 = vmatpush1.msra.mxu0 0.0
          %1620 = vmatprep.subr.mxu0 0.0
          %1621 = vmatpush1.msra.mxu0 0.0
          %1622 = vmatprep.subr.mxu0 0.0
          %1623 = vmatpush1.msra.mxu0 0.0
          %1624 = vmatprep.subr.mxu0 0.0
          %1625 = vmatpush1.msra.mxu0 0.0
          %1626 = vmatprep.subr.mxu0 0.0
          %1627 = vmatpush1.msra.mxu0 0.0
          %1628 = vmatprep.subr.mxu0 0.0
          %1629 = vmatpush1.msra.mxu0 0.0
          %1630 = vmatprep.subr.mxu0 0.0
          %1631 = vmatpush1.msra.mxu0 0.0
          %1632 = vmatprep.subr.mxu0 0.0
          %1633 = vmatpush1.msra.mxu0 0.0
          %1634 = vmatprep.subr.mxu0 0.0
          %1635 = vmatpush1.msra.mxu0 0.0
          %1636 = vmatprep.subr.mxu0 0.0
          %1637 = vmatpush1.msra.mxu0 0.0
          %1638 = vmatprep.subr.mxu0 0.0
          %1639 = vmatpush1.msra.mxu0 0.0
          %1640 = vmatprep.subr.mxu0 0.0
          %1641 = vmatpush1.msra.mxu0 0.0
          %1642 = vmatprep.subr.mxu0 0.0
          %1643 = vmatpush1.msra.mxu0 0.0
          %1644 = vmatprep.subr.mxu0 0.0
          %1645 = vmatpush1.msra.mxu0 0.0
          %1646 = vmatprep.subr.mxu0 0.0
          %1647 = vmatpush1.msra.mxu0 0.0
          %1648 = vmatprep.subr.mxu0 0.0
          %1649 = vmatpush1.msra.mxu0 0.0
          %1650 = vmatprep.subr.mxu0 0.0
          %1651 = vmatpush1.msra.mxu0 0.0
          %1652 = vmatprep.subr.mxu0 0.0
          %1653 = vmatpush1.msra.mxu0 0.0
          %1654 = vmatprep.mubr.f32.mxu0 0.0
          %1655 = vmatmul.mubr.f32.gmra.mrb[0].mxu0 %v1585
          %v1656 = vpop.f32.mrb[0].mxu0
          %v1657 = vadd.f32 0.0, %v1656
          %v1658 = vpop.f32.mrb[0].mxu0
          %1659 = vmatprep.mubr.f32.mxu0 0.0
          %1660 = vmatmul.mubr.f32.gmra.mrb[0].mxu0 %v1588
          %v1661 = vpop.f32.mrb[0].mxu0
          %v1662 = vadd.f32 0.0, %v1661
          %v1663 = vpop.f32.mrb[0].mxu0
          %1664 = vdwg.mxu0
          %v1666 = vsel %vm1333, %v1419, 0
          %v1669 = vsel %vm1333, %v1421, 0
          %1671 = vmatprep.subr.mxu0 0.0
          %1672 = vmatpush1.msra.mxu0 %v979
          %1673 = vmatprep.subr.mxu0 0.0
          %1674 = vmatpush1.msra.mxu0 %v981
          %1675 = vmatprep.subr.mxu0 0.0
          %1676 = vmatpush1.msra.mxu0 0.0
          %1677 = vmatprep.subr.mxu0 0.0
          %1678 = vmatpush1.msra.mxu0 0.0
          %1679 = vmatprep.subr.mxu0 0.0
          %1680 = vmatpush1.msra.mxu0 0.0
          %1681 = vmatprep.subr.mxu0 0.0
          %1682 = vmatpush1.msra.mxu0 0.0
          %1683 = vmatprep.subr.mxu0 0.0
          %1684 = vmatpush1.msra.mxu0 0.0
          %1685 = vmatprep.subr.mxu0 0.0
          %1686 = vmatpush1.msra.mxu0 0.0
          %1687 = vmatprep.subr.mxu0 0.0
          %1688 = vmatpush1.msra.mxu0 0.0
          %1689 = vmatprep.subr.mxu0 0.0
          %1690 = vmatpush1.msra.mxu0 0.0
          %1691 = vmatprep.subr.mxu0 0.0
          %1692 = vmatpush1.msra.mxu0 0.0
          %1693 = vmatprep.subr.mxu0 0.0
          %1694 = vmatpush1.msra.mxu0 0.0
          %1695 = vmatprep.subr.mxu0 0.0
          %1696 = vmatpush1.msra.mxu0 0.0
          %1697 = vmatprep.subr.mxu0 0.0
          %1698 = vmatpush1.msra.mxu0 0.0
          %1699 = vmatprep.subr.mxu0 0.0
          %1700 = vmatpush1.msra.mxu0 0.0
          %1701 = vmatprep.subr.mxu0 0.0
          %1702 = vmatpush1.msra.mxu0 0.0
          %1703 = vmatprep.subr.mxu0 0.0
          %1704 = vmatpush1.msra.mxu0 0.0
          %1705 = vmatprep.subr.mxu0 0.0
          %1706 = vmatpush1.msra.mxu0 0.0
          %1707 = vmatprep.subr.mxu0 0.0
          %1708 = vmatpush1.msra.mxu0 0.0
          %1709 = vmatprep.subr.mxu0 0.0
          %1710 = vmatpush1.msra.mxu0 0.0
          %1711 = vmatprep.subr.mxu0 0.0
          %1712 = vmatpush1.msra.mxu0 0.0
          %1713 = vmatprep.subr.mxu0 0.0
          %1714 = vmatpush1.msra.mxu0 0.0
          %1715 = vmatprep.subr.mxu0 0.0
          %1716 = vmatpush1.msra.mxu0 0.0
          %1717 = vmatprep.subr.mxu0 0.0
          %1718 = vmatpush1.msra.mxu0 0.0
          %1719 = vmatprep.subr.mxu0 0.0
          %1720 = vmatpush1.msra.mxu0 0.0
          %1721 = vmatprep.subr.mxu0 0.0
          %1722 = vmatpush1.msra.mxu0 0.0
          %1723 = vmatprep.subr.mxu0 0.0
          %1724 = vmatpush1.msra.mxu0 0.0
          %1725 = vmatprep.subr.mxu0 0.0
          %1726 = vmatpush1.msra.mxu0 0.0
          %1727 = vmatprep.subr.mxu0 0.0
          %1728 = vmatpush1.msra.mxu0 0.0
          %1729 = vmatprep.subr.mxu0 0.0
          %1730 = vmatpush1.msra.mxu0 0.0
          %1731 = vmatprep.subr.mxu0 0.0
          %1732 = vmatpush1.msra.mxu0 0.0
          %1733 = vmatprep.subr.mxu0 0.0
          %1734 = vmatpush1.msra.mxu0 0.0
          %1735 = vmatprep.mubr.f32.mxu0 0.0
          %1736 = vmatmul.mubr.f32.gmra.mrb[0].mxu0 %v1666
          %v1737 = vpop.f32.mrb[0].mxu0
          %v1738 = vadd.f32 0.0, %v1737
          %v1739 = vpop.f32.mrb[0].mxu0
          %1740 = vmatprep.mubr.f32.mxu0 0.0
          %1741 = vmatmul.mubr.f32.gmra.mrb[0].mxu0 %v1669
          %v1742 = vpop.f32.mrb[0].mxu0
          %v1743 = vadd.f32 0.0, %v1742
          %v1744 = vpop.f32.mrb[0].mxu0
          %1745 = vdwg.mxu0
          %1748 = vrot.lane.b32.xlu0 %v1576, 32
          %v1749 = vpop.permute.xlu0 %1748
          %1750 = vrot.lane.b32.xlu0 %v1581, 32
          %v1751 = vpop.permute.xlu0 %1750
          %1756 = vrot.lane.b32.xlu0 %v1657, 64
          %v1757 = vpop.permute.xlu0 %1756
          %1758 = vrot.lane.b32.xlu0 %v1662, 64
          %v1759 = vpop.permute.xlu0 %1758
          %1764 = vrot.lane.b32.xlu0 %v1738, 96
          %v1765 = vpop.permute.xlu0 %1764
          %1766 = vrot.lane.b32.xlu0 %v1743, 96
          %v1767 = vpop.permute.xlu0 %1766
          %v1770 = vsel %vm984, %v1495, %v1749
          %v1771 = vsel %vm984, %v1500, %v1751
          %vm1772 = vcmask 523264
          %v1773 = vsel %vm1772, %v1770, %v1757
          %v1774 = vsel %vm1772, %v1771, %v1759
          %vm1775 = vcmask 785408
          %v1776 = vsel %vm1775, %v1773, %v1765
          %v1777 = vsel %vm1775, %v1774, %v1767
          %v1778 = vld [vmem:[#allocation10] sm:$0xff]
          %v1779 = vld [vmem:[#allocation10 + $0x8] sm:$0xff]
          %v1780 = vld [vmem:[#allocation10 + $0x10] sm:$0xff]
          %v1781 = vld [vmem:[#allocation10 + $0x18] sm:$0xff]
          %v1782 = vld [vmem:[#allocation10 + $0x20] sm:$0xff]
          %v1783 = vld [vmem:[#allocation10 + $0x28] sm:$0xff]
          %v1784 = vld [vmem:[#allocation10 + $0x30] sm:$0xff]
          %v1785 = vld [vmem:[#allocation10 + $0x38] sm:$0xff]
          %v1786 = vld [vmem:[#allocation10 + $0x40] sm:$0xff]
          %v1787 = vld [vmem:[#allocation10 + $0x48] sm:$0xff]
          %v1788 = vld [vmem:[#allocation10 + $0x50] sm:$0xff]
          %v1789 = vld [vmem:[#allocation10 + $0x58] sm:$0xff]
          %v1790 = vld [vmem:[#allocation10 + $0x60] sm:$0xff]
          %v1791 = vld [vmem:[#allocation10 + $0x68] sm:$0xff]
          %v1792 = vld [vmem:[#allocation10 + $0x70] sm:$0xff]
          %v1793 = vld [vmem:[#allocation10 + $0x78] sm:$0xff]
          %v1794 = vld [vmem:[%s7] sm:$0x1]
          %v1796 = vlaneseq
          %v1797 = vshrl.u32 %v1796, 7
          %v1798 = vsub.s32 0, %v1797
          %v1799 = vrot.slane %v1794, %v1798
          %1801 = vmatprep.subr.mxu0 0.0
          %1802 = vmatpush1.msra.mxu0 %v1778
          %1803 = vmatprep.subr.mxu0 0.0
          %1804 = vmatpush1.msra.mxu0 %v1779
          %1805 = vmatprep.subr.mxu0 0.0
          %1806 = vmatpush1.msra.mxu0 %v1780
          %1807 = vmatprep.subr.mxu0 0.0
          %1808 = vmatpush1.msra.mxu0 %v1781
          %1809 = vmatprep.subr.mxu0 0.0
          %1810 = vmatpush1.msra.mxu0 %v1782
          %1811 = vmatprep.subr.mxu0 0.0
          %1812 = vmatpush1.msra.mxu0 %v1783
          %1813 = vmatprep.subr.mxu0 0.0
          %1814 = vmatpush1.msra.mxu0 %v1784
          %1815 = vmatprep.subr.mxu0 0.0
          %1816 = vmatpush1.msra.mxu0 %v1785
          %1817 = vmatprep.subr.mxu0 0.0
          %1818 = vmatpush1.msra.mxu0 %v1786
          %1819 = vmatprep.subr.mxu0 0.0
          %1820 = vmatpush1.msra.mxu0 %v1787
          %1821 = vmatprep.subr.mxu0 0.0
          %1822 = vmatpush1.msra.mxu0 %v1788
          %1823 = vmatprep.subr.mxu0 0.0
          %1824 = vmatpush1.msra.mxu0 %v1789
          %1825 = vmatprep.subr.mxu0 0.0
          %1826 = vmatpush1.msra.mxu0 %v1790
          %1827 = vmatprep.subr.mxu0 0.0
          %1828 = vmatpush1.msra.mxu0 %v1791
          %1829 = vmatprep.subr.mxu0 0.0
          %1830 = vmatpush1.msra.mxu0 %v1792
          %1831 = vmatprep.subr.mxu0 0.0
          %1832 = vmatpush1.msra.mxu0 %v1793
          %1833 = vmatprep.subr.mxu0 0.0
          %1834 = vmatpush1.msra.mxu0 0.0
          %1835 = vmatprep.subr.mxu0 0.0
          %1836 = vmatpush1.msra.mxu0 0.0
          %1837 = vmatprep.subr.mxu0 0.0
          %1838 = vmatpush1.msra.mxu0 0.0
          %1839 = vmatprep.subr.mxu0 0.0
          %1840 = vmatpush1.msra.mxu0 0.0
          %1841 = vmatprep.subr.mxu0 0.0
          %1842 = vmatpush1.msra.mxu0 0.0
          %1843 = vmatprep.subr.mxu0 0.0
          %1844 = vmatpush1.msra.mxu0 0.0
          %1845 = vmatprep.subr.mxu0 0.0
          %1846 = vmatpush1.msra.mxu0 0.0
          %1847 = vmatprep.subr.mxu0 0.0
          %1848 = vmatpush1.msra.mxu0 0.0
          %1849 = vmatprep.subr.mxu0 0.0
          %1850 = vmatpush1.msra.mxu0 0.0
          %1851 = vmatprep.subr.mxu0 0.0
          %1852 = vmatpush1.msra.mxu0 0.0
          %1853 = vmatprep.subr.mxu0 0.0
          %1854 = vmatpush1.msra.mxu0 0.0
          %1855 = vmatprep.subr.mxu0 0.0
          %1856 = vmatpush1.msra.mxu0 0.0
          %1857 = vmatprep.subr.mxu0 0.0
          %1858 = vmatpush1.msra.mxu0 0.0
          %1859 = vmatprep.subr.mxu0 0.0
          %1860 = vmatpush1.msra.mxu0 0.0
          %1861 = vmatprep.subr.mxu0 0.0
          %1862 = vmatpush1.msra.mxu0 0.0
          %1863 = vmatprep.subr.mxu0 0.0
          %1864 = vmatpush1.msra.mxu0 0.0
          %1865 = vmatprep.mubr.f32.mxu0 0.0
          %1866 = vmatmul.mubr.f32.gmra.mrb[0].mxu0 %v1776
          %v1867 = vpop.f32.mrb[0].mxu0
          %v1868 = vadd.f32 %v1799, %v1867
          %v1869 = vpop.f32.mrb[0].mxu0
          %1870 = vmatprep.mubr.f32.mxu0 0.0
          %1871 = vmatmul.mubr.f32.gmra.mrb[0].mxu0 %v1777
          %v1872 = vpop.f32.mrb[0].mxu0
          %v1873 = vadd.f32 %v1799, %v1872
          %v1874 = vpop.f32.mrb[0].mxu0
          %1875 = vdwg.mxu0
          %v1876 = vadd.f32 %v659, %v1868
          %v1877 = vadd.f32 %v660, %v1873
          %v1878 = vld [vmem:[%s13] sm:$0x1]
          %v1880 = vlaneseq
          %v1881 = vshrl.u32 %v1880, 7
          %v1882 = vsub.s32 0, %v1881
          %v1883 = vrot.slane %v1878, %v1882
          %v1885 = vadd.f32 %v1876, %v1883
          %v1886 = vadd.f32 %v1877, %v1883
          %1887 = vst [vmem:[#allocation2] sm:$0xff] %v1885
          %1888 = vst [vmem:[#allocation2 + $0x8] sm:$0xff] %v1886
          %v1889 = vld [vmem:[%s8] sm:$0x1]
          %v1890 = vld [vmem:[%s9] sm:$0x1]
          %1891 = vadd.xlane.f32.xlu0 %v1876
          %v1892 = vpop.xlane.xlu0 %1891
          %1893 = vadd.xlane.f32.xlu0 %v1877
          %v1894 = vpop.xlane.xlu0 %1893
          %v1895 = vmul.f32 %v1892, %v669
          %v1896 = vmul.f32 %v1894, %v669
          %v1897 = vsub.f32 %v1876, %v1895
          %v1898 = vsub.f32 %v1877, %v1896
          %v1899 = vmul.f32 %v1897, %v1897
          %v1900 = vmul.f32 %v1898, %v1898
          %1901 = vadd.xlane.f32.xlu0 %v1899
          %v1902 = vpop.xlane.xlu0 %1901
          %1903 = vadd.xlane.f32.xlu0 %v1900
          %v1904 = vpop.xlane.xlu0 %1903
          %v1905 = vmul.f32 %v1902, %v680
          %v1906 = vmul.f32 %v1904, %v680
          %v1907 = vrsqrt.pop %v1905
          %v1908 = vmul.f32 %v1905, %v1907
          %vm1909 = vcmp.eq.f32.partialorder %v1905, inf
          %v1910 = vsel %vm1909, %v1905, %v1908
          %vm1911 = vcmp.eq.f32.partialorder %v1905, 0.0
          %v1912 = vand.u32 %v1905, 2147483648
          %v1913 = vsel %vm1911, %v1912, %v1910
          %v1914 = vrsqrt.pop %v1906
          %v1915 = vmul.f32 %v1906, %v1914
          %vm1916 = vcmp.eq.f32.partialorder %v1906, inf
          %v1917 = vsel %vm1916, %v1906, %v1915
          %vm1918 = vcmp.eq.f32.partialorder %v1906, 0.0
          %v1919 = vand.u32 %v1906, 2147483648
          %v1920 = vsel %vm1918, %v1919, %v1917
          %v1921 = vadd.f32 %v1913, 1e-06
          %v1922 = vadd.f32 %v1920, 1e-06
          %v1924 = vlaneseq
          %v1925 = vshrl.u32 %v1924, 7
          %v1926 = vsub.s32 0, %v1925
          %v1927 = vrot.slane %v1889, %v1926
          %v1929 = vmul.f32 %v1927, %v1897
          %v1930 = vmul.f32 %v1927, %v1898
          %v1931 = vrcp.pop %v1921
          %v1932 = vmul.f32 %v1929, %v1931
          %v1933 = vrcp.pop %v1922
          %v1934 = vmul.f32 %v1930, %v1933
          %v1936 = vlaneseq
          %v1937 = vshrl.u32 %v1936, 7
          %v1938 = vsub.s32 0, %v1937
          %v1939 = vrot.slane %v1890, %v1938
          %v1941 = vadd.f32 %v1932, %v1939
          %v1942 = vadd.f32 %v1934, %v1939
          %1943 = vst [vmem:[#allocation3] sm:$0xff] %v1941
          %1944 = vst [vmem:[#allocation3 + $0x8] sm:$0xff] %v1942
        $region104: #{tpu_custom_call.1} parent=75 // pred_fallthru
          _
        %v1945 = vld [vmem:[#allocation3] sm:$0xff]
        %v1946 = vld [vmem:[#allocation3 + $0x8] sm:$0xff]
        %v1947 = vld [vmem:[%s579] sm:$0xff]
        %v1948 = vld [vmem:[%s579 + $0x8] sm:$0xff]
        %v1949 = vld [vmem:[%s579 + $0x10] sm:$0xff]
        %v1950 = vld [vmem:[%s579 + $0x18] sm:$0xff]
        %v1951 = vld [vmem:[%s579 + $0x20] sm:$0xff]
        %v1952 = vld [vmem:[%s579 + $0x28] sm:$0xff]
        %v1953 = vld [vmem:[%s579 + $0x30] sm:$0xff]
        %v1954 = vld [vmem:[%s579 + $0x38] sm:$0xff]
        %v1955 = vld [vmem:[%s579 + $0x40] sm:$0xff]
        %v1956 = vld [vmem:[%s579 + $0x48] sm:$0xff]
        %v1957 = vld [vmem:[%s579 + $0x50] sm:$0xff]
        %v1958 = vld [vmem:[%s579 + $0x58] sm:$0xff]
        %v1959 = vld [vmem:[%s579 + $0x60] sm:$0xff]
        %v1960 = vld [vmem:[%s579 + $0x68] sm:$0xff]
        %v1961 = vld [vmem:[%s579 + $0x70] sm:$0xff]
        %v1962 = vld [vmem:[%s579 + $0x78] sm:$0xff]
        %v1963 = vld [vmem:[%s653] sm:$0x1]
        %v1965 = vlaneseq
        %v1966 = vshrl.u32 %v1965, 7
        %v1967 = vsub.s32 0, %v1966
        %v1968 = vrot.slane %v1963, %v1967
        %1970 = vmatprep.subr.mxu0 0.0
        %1971 = vmatpush1.msra.mxu0 %v1947
        %1972 = vmatprep.subr.mxu0 0.0
        %1973 = vmatpush1.msra.mxu0 %v1948
        %1974 = vmatprep.subr.mxu0 0.0
        %1975 = vmatpush1.msra.mxu0 %v1949
        %1976 = vmatprep.subr.mxu0 0.0
        %1977 = vmatpush1.msra.mxu0 %v1950
        %1978 = vmatprep.subr.mxu0 0.0
        %1979 = vmatpush1.msra.mxu0 %v1951
        %1980 = vmatprep.subr.mxu0 0.0
        %1981 = vmatpush1.msra.mxu0 %v1952
        %1982 = vmatprep.subr.mxu0 0.0
        %1983 = vmatpush1.msra.mxu0 %v1953
        %1984 = vmatprep.subr.mxu0 0.0
        %1985 = vmatpush1.msra.mxu0 %v1954
        %1986 = vmatprep.subr.mxu0 0.0
        %1987 = vmatpush1.msra.mxu0 %v1955
        %1988 = vmatprep.subr.mxu0 0.0
        %1989 = vmatpush1.msra.mxu0 %v1956
        %1990 = vmatprep.subr.mxu0 0.0
        %1991 = vmatpush1.msra.mxu0 %v1957
        %1992 = vmatprep.subr.mxu0 0.0
        %1993 = vmatpush1.msra.mxu0 %v1958
        %1994 = vmatprep.subr.mxu0 0.0
        %1995 = vmatpush1.msra.mxu0 %v1959
        %1996 = vmatprep.subr.mxu0 0.0
        %1997 = vmatpush1.msra.mxu0 %v1960
        %1998 = vmatprep.subr.mxu0 0.0
        %1999 = vmatpush1.msra.mxu0 %v1961
        %2000 = vmatprep.subr.mxu0 0.0
        %2001 = vmatpush1.msra.mxu0 %v1962
        %2002 = vmatprep.subr.mxu0 0.0
        %2003 = vmatpush1.msra.mxu0 0.0
        %2004 = vmatprep.subr.mxu0 0.0
        %2005 = vmatpush1.msra.mxu0 0.0
        %2006 = vmatprep.subr.mxu0 0.0
        %2007 = vmatpush1.msra.mxu0 0.0
        %2008 = vmatprep.subr.mxu0 0.0
        %2009 = vmatpush1.msra.mxu0 0.0
        %2010 = vmatprep.subr.mxu0 0.0
        %2011 = vmatpush1.msra.mxu0 0.0
        %2012 = vmatprep.subr.mxu0 0.0
        %2013 = vmatpush1.msra.mxu0 0.0
        %2014 = vmatprep.subr.mxu0 0.0
        %2015 = vmatpush1.msra.mxu0 0.0
        %2016 = vmatprep.subr.mxu0 0.0
        %2017 = vmatpush1.msra.mxu0 0.0
        %2018 = vmatprep.subr.mxu0 0.0
        %2019 = vmatpush1.msra.mxu0 0.0
        %2020 = vmatprep.subr.mxu0 0.0
        %2021 = vmatpush1.msra.mxu0 0.0
        %2022 = vmatprep.subr.mxu0 0.0
        %2023 = vmatpush1.msra.mxu0 0.0
        %2024 = vmatprep.subr.mxu0 0.0
        %2025 = vmatpush1.msra.mxu0 0.0
        %2026 = vmatprep.subr.mxu0 0.0
        %2027 = vmatpush1.msra.mxu0 0.0
        %2028 = vmatprep.subr.mxu0 0.0
        %2029 = vmatpush1.msra.mxu0 0.0
        %2030 = vmatprep.subr.mxu0 0.0
        %2031 = vmatpush1.msra.mxu0 0.0
        %2032 = vmatprep.subr.mxu0 0.0
        %2033 = vmatpush1.msra.mxu0 0.0
        %2034 = vmatprep.mubr.f32.mxu0 0.0
        %2035 = vmatmul.mubr.f32.gmra.mrb[0].mxu0 %v1945
        %v2036 = vpop.f32.mrb[0].mxu0
        %v2037 = vadd.f32 %v1968, %v2036
        %v2038 = vpop.f32.mrb[0].mxu0
        %2039 = vmatprep.mubr.f32.mxu0 0.0
        %2040 = vmatmul.mubr.f32.gmra.mrb[0].mxu0 %v1946
        %v2041 = vpop.f32.mrb[0].mxu0
        %v2042 = vadd.f32 %v1968, %v2041
        %v2043 = vpop.f32.mrb[0].mxu0
        %2044 = vdwg.mxu0
        %v2045 = vmax.f32 %v2037, 0.0
        %v2046 = vmax.f32 %v2042, 0.0
        %v2047 = vld [vmem:[#allocation2] sm:$0xff]
        %v2048 = vld [vmem:[#allocation2 + $0x8] sm:$0xff]
        %v2049 = vld [vmem:[%s588] sm:$0xff]
        %v2050 = vld [vmem:[%s588 + $0x8] sm:$0xff]
        %v2051 = vld [vmem:[%s588 + $0x10] sm:$0xff]
        %v2052 = vld [vmem:[%s588 + $0x18] sm:$0xff]
        %v2053 = vld [vmem:[%s588 + $0x20] sm:$0xff]
        %v2054 = vld [vmem:[%s588 + $0x28] sm:$0xff]
        %v2055 = vld [vmem:[%s588 + $0x30] sm:$0xff]
        %v2056 = vld [vmem:[%s588 + $0x38] sm:$0xff]
        %v2057 = vld [vmem:[%s588 + $0x40] sm:$0xff]
        %v2058 = vld [vmem:[%s588 + $0x48] sm:$0xff]
        %v2059 = vld [vmem:[%s588 + $0x50] sm:$0xff]
        %v2060 = vld [vmem:[%s588 + $0x58] sm:$0xff]
        %v2061 = vld [vmem:[%s588 + $0x60] sm:$0xff]
        %v2062 = vld [vmem:[%s588 + $0x68] sm:$0xff]
        %v2063 = vld [vmem:[%s588 + $0x70] sm:$0xff]
        %v2064 = vld [vmem:[%s588 + $0x78] sm:$0xff]
        %2065 = vmatprep.subr.mxu0 0.0
        %2066 = vmatpush1.msra.mxu0 %v2049
        %2067 = vmatprep.subr.mxu0 0.0
        %2068 = vmatpush1.msra.mxu0 %v2050
        %2069 = vmatprep.subr.mxu0 0.0
        %2070 = vmatpush1.msra.mxu0 %v2051
        %2071 = vmatprep.subr.mxu0 0.0
        %2072 = vmatpush1.msra.mxu0 %v2052
        %2073 = vmatprep.subr.mxu0 0.0
        %2074 = vmatpush1.msra.mxu0 %v2053
        %2075 = vmatprep.subr.mxu0 0.0
        %2076 = vmatpush1.msra.mxu0 %v2054
        %2077 = vmatprep.subr.mxu0 0.0
        %2078 = vmatpush1.msra.mxu0 %v2055
        %2079 = vmatprep.subr.mxu0 0.0
        %2080 = vmatpush1.msra.mxu0 %v2056
        %2081 = vmatprep.subr.mxu0 0.0
        %2082 = vmatpush1.msra.mxu0 %v2057
        %2083 = vmatprep.subr.mxu0 0.0
        %2084 = vmatpush1.msra.mxu0 %v2058
        %2085 = vmatprep.subr.mxu0 0.0
        %2086 = vmatpush1.msra.mxu0 %v2059
        %2087 = vmatprep.subr.mxu0 0.0
        %2088 = vmatpush1.msra.mxu0 %v2060
        %2089 = vmatprep.subr.mxu0 0.0
        %2090 = vmatpush1.msra.mxu0 %v2061
        %2091 = vmatprep.subr.mxu0 0.0
        %2092 = vmatpush1.msra.mxu0 %v2062
        %2093 = vmatprep.subr.mxu0 0.0
        %2094 = vmatpush1.msra.mxu0 %v2063
        %2095 = vmatprep.subr.mxu0 0.0
        %2096 = vmatpush1.msra.mxu0 %v2064
        %2097 = vmatprep.subr.mxu0 0.0
        %2098 = vmatpush1.msra.mxu0 0.0
        %2099 = vmatprep.subr.mxu0 0.0
        %2100 = vmatpush1.msra.mxu0 0.0
        %2101 = vmatprep.subr.mxu0 0.0
        %2102 = vmatpush1.msra.mxu0 0.0
        %2103 = vmatprep.subr.mxu0 0.0
        %2104 = vmatpush1.msra.mxu0 0.0
        %2105 = vmatprep.subr.mxu0 0.0
        %2106 = vmatpush1.msra.mxu0 0.0
        %2107 = vmatprep.subr.mxu0 0.0
        %2108 = vmatpush1.msra.mxu0 0.0
        %2109 = vmatprep.subr.mxu0 0.0
        %2110 = vmatpush1.msra.mxu0 0.0
        %2111 = vmatprep.subr.mxu0 0.0
        %2112 = vmatpush1.msra.mxu0 0.0
        %2113 = vmatprep.subr.mxu0 0.0
        %2114 = vmatpush1.msra.mxu0 0.0
        %2115 = vmatprep.subr.mxu0 0.0
        %2116 = vmatpush1.msra.mxu0 0.0
        %2117 = vmatprep.subr.mxu0 0.0
        %2118 = vmatpush1.msra.mxu0 0.0
        %2119 = vmatprep.subr.mxu0 0.0
        %2120 = vmatpush1.msra.mxu0 0.0
        %2121 = vmatprep.subr.mxu0 0.0
        %2122 = vmatpush1.msra.mxu0 0.0
        %2123 = vmatprep.subr.mxu0 0.0
        %2124 = vmatpush1.msra.mxu0 0.0
        %2125 = vmatprep.subr.mxu0 0.0
        %2126 = vmatpush1.msra.mxu0 0.0
        %2127 = vmatprep.subr.mxu0 0.0
        %2128 = vmatpush1.msra.mxu0 0.0
        %2129 = vmatprep.mubr.f32.mxu0 0.0
        %2130 = vmatmul.mubr.f32.gmra.mrb[0].mxu0 %v2045
        %v2131 = vpop.f32.mrb[0].mxu0
        %v2132 = vadd.f32 0.0, %v2131
        %v2133 = vpop.f32.mrb[0].mxu0
        %2134 = vmatprep.mubr.f32.mxu0 0.0
        %2135 = vmatmul.mubr.f32.gmra.mrb[0].mxu0 %v2046
        %v2136 = vpop.f32.mrb[0].mxu0
        %v2137 = vadd.f32 0.0, %v2136
        %v2138 = vpop.f32.mrb[0].mxu0
        %2139 = vdwg.mxu0
        %v2140 = vadd.f32 %v2047, %v2132
        %v2141 = vadd.f32 %v2048, %v2137
        %2142 = vst [vmem:[#allocation2] sm:$0xff] %v2140
        %2143 = vst [vmem:[#allocation2 + $0x8] sm:$0xff] %v2141
        %p2144 = scmp.eq.s32.totalorder %s40, 1
        // Predicated region
        $region105: #{tpu_custom_call.1} parent=75 // pred_check
          %p2145 = pneg %p2144
        $region106: #{tpu_custom_call.1} parent=75 // pred_check_branch
          %2147 = sbr.rel (%p2145) target = $region108
        $region107: #{tpu_custom_call.1} parent=75 // pred_region
          %v2148 = vld [vmem:[#allocation2] sm:$0xff]
          %v2149 = vld [vmem:[#allocation2 + $0x8] sm:$0xff]
          %2150 = vst [vmem:[%s650] sm:$0xff] %v2148
          %2151 = vst [vmem:[%s650 + $0x8] sm:$0xff] %v2149
        $region108: #{tpu_custom_call.1} parent=75 // pred_fallthru
          _
        %s2152 = sand.u32 %s374, 1
        %s2153 = scalar_lea.sflag [#allocation6], %s2152
        %s2154 = sand.u32 %s374, 1
        %s2155 = smul.addr %s2154, 16
        %s2156 = scalar_lea.vmem [#allocation14], %s2155
        // Predicated region
        $region109: #{tpu_custom_call.1} parent=75 // pred_check
          %p2157 = pneg %p384
        $region110: #{tpu_custom_call.1} parent=75 // pred_check_branch
          %2159 = sbr.rel (%p2157) target = $region112
        $region111: #{tpu_custom_call.1} parent=75 // pred_region
          %s2161 = ssub.s32 256, 256
          %2162 = vsyncadd %s2153, %s2161
          %s2163 = smul.addr %s39, 2
          %s2164 = smul.addr %s2163, 128
          %s2165 = scalar_lea.hbm %s14, %s2164
          %s2166 = sshll.u32 %s2156, 4
          %s2167 = int_to_ptr.vmem [resolvable:$true] %s2166
          %2172 = dma.vmem_to_hbm [thread:$0]  %s2167, 256, %s2165, %s2153, 128, 128, 8
        $region112: #{tpu_custom_call.1} parent=75 // pred_fallthru
          _
      $region76: #{tpu_custom_call.1} parent=5 // pred_fallthru
        _
      %p2173 = scmp.le.s32.totalorder 2, %s30
      // Predicated region
      $region113: #{tpu_custom_call.1} parent=5 // pred_check
        %p2174 = pneg %p2173
      $region114: #{tpu_custom_call.1} parent=5 // pred_check_branch
        %2176 = sbr.rel (%p2174) target = $region116
      $region115: #{tpu_custom_call.1} parent=5 // pred_region
        %s2177 = ssub.s32 %s30, 2
        // Predicated region
        $region117: #{tpu_custom_call.1} parent=115 // pred_check
          %p2178 = pneg %p390
        $region118: #{tpu_custom_call.1} parent=115 // pred_check_branch
          %2180 = sbr.rel (%p2178) target = $region120
        $region119: #{tpu_custom_call.1} parent=115 // pred_region
          %s2181 = sand.u32 %s375, 1
          %s2182 = scalar_lea.sflag [#allocation6], %s2181
          %s2183 = sand.u32 %s375, 1
          %s2184 = smul.addr %s2183, 16
          %s2185 = scalar_lea.vmem [#allocation14], %s2184
          %2186 = dma.done %s2182, 256
        $region120: #{tpu_custom_call.1} parent=115 // pred_fallthru
          _
      $region116: #{tpu_custom_call.1} parent=5 // pred_fallthru
        _
    $region6: #{tpu_custom_call.1} parent=1 // loop_footer
      %s34 = sadd.s32 1, %s30
    $region7: #{tpu_custom_call.1} parent=1 // loop_footer_branch
      %29 = sbr.rel target = $region3
    $region8: #{tpu_custom_call.1} parent=1 // loop_exit
      _
    %2187 = vsyncpa [#allocation5], 1
    %s2188 = scalar_lea.sflag [#allocation5], 1
    %2189 = vsyncpa %s2188, 1
    %2190 = vsyncpa [#allocation8], 1
    %s2191 = scalar_lea.sflag [#allocation8], 1
    %2192 = vsyncpa %s2191, 1
    %2193 = vsyncpa [#allocation11], 1
    %2194 = vsyncpa [#allocation6], 1
    %s2195 = scalar_lea.sflag [#allocation6], 1
    %2196 = vsyncpa %s2195, 1

// kernel: tpu_custom_call.1
$region0: #{tpu_custom_call.1}
  #allocation0 [shape = 'u32[]', space=smem, size = 0x4, offset = 0x4, fixed_abs, tag = 'smem constant byte address 0x4 - core index']
  #allocation1 [shape = 'u32[144,128]{1,0:T(1,128)}', space=vmem, size = 0x12000, scoped, tag = 'internal scratch']
  #allocation2 [shape = 'f32[16,128]{1,0:T(8,128)}', space=vmem, size = 0x2000, scoped, tag = 'scratch operand']
  #allocation3 [shape = 'f32[16,128]{1,0:T(8,128)}', space=vmem, size = 0x2000, scoped, tag = 'scratch operand']
  %s0 = inlined_call_operand.hbm [shape: f32[4,16,128], index: 0, kind: input, shape index: {}]
  %s1 = inlined_call_operand.hbm [shape: f32[4,16,16], index: 1, kind: input, shape index: {}]
  %s2 = inlined_call_operand.vmem [shape: f32[1,128], index: 2, kind: input, shape index: {}]
  %s3 = inlined_call_operand.vmem [shape: f32[1,128], index: 3, kind: input, shape index: {}]
  %s4 = inlined_call_operand.hbm [shape: f32[128,384], index: 4, kind: input, shape index: {}]
  %s5 = inlined_call_operand.vmem [shape: f32[1,384], index: 5, kind: input, shape index: {}]
  %s6 = inlined_call_operand.hbm [shape: f32[128,128], index: 6, kind: input, shape index: {}]
  %s7 = inlined_call_operand.vmem [shape: f32[1,128], index: 7, kind: input, shape index: {}]
  %s8 = inlined_call_operand.vmem [shape: f32[1,128], index: 8, kind: input, shape index: {}]
  %s9 = inlined_call_operand.vmem [shape: f32[1,128], index: 9, kind: input, shape index: {}]
  %s10 = inlined_call_operand.hbm [shape: f32[128,256], index: 10, kind: input, shape index: {}]
  %s11 = inlined_call_operand.vmem [shape: f32[1,256], index: 11, kind: input, shape index: {}]
  %s12 = inlined_call_operand.hbm [shape: f32[256,128], index: 12, kind: input, shape index: {}]
  %s13 = inlined_call_operand.vmem [shape: f32[1,128], index: 13, kind: input, shape index: {}]
  %s14 = inlined_call_operand.hbm [shape: f32[4,16,128], index: 14, kind: output, shape index: {}]
  %s15 = sld [smem:[#allocation0]]
  $region121: #{tpu_custom_call.1} parent=0
    _
  %s17 = ssub.s32 1, %s15
  %s18 = scalar_select 0, %s17, %s15
  $region1: #{tpu_custom_call.1} parent=0
    #allocation4 [shape = 'u8[16384]{0}', space=vmem, size = 0x4000, scoped, tag = 'input window, operand 0']
    #allocation5 [shape = 's32[2]{0}', space=sflag, size = 0x8, scoped, tag = 'scoped memory for tpu_custom_call.1']
    #allocation6 [shape = 's32[2]{0}', space=sflag, size = 0x8, scoped, tag = 'scoped memory for tpu_custom_call.1']
    #allocation7 [shape = 'u8[16384]{0}', space=vmem, size = 0x4000, scoped, tag = 'input window, operand 1']
    #allocation8 [shape = 's32[2]{0}', space=sflag, size = 0x8, scoped, tag = 'scoped memory for tpu_custom_call.1']
    #allocation9 [shape = 'u8[196608]{0}', space=vmem, size = 0x30000, scoped, tag = 'input window, operand 4, single buffered']
    #allocation10 [shape = 'u8[65536]{0}', space=vmem, size = 0x10000, scoped, tag = 'input window, operand 6, single buffered']
    #allocation11 [shape = 's32[1]{0}', space=sflag, size = 0x4, scoped, tag = 'scoped memory for tpu_custom_call.1']
    #allocation12 [shape = 'u8[131072]{0}', space=vmem, size = 0x20000, scoped, tag = 'input window, operand 10']
    #allocation13 [shape = 'u8[131072]{0}', space=vmem, size = 0x20000, scoped, tag = 'input window, operand 12']
    #allocation14 [shape = 'u8[16384]{0}', space=vmem, size = 0x4000, scoped, tag = 'output window, operand 0']
    %19 = vsyncpa [#allocation5], 0
    %s20 = scalar_lea.sflag [#allocation5], 1
    %21 = vsyncpa %s20, 0
    %22 = vsyncpa [#allocation8], 0
    %s23 = scalar_lea.sflag [#allocation8], 1
    %24 = vsyncpa %s23, 0
    %25 = vsyncpa [#allocation11], 0
    %26 = vsyncpa [#allocation6], 0
    %s27 = scalar_lea.sflag [#allocation6], 1
    %28 = vsyncpa %s27, 0
    loop: start=0, step=1, limit=10
    $region2: #{tpu_custom_call.1} parent=1 // loop_pre_header
      _
    $region3: #{tpu_custom_call.1} parent=1 // loop_header
      %s30 = sphi 0, %s34
      %p31 = scmp.ge.s32.totalorder %s30, 10
      %s37 = sphi 0, %s49
      %s38 = sphi 0, %s45
      %s39 = sphi 0, %s37
      %s40 = sphi 0, %s38
      %s41 = sphi 0, %s39
      %s42 = sphi 0, %s40
      %s52 = sphi 0, %s54
      %s55 = sphi 0, %s52
      %s56 = sphi 0, %s55
      %s72 = sphi 0, %s56
      %s78 = sphi 0, %s80
      %s81 = sphi 0, %s78
      %s82 = sphi 0, %s81
      %s98 = sphi 0, %s82
      %s102 = sphi 0, %s102
      %s104 = sphi 0, %s102
      %s105 = sphi 0, %s104
      %s119 = sphi 0, %s105
      %s123 = sphi 0, %s123
      %s125 = sphi 0, %s123
      %s126 = sphi 0, %s125
      %s140 = sphi 0, %s126
      %s144 = sphi 0, %s144
      %s146 = sphi 0, %s144
      %s147 = sphi 0, %s146
      %s161 = sphi 0, %s147
      %s165 = sphi 0, %s165
      %s167 = sphi 0, %s165
      %s168 = sphi 0, %s167
      %s182 = sphi 0, %s168
      %s186 = sphi 0, %s186
      %s188 = sphi 0, %s186
      %s189 = sphi 0, %s188
      %s203 = sphi 0, %s189
      %s207 = sphi 0, %s207
      %s209 = sphi 0, %s207
      %s210 = sphi 0, %s209
      %s224 = sphi 0, %s210
      %s228 = sphi 0, %s228
      %s230 = sphi 0, %s228
      %s231 = sphi 0, %s230
      %s245 = sphi 0, %s231
      %s249 = sphi 0, %s249
      %s251 = sphi 0, %s249
      %s252 = sphi 0, %s251
      %s266 = sphi 0, %s252
      %s272 = sphi 0, %s274
      %s275 = sphi 0, %s272
      %s276 = sphi 0, %s275
      %s292 = sphi 0, %s276
      %s298 = sphi 0, %s300
      %s301 = sphi 0, %s298
      %s302 = sphi 0, %s301
      %s318 = sphi 0, %s302
      %s324 = sphi 0, %s326
      %s327 = sphi 0, %s324
      %s328 = sphi 0, %s327
      %s344 = sphi 0, %s328
      %s348 = sphi 0, %s348
      %s350 = sphi 0, %s348
      %s351 = sphi 0, %s350
      %s365 = sphi 0, %s351
      %s371 = sphi 0, %s373
      %s374 = sphi 0, %s371
      %s375 = sphi 0, %s374
      %s391 = sphi 0, %s375
    $region4: #{tpu_custom_call.1} parent=1 // loop_header_branch
      %33 = sbr.rel (%p31) target = $region8
    $region5: #{tpu_custom_call.1} parent=1 // loop_body
      %s35 = ssub.s32 %s30, 1
      %s36 = ssub.s32 %s30, 2
      %s43 = sadd.s32 1, %s38
      %p44 = scmp.ge.s32.totalorder %s43, 2
      %s45 = scalar_select %p44, 0, %s43
      %s46 = sadd.s32 1, %s37
      %s47 = scalar_select %p44, %s46, %s37
      %p48 = scmp.ge.s32.totalorder %s47, 4
      %s49 = scalar_select %p48, 0, %s47
      %s50 = ssub.s32 %s37, %s49
      %p51 = scmp.eq.s32.totalorder %s50, 0
      %s53 = sadd.s32 %s52, 1
      %s54 = scalar_select %p51, %s52, %s53
      %p57 = pneg %p51
      %p58 = scmp.eq.s32.totalorder %s30, 7
      %p59 = por %p57, %p58
      %p60 = scmp.ne.s32.totalorder %s52, %s55
      %p61 = scmp.eq.s32.totalorder %s30, 0
      %p62 = por %p60, %p61
      %p63 = scmp.ne.s32.totalorder %s52, %s55
      %p64 = scmp.eq.s32.totalorder %s35, 7
      %p65 = por %p63, %p64
      %p66 = scmp.ne.s32.totalorder %s55, %s56
      %p67 = scmp.eq.s32.totalorder %s35, 0
      %p68 = por %p66, %p67
      %p69 = scmp.ne.s32.totalorder %s55, %s56
      %p70 = scmp.eq.s32.totalorder %s36, 7
      %p71 = por %p69, %p70
      %p73 = scmp.ne.s32.totalorder %s56, %s72
      %p74 = scmp.eq.s32.totalorder %s36, 0
      %p75 = por %p73, %p74
      %s76 = ssub.s32 %s37, %s49
      %p77 = scmp.eq.s32.totalorder %s76, 0
      %s79 = sadd.s32 %s78, 1
      %s80 = scalar_select %p77, %s78, %s79
      %p83 = pneg %p77
      %p84 = scmp.eq.s32.totalorder %s30, 7
      %p85 = por %p83, %p84
      %p86 = scmp.ne.s32.totalorder %s78, %s81
      %p87 = scmp.eq.s32.totalorder %s30, 0
      %p88 = por %p86, %p87
      %p89 = scmp.ne.s32.totalorder %s78, %s81
      %p90 = scmp.eq.s32.totalorder %s35, 7
      %p91 = por %p89, %p90
      %p92 = scmp.ne.s32.totalorder %s81, %s82
      %p93 = scmp.eq.s32.totalorder %s35, 0
      %p94 = por %p92, %p93
      %p95 = scmp.ne.s32.totalorder %s81, %s82
      %p96 = scmp.eq.s32.totalorder %s36, 7
      %p97 = por %p95, %p96
      %p99 = scmp.ne.s32.totalorder %s82, %s98
      %p100 = scmp.eq.s32.totalorder %s36, 0
      %p101 = por %p99, %p100
      %s103 = sadd.s32 %s102, 1
      %p106 = scmp.eq.s32.totalorder %s30, 7
      %p107 = scmp.ne.s32.totalorder %s102, %s104
      %p108 = scmp.eq.s32.totalorder %s30, 0
      %p109 = por %p107, %p108
      %p110 = scmp.ne.s32.totalorder %s102, %s104
      %p111 = scmp.eq.s32.totalorder %s35, 7
      %p112 = por %p110, %p111
      %p113 = scmp.ne.s32.totalorder %s104, %s105
      %p114 = scmp.eq.s32.totalorder %s35, 0
      %p115 = por %p113, %p114
      %p116 = scmp.ne.s32.totalorder %s104, %s105
      %p117 = scmp.eq.s32.totalorder %s36, 7
      %p118 = por %p116, %p117
      %p120 = scmp.ne.s32.totalorder %s105, %s119
      %p121 = scmp.eq.s32.totalorder %s36, 0
      %p122 = por %p120, %p121
      %s124 = sadd.s32 %s123, 1
      %p127 = scmp.eq.s32.totalorder %s30, 7
      %p128 = scmp.ne.s32.totalorder %s123, %s125
      %p129 = scmp.eq.s32.totalorder %s30, 0
      %p130 = por %p128, %p129
      %p131 = scmp.ne.s32.totalorder %s123, %s125
      %p132 = scmp.eq.s32.totalorder %s35, 7
      %p133 = por %p131, %p132
      %p134 = scmp.ne.s32.totalorder %s125, %s126
      %p135 = scmp.eq.s32.totalorder %s35, 0
      %p136 = por %p134, %p135
      %p137 = scmp.ne.s32.totalorder %s125, %s126
      %p138 = scmp.eq.s32.totalorder %s36, 7
      %p139 = por %p137, %p138
      %p141 = scmp.ne.s32.totalorder %s126, %s140
      %p142 = scmp.eq.s32.totalorder %s36, 0
      %p143 = por %p141, %p142
      %s145 = sadd.s32 %s144, 1
      %p148 = scmp.eq.s32.totalorder %s30, 7
      %p149 = scmp.ne.s32.totalorder %s144, %s146
      %p150 = scmp.eq.s32.totalorder %s30, 0
      %p151 = por %p149, %p150
      %p152 = scmp.ne.s32.totalorder %s144, %s146
      %p153 = scmp.eq.s32.totalorder %s35, 7
      %p154 = por %p152, %p153
      %p155 = scmp.ne.s32.totalorder %s146, %s147
      %p156 = scmp.eq.s32.totalorder %s35, 0
      %p157 = por %p155, %p156
      %p158 = scmp.ne.s32.totalorder %s146, %s147
      %p159 = scmp.eq.s32.totalorder %s36, 7
      %p160 = por %p158, %p159
      %p162 = scmp.ne.s32.totalorder %s147, %s161
      %p163 = scmp.eq.s32.totalorder %s36, 0
      %p164 = por %p162, %p163
      %s166 = sadd.s32 %s165, 1
      %p169 = scmp.eq.s32.totalorder %s30, 7
      %p170 = scmp.ne.s32.totalorder %s165, %s167
      %p171 = scmp.eq.s32.totalorder %s30, 0
      %p172 = por %p170, %p171
      %p173 = scmp.ne.s32.totalorder %s165, %s167
      %p174 = scmp.eq.s32.totalorder %s35, 7
      %p175 = por %p173, %p174
      %p176 = scmp.ne.s32.totalorder %s167, %s168
      %p177 = scmp.eq.s32.totalorder %s35, 0
      %p178 = por %p176, %p177
      %p179 = scmp.ne.s32.totalorder %s167, %s168
      %p180 = scmp.eq.s32.totalorder %s36, 7
      %p181 = por %p179, %p180
      %p183 = scmp.ne.s32.totalorder %s168, %s182
      %p184 = scmp.eq.s32.totalorder %s36, 0
      %p185 = por %p183, %p184
      %s187 = sadd.s32 %s186, 1
      %p190 = scmp.eq.s32.totalorder %s30, 7
      %p191 = scmp.ne.s32.totalorder %s186, %s188
      %p192 = scmp.eq.s32.totalorder %s30, 0
      %p193 = por %p191, %p192
      %p194 = scmp.ne.s32.totalorder %s186, %s188
      %p195 = scmp.eq.s32.totalorder %s35, 7
      %p196 = por %p194, %p195
      %p197 = scmp.ne.s32.totalorder %s188, %s189
      %p198 = scmp.eq.s32.totalorder %s35, 0
      %p199 = por %p197, %p198
      %p200 = scmp.ne.s32.totalorder %s188, %s189
      %p201 = scmp.eq.s32.totalorder %s36, 7
      %p202 = por %p200, %p201
      %p204 = scmp.ne.s32.totalorder %s189, %s203
      %p205 = scmp.eq.s32.totalorder %s36, 0
      %p206 = por %p204, %p205
      %s208 = sadd.s32 %s207, 1
      %p211 = scmp.eq.s32.totalorder %s30, 7
      %p212 = scmp.ne.s32.totalorder %s207, %s209
      %p213 = scmp.eq.s32.totalorder %s30, 0
      %p214 = por %p212, %p213
      %p215 = scmp.ne.s32.totalorder %s207, %s209
      %p216 = scmp.eq.s32.totalorder %s35, 7
      %p217 = por %p215, %p216
      %p218 = scmp.ne.s32.totalorder %s209, %s210
      %p219 = scmp.eq.s32.totalorder %s35, 0
      %p220 = por %p218, %p219
      %p221 = scmp.ne.s32.totalorder %s209, %s210
      %p222 = scmp.eq.s32.totalorder %s36, 7
      %p223 = por %p221, %p222
      %p225 = scmp.ne.s32.totalorder %s210, %s224
      %p226 = scmp.eq.s32.totalorder %s36, 0
      %p227 = por %p225, %p226
      %s229 = sadd.s32 %s228, 1
      %p232 = scmp.eq.s32.totalorder %s30, 7
      %p233 = scmp.ne.s32.totalorder %s228, %s230
      %p234 = scmp.eq.s32.totalorder %s30, 0
      %p235 = por %p233, %p234
      %p236 = scmp.ne.s32.totalorder %s228, %s230
      %p237 = scmp.eq.s32.totalorder %s35, 7
      %p238 = por %p236, %p237
      %p239 = scmp.ne.s32.totalorder %s230, %s231
      %p240 = scmp.eq.s32.totalorder %s35, 0
      %p241 = por %p239, %p240
      %p242 = scmp.ne.s32.totalorder %s230, %s231
      %p243 = scmp.eq.s32.totalorder %s36, 7
      %p244 = por %p242, %p243
      %p246 = scmp.ne.s32.totalorder %s231, %s245
      %p247 = scmp.eq.s32.totalorder %s36, 0
      %p248 = por %p246, %p247
      %s250 = sadd.s32 %s249, 1
      %p253 = scmp.eq.s32.totalorder %s30, 7
      %p254 = scmp.ne.s32.totalorder %s249, %s251
      %p255 = scmp.eq.s32.totalorder %s30, 0
      %p256 = por %p254, %p255
      %p257 = scmp.ne.s32.totalorder %s249, %s251
      %p258 = scmp.eq.s32.totalorder %s35, 7
      %p259 = por %p257, %p258
      %p260 = scmp.ne.s32.totalorder %s251, %s252
      %p261 = scmp.eq.s32.totalorder %s35, 0
      %p262 = por %p260, %p261
      %p263 = scmp.ne.s32.totalorder %s251, %s252
      %p264 = scmp.eq.s32.totalorder %s36, 7
      %p265 = por %p263, %p264
      %p267 = scmp.ne.s32.totalorder %s252, %s266
      %p268 = scmp.eq.s32.totalorder %s36, 0
      %p269 = por %p267, %p268
      %s270 = ssub.s32 %s38, %s45
      %p271 = scmp.eq.s32.totalorder %s270, 0
      %s273 = sadd.s32 %s272, 1
      %s274 = scalar_select %p271, %s272, %s273
      %p277 = pneg %p271
      %p278 = scmp.eq.s32.totalorder %s30, 7
      %p279 = por %p277, %p278
      %p280 = scmp.ne.s32.totalorder %s272, %s275
      %p281 = scmp.eq.s32.totalorder %s30, 0
      %p282 = por %p280, %p281
      %p283 = scmp.ne.s32.totalorder %s272, %s275
      %p284 = scmp.eq.s32.totalorder %s35, 7
      %p285 = por %p283, %p284
      %p286 = scmp.ne.s32.totalorder %s275, %s276
      %p287 = scmp.eq.s32.totalorder %s35, 0
      %p288 = por %p286, %p287
      %p289 = scmp.ne.s32.totalorder %s275, %s276
      %p290 = scmp.eq.s32.totalorder %s36, 7
      %p291 = por %p289, %p290
      %p293 = scmp.ne.s32.totalorder %s276, %s292
      %p294 = scmp.eq.s32.totalorder %s36, 0
      %p295 = por %p293, %p294
      %s296 = ssub.s32 %s38, %s45
      %p297 = scmp.eq.s32.totalorder %s296, 0
      %s299 = sadd.s32 %s298, 1
      %s300 = scalar_select %p297, %s298, %s299
      %p303 = pneg %p297
      %p304 = scmp.eq.s32.totalorder %s30, 7
      %p305 = por %p303, %p304
      %p306 = scmp.ne.s32.totalorder %s298, %s301
      %p307 = scmp.eq.s32.totalorder %s30, 0
      %p308 = por %p306, %p307
      %p309 = scmp.ne.s32.totalorder %s298, %s301
      %p310 = scmp.eq.s32.totalorder %s35, 7
      %p311 = por %p309, %p310
      %p312 = scmp.ne.s32.totalorder %s301, %s302
      %p313 = scmp.eq.s32.totalorder %s35, 0
      %p314 = por %p312, %p313
      %p315 = scmp.ne.s32.totalorder %s301, %s302
      %p316 = scmp.eq.s32.totalorder %s36, 7
      %p317 = por %p315, %p316
      %p319 = scmp.ne.s32.totalorder %s302, %s318
      %p320 = scmp.eq.s32.totalorder %s36, 0
      %p321 = por %p319, %p320
      %s322 = ssub.s32 %s38, %s45
      %p323 = scmp.eq.s32.totalorder %s322, 0
      %s325 = sadd.s32 %s324, 1
      %s326 = scalar_select %p323, %s324, %s325
      %p329 = pneg %p323
      %p330 = scmp.eq.s32.totalorder %s30, 7
      %p331 = por %p329, %p330
      %p332 = scmp.ne.s32.totalorder %s324, %s327
      %p333 = scmp.eq.s32.totalorder %s30, 0
      %p334 = por %p332, %p333
      %p335 = scmp.ne.s32.totalorder %s324, %s327
      %p336 = scmp.eq.s32.totalorder %s35, 7
      %p337 = por %p335, %p336
      %p338 = scmp.ne.s32.totalorder %s327, %s328
      %p339 = scmp.eq.s32.totalorder %s35, 0
      %p340 = por %p338, %p339
      %p341 = scmp.ne.s32.totalorder %s327, %s328
      %p342 = scmp.eq.s32.totalorder %s36, 7
      %p343 = por %p341, %p342
      %p345 = scmp.ne.s32.totalorder %s328, %s344
      %p346 = scmp.eq.s32.totalorder %s36, 0
      %p347 = por %p345, %p346
      %s349 = sadd.s32 %s348, 1
      %p352 = scmp.eq.s32.totalorder %s30, 7
      %p353 = scmp.ne.s32.totalorder %s348, %s350
      %p354 = scmp.eq.s32.totalorder %s30, 0
      %p355 = por %p353, %p354
      %p356 = scmp.ne.s32.totalorder %s348, %s350
      %p357 = scmp.eq.s32.totalorder %s35, 7
      %p358 = por %p356, %p357
      %p359 = scmp.ne.s32.totalorder %s350, %s351
      %p360 = scmp.eq.s32.totalorder %s35, 0
      %p361 = por %p359, %p360
      %p362 = scmp.ne.s32.totalorder %s350, %s351
      %p363 = scmp.eq.s32.totalorder %s36, 7
      %p364 = por %p362, %p363
      %p366 = scmp.ne.s32.totalorder %s351, %s365
      %p367 = scmp.eq.s32.totalorder %s36, 0
      %p368 = por %p366, %p367
      %s369 = ssub.s32 %s37, %s49
      %p370 = scmp.eq.s32.totalorder %s369, 0
      %s372 = sadd.s32 %s371, 1
      %s373 = scalar_select %p370, %s371, %s372
      %p376 = pneg %p370
      %p377 = scmp.eq.s32.totalorder %s30, 7
      %p378 = por %p376, %p377
      %p379 = scmp.ne.s32.totalorder %s371, %s374
      %p380 = scmp.eq.s32.totalorder %s30, 0
      %p381 = por %p379, %p380
      %p382 = scmp.ne.s32.totalorder %s371, %s374
      %p383 = scmp.eq.s32.totalorder %s35, 7
      %p384 = por %p382, %p383
      %p385 = scmp.ne.s32.totalorder %s374, %s375
      %p386 = scmp.eq.s32.totalorder %s35, 0
      %p387 = por %p385, %p386
      %p388 = scmp.ne.s32.totalorder %s374, %s375
      %p389 = scmp.eq.s32.totalorder %s36, 7
      %p390 = por %p388, %p389
      %p392 = scmp.ne.s32.totalorder %s375, %s391
      %p393 = scmp.eq.s32.totalorder %s36, 0
      %p394 = por %p392, %p393
      %p395 = scmp.le.s32.totalorder 1, %s30
      %p396 = scmp.lt.s32.totalorder %s30, 9
      %p397 = pnand %p395, %p396
      %p398 = pneg %p397
      // Predicated region
      $region9: #{tpu_custom_call.1} parent=5 // pred_check
        _
      $region10: #{tpu_custom_call.1} parent=5 // pred_check_branch
        %400 = sbr.rel (%p397) target = $region12
      $region11: #{tpu_custom_call.1} parent=5 // pred_region
        %s401 = ssub.s32 %s30, 1
        // Predicated region
        $region13: #{tpu_custom_call.1} parent=11 // pred_check
          %p402 = pneg %p115
        $region14: #{tpu_custom_call.1} parent=11 // pred_check_branch
          %404 = sbr.rel (%p402) target = $region16
        $region15: #{tpu_custom_call.1} parent=11 // pred_region
          _
        $region16: #{tpu_custom_call.1} parent=11 // pred_fallthru
          _
        // Predicated region
        $region17: #{tpu_custom_call.1} parent=11 // pred_check
          %p405 = pneg %p136
        $region18: #{tpu_custom_call.1} parent=11 // pred_check_branch
          %407 = sbr.rel (%p405) target = $region20
        $region19: #{tpu_custom_call.1} parent=11 // pred_region
          _
        $region20: #{tpu_custom_call.1} parent=11 // pred_fallthru
          _
        // Predicated region
        $region21: #{tpu_custom_call.1} parent=11 // pred_check
          %p408 = pneg %p157
        $region22: #{tpu_custom_call.1} parent=11 // pred_check_branch
          %410 = sbr.rel (%p408) target = $region24
        $region23: #{tpu_custom_call.1} parent=11 // pred_region
          %s412 = ssub.s32 6144, 6144
          %413 = vsyncadd [#allocation8], %s412
          %s414 = sshll.u32 [#allocation9], 4
          %s415 = int_to_ptr.vmem [resolvable:$true] %s414
          %420 = dma.hbm_to_vmem [thread:$0]  %s4, 6144, %s415, [#allocation8], 384, 384, 24
        $region24: #{tpu_custom_call.1} parent=11 // pred_fallthru
          _
        // Predicated region
        $region25: #{tpu_custom_call.1} parent=11 // pred_check
          %p421 = pneg %p178
        $region26: #{tpu_custom_call.1} parent=11 // pred_check_branch
          %423 = sbr.rel (%p421) target = $region28
        $region27: #{tpu_custom_call.1} parent=11 // pred_region
          _
        $region28: #{tpu_custom_call.1} parent=11 // pred_fallthru
          _
        // Predicated region
        $region29: #{tpu_custom_call.1} parent=11 // pred_check
          %p424 = pneg %p199
        $region30: #{tpu_custom_call.1} parent=11 // pred_check_branch
          %426 = sbr.rel (%p424) target = $region32
        $region31: #{tpu_custom_call.1} parent=11 // pred_region
          %s428 = ssub.s32 2048, 2048
          %429 = vsyncadd [#allocation11], %s428
          %s430 = sshll.u32 [#allocation10], 4
          %s431 = int_to_ptr.vmem [resolvable:$true] %s430
          %436 = dma.hbm_to_vmem [thread:$0]  %s6, 2048, %s431, [#allocation11], 128, 128, 8
        $region32: #{tpu_custom_call.1} parent=11 // pred_fallthru
          _
        // Predicated region
        $region33: #{tpu_custom_call.1} parent=11 // pred_check
          %p437 = pneg %p220
        $region34: #{tpu_custom_call.1} parent=11 // pred_check_branch
          %439 = sbr.rel (%p437) target = $region36
        $region35: #{tpu_custom_call.1} parent=11 // pred_region
          _
        $region36: #{tpu_custom_call.1} parent=11 // pred_fallthru
          _
        // Predicated region
        $region37: #{tpu_custom_call.1} parent=11 // pred_check
          %p440 = pneg %p241
        $region38: #{tpu_custom_call.1} parent=11 // pred_check_branch
          %442 = sbr.rel (%p440) target = $region40
        $region39: #{tpu_custom_call.1} parent=11 // pred_region
          _
        $region40: #{tpu_custom_call.1} parent=11 // pred_fallthru
          _
        // Predicated region
        $region41: #{tpu_custom_call.1} parent=11 // pred_check
          %p443 = pneg %p262
        $region42: #{tpu_custom_call.1} parent=11 // pred_check_branch
          %445 = sbr.rel (%p443) target = $region44
        $region43: #{tpu_custom_call.1} parent=11 // pred_region
          _
        $region44: #{tpu_custom_call.1} parent=11 // pred_fallthru
          _
        // Predicated region
        $region45: #{tpu_custom_call.1} parent=11 // pred_check
          %p446 = pneg %p361
        $region46: #{tpu_custom_call.1} parent=11 // pred_check_branch
          %448 = sbr.rel (%p446) target = $region48
        $region47: #{tpu_custom_call.1} parent=11 // pred_region
          _
        $region48: #{tpu_custom_call.1} parent=11 // pred_fallthru
          _
      $region12: #{tpu_custom_call.1} parent=5 // pred_fallthru
        _
      %p449 = scmp.lt.s32.totalorder %s30, 8
      // Predicated region
      $region49: #{tpu_custom_call.1} parent=5 // pred_check
        %p450 = pneg %p449
      $region50: #{tpu_custom_call.1} parent=5 // pred_check_branch
        %452 = sbr.rel (%p450) target = $region52
      $region51: #{tpu_custom_call.1} parent=5 // pred_region
        // Predicated region
        $region53: #{tpu_custom_call.1} parent=51 // pred_check
          %p453 = pneg %p62
        $region54: #{tpu_custom_call.1} parent=51 // pred_check_branch
          %455 = sbr.rel (%p453) target = $region56
        $region55: #{tpu_custom_call.1} parent=51 // pred_region
          %s456 = sand.u32 %s30, 1
          %s457 = scalar_lea.sflag [#allocation5], %s456
          %s458 = sand.u32 %s52, 1
          %s459 = smul.addr %s458, 16
          %s460 = scalar_lea.vmem [#allocation4], %s459
          %s462 = ssub.s32 256, 256
          %463 = vsyncadd %s457, %s462
          %s464 = smul.addr %s37, 2
          %s465 = smul.addr %s464, 128
          %s466 = scalar_lea.hbm %s0, %s465
          %s467 = sshll.u32 %s460, 4
          %s468 = int_to_ptr.vmem [resolvable:$true] %s467
          %473 = dma.hbm_to_vmem [thread:$0]  %s466, 256, %s468, %s457, 128, 128, 8
        $region56: #{tpu_custom_call.1} parent=51 // pred_fallthru
          _
        // Predicated region
        $region57: #{tpu_custom_call.1} parent=51 // pred_check
          %p474 = pneg %p88
        $region58: #{tpu_custom_call.1} parent=51 // pred_check_branch
          %476 = sbr.rel (%p474) target = $region60
        $region59: #{tpu_custom_call.1} parent=51 // pred_region
          %s477 = sand.u32 %s30, 1
          %s478 = scalar_lea.sflag [#allocation8], %s477
          %s479 = sand.u32 %s78, 1
          %s480 = smul.addr %s479, 16
          %s481 = scalar_lea.vmem [#allocation7], %s480
          %s483 = ssub.s32 256, 256
          %484 = vsyncadd %s478, %s483
          %s485 = smul.addr %s37, 2
          %s486 = smul.addr %s485, 128
          %s487 = scalar_lea.hbm %s1, %s486
          %s488 = sshll.u32 %s481, 4
          %s489 = int_to_ptr.vmem [resolvable:$true] %s488
          %494 = dma.hbm_to_vmem [thread:$0]  %s487, 256, %s489, %s478, 128, 128, 8
        $region60: #{tpu_custom_call.1} parent=51 // pred_fallthru
          _
        // Predicated region
        $region61: #{tpu_custom_call.1} parent=51 // pred_check
          %p495 = pneg %p282
        $region62: #{tpu_custom_call.1} parent=51 // pred_check_branch
          %497 = sbr.rel (%p495) target = $region64
        $region63: #{tpu_custom_call.1} parent=51 // pred_region
          %s498 = sand.u32 %s30, 1
          %s499 = scalar_lea.sflag [#allocation5], %s498
          %s500 = sand.u32 %s272, 1
          %s501 = smul.addr %s500, 128
          %s502 = scalar_lea.vmem [#allocation12], %s501
          %s504 = ssub.s32 2048, 2048
          %505 = vsyncadd %s499, %s504
          %s506 = smul.addr %s38, 128
          %s507 = scalar_lea.hbm %s10, %s506
          %s508 = sshll.u32 %s502, 4
          %s509 = int_to_ptr.vmem [resolvable:$true] %s508
          %514 = dma.hbm_to_vmem [thread:$0]  %s507, 2048, %s509, %s499, 256, 128, 8
        $region64: #{tpu_custom_call.1} parent=51 // pred_fallthru
          _
        // Predicated region
        $region65: #{tpu_custom_call.1} parent=51 // pred_check
          %p515 = pneg %p308
        $region66: #{tpu_custom_call.1} parent=51 // pred_check_branch
          %517 = sbr.rel (%p515) target = $region68
        $region67: #{tpu_custom_call.1} parent=51 // pred_region
          %p518 = scmp.lt.s32.totalorder %s38, 1
          %s519 = scalar_select %p518, %s38, 1
          %s520 = scalar_lea.vmem %s11, %s519
        $region68: #{tpu_custom_call.1} parent=51 // pred_fallthru
          _
        // Predicated region
        $region69: #{tpu_custom_call.1} parent=51 // pred_check
          %p521 = pneg %p334
        $region70: #{tpu_custom_call.1} parent=51 // pred_check_branch
          %523 = sbr.rel (%p521) target = $region72
        $region71: #{tpu_custom_call.1} parent=51 // pred_region
          %s524 = sand.u32 %s30, 1
          %s525 = scalar_lea.sflag [#allocation8], %s524
          %s526 = sand.u32 %s324, 1
          %s527 = smul.addr %s526, 128
          %s528 = scalar_lea.vmem [#allocation13], %s527
          %s529 = smul.u32 16, %s38
          %s531 = ssub.s32 2048, 2048
          %532 = vsyncadd %s525, %s531
          %s533 = smul.addr %s529, 128
          %s534 = scalar_lea.hbm %s12, %s533
          %s535 = sshll.u32 %s528, 4
          %s536 = int_to_ptr.vmem [resolvable:$true] %s535
          %541 = dma.hbm_to_vmem [thread:$0]  %s534, 2048, %s536, %s525, 128, 128, 8
        $region72: #{tpu_custom_call.1} parent=51 // pred_fallthru
          _
      $region52: #{tpu_custom_call.1} parent=5 // pred_fallthru
        _
      %p542 = scmp.le.s32.totalorder 1, %s30
      %p543 = scmp.lt.s32.totalorder %s30, 9
      %p544 = pnand %p542, %p543
      %p545 = pneg %p544
      // Predicated region
      $region73: #{tpu_custom_call.1} parent=5 // pred_check
        _
      $region74: #{tpu_custom_call.1} parent=5 // pred_check_branch
        %547 = sbr.rel (%p544) target = $region76
      $region75: #{tpu_custom_call.1} parent=5 // pred_region
        %s548 = ssub.s32 %s30, 1
        %s549 = sand.u32 %s35, 1
        %s550 = scalar_lea.sflag [#allocation5], %s549
        %s551 = sand.u32 %s55, 1
        %s552 = smul.addr %s551, 16
        %s553 = scalar_lea.vmem [#allocation4], %s552
        // Predicated region
        $region77: #{tpu_custom_call.1} parent=75 // pred_check
          %p554 = pneg %p68
        $region78: #{tpu_custom_call.1} parent=75 // pred_check_branch
          %556 = sbr.rel (%p554) target = $region80
        $region79: #{tpu_custom_call.1} parent=75 // pred_region
          %557 = dma.done %s550, 256
        $region80: #{tpu_custom_call.1} parent=75 // pred_fallthru
          _
        %s558 = sand.u32 %s35, 1
        %s559 = scalar_lea.sflag [#allocation8], %s558
        %s560 = sand.u32 %s81, 1
        %s561 = smul.addr %s560, 16
        %s562 = scalar_lea.vmem [#allocation7], %s561
        // Predicated region
        $region81: #{tpu_custom_call.1} parent=75 // pred_check
          %p563 = pneg %p94
        $region82: #{tpu_custom_call.1} parent=75 // pred_check_branch
          %565 = sbr.rel (%p563) target = $region84
        $region83: #{tpu_custom_call.1} parent=75 // pred_region
          %566 = dma.done %s559, 256
        $region84: #{tpu_custom_call.1} parent=75 // pred_fallthru
          _
        // Predicated region
        $region85: #{tpu_custom_call.1} parent=75 // pred_check
          %p567 = pneg %p157
        $region86: #{tpu_custom_call.1} parent=75 // pred_check_branch
          %569 = sbr.rel (%p567) target = $region88
        $region87: #{tpu_custom_call.1} parent=75 // pred_region
          %570 = dma.done [#allocation8], 6144
        $region88: #{tpu_custom_call.1} parent=75 // pred_fallthru
          _
        // Predicated region
        $region89: #{tpu_custom_call.1} parent=75 // pred_check
          %p571 = pneg %p199
        $region90: #{tpu_custom_call.1} parent=75 // pred_check_branch
          %573 = sbr.rel (%p571) target = $region92
        $region91: #{tpu_custom_call.1} parent=75 // pred_region
          %574 = dma.done [#allocation11], 2048
        $region92: #{tpu_custom_call.1} parent=75 // pred_fallthru
          _
        %s575 = sand.u32 %s35, 1
        %s576 = scalar_lea.sflag [#allocation5], %s575
        %s577 = sand.u32 %s275, 1
        %s578 = smul.addr %s577, 128
        %s579 = scalar_lea.vmem [#allocation12], %s578
        // Predicated region
        $region93: #{tpu_custom_call.1} parent=75 // pred_check
          %p580 = pneg %p288
        $region94: #{tpu_custom_call.1} parent=75 // pred_check_branch
          %582 = sbr.rel (%p580) target = $region96
        $region95: #{tpu_custom_call.1} parent=75 // pred_region
          %583 = dma.done %s576, 2048
        $region96: #{tpu_custom_call.1} parent=75 // pred_fallthru
          _
        %s584 = sand.u32 %s35, 1
        %s585 = scalar_lea.sflag [#allocation8], %s584
        %s586 = sand.u32 %s327, 1
        %s587 = smul.addr %s586, 128
        %s588 = scalar_lea.vmem [#allocation13], %s587
        // Predicated region
        $region97: #{tpu_custom_call.1} parent=75 // pred_check
          %p589 = pneg %p340
        $region98: #{tpu_custom_call.1} parent=75 // pred_check_branch
          %591 = sbr.rel (%p589) target = $region100
        $region99: #{tpu_custom_call.1} parent=75 // pred_region
          %592 = dma.done %s585, 2048
        $region100: #{tpu_custom_call.1} parent=75 // pred_fallthru
          _
        %s593 = sand.u32 %s35, 1
        %s594 = scalar_lea.sflag [#allocation5], %s593
        %s595 = sand.u32 %s55, 1
        %s596 = smul.addr %s595, 16
        %s597 = scalar_lea.vmem [#allocation4], %s596
        %p598 = pneg %p68
        %p599 = pneg %p65
        %s600 = sand.u32 %s35, 1
        %s601 = scalar_lea.sflag [#allocation8], %s600
        %s602 = sand.u32 %s81, 1
        %s603 = smul.addr %s602, 16
        %s604 = scalar_lea.vmem [#allocation7], %s603
        %p605 = pneg %p94
        %p606 = pneg %p91
        %p607 = pneg %p115
        %p608 = pneg %p112
        %p609 = pneg %p136
        %p610 = pneg %p133
        %p611 = pneg %p157
        %p612 = pneg %p154
        %p613 = pneg %p178
        %p614 = pneg %p175
        %p615 = pneg %p199
        %p616 = pneg %p196
        %p617 = pneg %p220
        %p618 = pneg %p217
        %p619 = pneg %p241
        %p620 = pneg %p238
        %p621 = pneg %p262
        %p622 = pneg %p259
        %s623 = sand.u32 %s35, 1
        %s624 = scalar_lea.sflag [#allocation5], %s623
        %s625 = sand.u32 %s275, 1
        %s626 = smul.addr %s625, 128
        %s627 = scalar_lea.vmem [#allocation12], %s626
        %p628 = pneg %p288
        %p629 = pneg %p285
        %p630 = scmp.lt.s32.totalorder %s40, 1
        %s631 = scalar_select %p630, %s40, 1
        %s632 = scalar_lea.vmem %s11, %s631
        %p633 = pneg %p314
        %p634 = pneg %p311
        %s635 = sand.u32 %s35, 1
        %s636 = scalar_lea.sflag [#allocation8], %s635
        %s637 = sand.u32 %s327, 1
        %s638 = smul.addr %s637, 128
        %s639 = scalar_lea.vmem [#allocation13], %s638
        %p640 = pneg %p340
        %p641 = pneg %p337
        %p642 = pneg %p361
        %p643 = pneg %p358
        %p644 = pneg %p387
        %p645 = pneg %p384
        %s646 = sand.u32 %s374, 1
        %s647 = scalar_lea.sflag [#allocation6], %s646
        %s648 = sand.u32 %s374, 1
        %s649 = smul.addr %s648, 16
        %s650 = scalar_lea.vmem [#allocation14], %s649
        %p651 = scmp.lt.s32.totalorder %s40, 1
        %s652 = scalar_select %p651, %s40, 1
        %s653 = scalar_lea.vmem %s11, %s652
        %s654 = smul.u32 16, %s40
        %p655 = scmp.eq.s32.totalorder %s40, 0
        // Predicated region
        $region101: #{tpu_custom_call.1} parent=75 // pred_check
          %p656 = pneg %p655
        $region102: #{tpu_custom_call.1} parent=75 // pred_check_branch
          %658 = sbr.rel (%p656) target = $region104
        $region103: #{tpu_custom_call.1} parent=75 // pred_region
          %v659 = vld [vmem:[%s553] sm:$0xff]
          %v660 = vld [vmem:[%s553 + $0x8] sm:$0xff]
          %v661 = vld [vmem:[%s562] sm:$0xff]
          %v662 = vld [vmem:[%s562 + $0x8] sm:$0xff]
          %v663 = vld [vmem:[%s2] sm:$0x1]
          %v664 = vld [vmem:[%s3] sm:$0x1]
          %665 = vadd.xlane.f32.xlu0 %v659
          %v666 = vpop.xlane.xlu0 %665
          %667 = vadd.xlane.f32.xlu0 %v660
          %v668 = vpop.xlane.xlu0 %667
          %v669 = vrcp.pop 128.0
          %v670 = vmul.f32 %v666, %v669
          %v671 = vmul.f32 %v668, %v669
          %v672 = vsub.f32 %v659, %v670
          %v673 = vsub.f32 %v660, %v671
          %v674 = vmul.f32 %v672, %v672
          %v675 = vmul.f32 %v673, %v673
          %676 = vadd.xlane.f32.xlu0 %v674
          %v677 = vpop.xlane.xlu0 %676
          %678 = vadd.xlane.f32.xlu0 %v675
          %v679 = vpop.xlane.xlu0 %678
          %v680 = vrcp.pop 127.0
          %v681 = vmul.f32 %v677, %v680
          %v682 = vmul.f32 %v679, %v680
          %v683 = vrsqrt.pop %v681
          %v684 = vmul.f32 %v681, %v683
          %vm685 = vcmp.eq.f32.partialorder %v681, inf
          %v686 = vsel %vm685, %v681, %v684
          %vm687 = vcmp.eq.f32.partialorder %v681, 0.0
          %v688 = vand.u32 %v681, 2147483648
          %v689 = vsel %vm687, %v688, %v686
          %v690 = vrsqrt.pop %v682
          %v691 = vmul.f32 %v682, %v690
          %vm692 = vcmp.eq.f32.partialorder %v682, inf
          %v693 = vsel %vm692, %v682, %v691
          %vm694 = vcmp.eq.f32.partialorder %v682, 0.0
          %v695 = vand.u32 %v682, 2147483648
          %v696 = vsel %vm694, %v695, %v693
          %v697 = vadd.f32 %v689, 1e-06
          %v698 = vadd.f32 %v696, 1e-06
          %v700 = vlaneseq
          %v701 = vshrl.u32 %v700, 7
          %v702 = vsub.s32 0, %v701
          %v703 = vrot.slane %v663, %v702
          %v705 = vmul.f32 %v703, %v672
          %v706 = vmul.f32 %v703, %v673
          %v707 = vrcp.pop %v697
          %v708 = vmul.f32 %v705, %v707
          %v709 = vrcp.pop %v698
          %v710 = vmul.f32 %v706, %v709
          %v712 = vlaneseq
          %v713 = vshrl.u32 %v712, 7
          %v714 = vsub.s32 0, %v713
          %v715 = vrot.slane %v664, %v714
          %v717 = vadd.f32 %v708, %v715
          %v718 = vadd.f32 %v710, %v715
          %v719 = vld [vmem:[#allocation9] sm:$0xff]
          %v720 = vld [vmem:[#allocation9 + $0x8] sm:$0xff]
          %v721 = vld [vmem:[#allocation9 + $0x10] sm:$0xff]
          %v722 = vld [vmem:[#allocation9 + $0x18] sm:$0xff]
          %v723 = vld [vmem:[#allocation9 + $0x20] sm:$0xff]
          %v724 = vld [vmem:[#allocation9 + $0x28] sm:$0xff]
          %v725 = vld [vmem:[#allocation9 + $0x30] sm:$0xff]
          %v726 = vld [vmem:[#allocation9 + $0x38] sm:$0xff]
          %v727 = vld [vmem:[#allocation9 + $0x40] sm:$0xff]
          %v728 = vld [vmem:[#allocation9 + $0x48] sm:$0xff]
          %v729 = vld [vmem:[#allocation9 + $0x50] sm:$0xff]
          %v730 = vld [vmem:[#allocation9 + $0x58] sm:$0xff]
          %v731 = vld [vmem:[#allocation9 + $0x60] sm:$0xff]
          %v732 = vld [vmem:[#allocation9 + $0x68] sm:$0xff]
          %v733 = vld [vmem:[#allocation9 + $0x70] sm:$0xff]
          %v734 = vld [vmem:[#allocation9 + $0x78] sm:$0xff]
          %v735 = vld [vmem:[#allocation9 + $0x80] sm:$0xff]
          %v736 = vld [vmem:[#allocation9 + $0x88] sm:$0xff]
          %v737 = vld [vmem:[#allocation9 + $0x90] sm:$0xff]
          %v738 = vld [vmem:[#allocation9 + $0x98] sm:$0xff]
          %v739 = vld [vmem:[#allocation9 + $0xa0] sm:$0xff]
          %v740 = vld [vmem:[#allocation9 + $0xa8] sm:$0xff]
          %v741 = vld [vmem:[#allocation9 + $0xb0] sm:$0xff]
          %v742 = vld [vmem:[#allocation9 + $0xb8] sm:$0xff]
          %v743 = vld [vmem:[#allocation9 + $0xc0] sm:$0xff]
          %v744 = vld [vmem:[#allocation9 + $0xc8] sm:$0xff]
          %v745 = vld [vmem:[#allocation9 + $0xd0] sm:$0xff]
          %v746 = vld [vmem:[#allocation9 + $0xd8] sm:$0xff]
          %v747 = vld [vmem:[#allocation9 + $0xe0] sm:$0xff]
          %v748 = vld [vmem:[#allocation9 + $0xe8] sm:$0xff]
          %v749 = vld [vmem:[#allocation9 + $0xf0] sm:$0xff]
          %v750 = vld [vmem:[#allocation9 + $0xf8] sm:$0xff]
          %v751 = vld [vmem:[#allocation9 + $0x100] sm:$0xff]
          %v752 = vld [vmem:[#allocation9 + $0x108] sm:$0xff]
          %v753 = vld [vmem:[#allocation9 + $0x110] sm:$0xff]
          %v754 = vld [vmem:[#allocation9 + $0x118] sm:$0xff]
          %v755 = vld [vmem:[#allocation9 + $0x120] sm:$0xff]
          %v756 = vld [vmem:[#allocation9 + $0x128] sm:$0xff]
          %v757 = vld [vmem:[#allocation9 + $0x130] sm:$0xff]
          %v758 = vld [vmem:[#allocation9 + $0x138] sm:$0xff]
          %v759 = vld [vmem:[#allocation9 + $0x140] sm:$0xff]
          %v760 = vld [vmem:[#allocation9 + $0x148] sm:$0xff]
          %v761 = vld [vmem:[#allocation9 + $0x150] sm:$0xff]
          %v762 = vld [vmem:[#allocation9 + $0x158] sm:$0xff]
          %v763 = vld [vmem:[#allocation9 + $0x160] sm:$0xff]
          %v764 = vld [vmem:[#allocation9 + $0x168] sm:$0xff]
          %v765 = vld [vmem:[#allocation9 + $0x170] sm:$0xff]
          %v766 = vld [vmem:[#allocation9 + $0x178] sm:$0xff]
          %v767 = vld [vmem:[%s5] sm:$0x7]
          %v769 = vlaneseq
          %v770 = vshrl.u32 %v769, 7
          %v771 = vsub.s32 0, %v770
          %v772 = vrot.slane %v767, %v771
          %v773 = vlaneseq
          %v774 = vshrl.u32 %v773, 7
          %v775 = vsub.s32 1, %v774
          %v776 = vrot.slane %v767, %v775
          %v777 = vlaneseq
          %v778 = vshrl.u32 %v777, 7
          %v779 = vsub.s32 2, %v778
          %v780 = vrot.slane %v767, %v779
          %784 = vmatprep.subr.mxu0 %v720
          %785 = vmatpush1.msra.mxu0 %v719
          %786 = vmatprep.subr.mxu0 %v723
          %787 = vmatpush1.msra.mxu0 %v722
          %788 = vmatprep.subr.mxu0 %v726
          %789 = vmatpush1.msra.mxu0 %v725
          %790 = vmatprep.subr.mxu0 %v729
          %791 = vmatpush1.msra.mxu0 %v728
          %792 = vmatprep.subr.mxu0 %v732
          %793 = vmatpush1.msra.mxu0 %v731
          %794 = vmatprep.subr.mxu0 %v735
          %795 = vmatpush1.msra.mxu0 %v734
          %796 = vmatprep.subr.mxu0 %v738
          %797 = vmatpush1.msra.mxu0 %v737
          %798 = vmatprep.subr.mxu0 %v741
          %799 = vmatpush1.msra.mxu0 %v740
          %800 = vmatprep.subr.mxu0 %v744
          %801 = vmatpush1.msra.mxu0 %v743
          %802 = vmatprep.subr.mxu0 %v747
          %803 = vmatpush1.msra.mxu0 %v746
          %804 = vmatprep.subr.mxu0 %v750
          %805 = vmatpush1.msra.mxu0 %v749
          %806 = vmatprep.subr.mxu0 %v753
          %807 = vmatpush1.msra.mxu0 %v752
          %808 = vmatprep.subr.mxu0 %v756
          %809 = vmatpush1.msra.mxu0 %v755
          %810 = vmatprep.subr.mxu0 %v759
          %811 = vmatpush1.msra.mxu0 %v758
          %812 = vmatprep.subr.mxu0 %v762
          %813 = vmatpush1.msra.mxu0 %v761
          %814 = vmatprep.subr.mxu0 %v765
          %815 = vmatpush1.msra.mxu0 %v764
          %816 = vmatprep.subr.mxu0 0.0
          %817 = vmatpush1.msra.mxu0 0.0
          %818 = vmatprep.subr.mxu0 0.0
          %819 = vmatpush1.msra.mxu0 0.0
          %820 = vmatprep.subr.mxu0 0.0
          %821 = vmatpush1.msra.mxu0 0.0
          %822 = vmatprep.subr.mxu0 0.0
          %823 = vmatpush1.msra.mxu0 0.0
          %824 = vmatprep.subr.mxu0 0.0
          %825 = vmatpush1.msra.mxu0 0.0
          %826 = vmatprep.subr.mxu0 0.0
          %827 = vmatpush1.msra.mxu0 0.0
          %828 = vmatprep.subr.mxu0 0.0
          %829 = vmatpush1.msra.mxu0 0.0
          %830 = vmatprep.subr.mxu0 0.0
          %831 = vmatpush1.msra.mxu0 0.0
          %832 = vmatprep.subr.mxu0 0.0
          %833 = vmatpush1.msra.mxu0 0.0
          %834 = vmatprep.subr.mxu0 0.0
          %835 = vmatpush1.msra.mxu0 0.0
          %836 = vmatprep.subr.mxu0 0.0
          %837 = vmatpush1.msra.mxu0 0.0
          %838 = vmatprep.subr.mxu0 0.0
          %839 = vmatpush1.msra.mxu0 0.0
          %840 = vmatprep.subr.mxu0 0.0
          %841 = vmatpush1.msra.mxu0 0.0
          %842 = vmatprep.subr.mxu0 0.0
          %843 = vmatpush1.msra.mxu0 0.0
          %844 = vmatprep.subr.mxu0 0.0
          %845 = vmatpush1.msra.mxu0 0.0
          %846 = vmatprep.subr.mxu0 0.0
          %847 = vmatpush1.msra.mxu0 0.0
          %848 = vmatprep.mubr.f32.mxu0 0.0
          %849 = vmatmul.mubr.f32.gmra.mrb[0].mxu0 %v717
          %v850 = vpop.f32.mrb[0].mxu0
          %v851 = vadd.f32 %v772, %v850
          %v852 = vpop.f32.mrb[0].mxu0
          %v853 = vadd.f32 %v776, %v852
          %854 = vmatprep.mubr.f32.mxu0 0.0
          %855 = vmatmul.mubr.f32.gmra.mrb[0].mxu0 %v718
          %v856 = vpop.f32.mrb[0].mxu0
          %v857 = vadd.f32 %v772, %v856
          %v858 = vpop.f32.mrb[0].mxu0
          %v859 = vadd.f32 %v776, %v858
          %860 = vdwg.mxu0
          %861 = vmatprep.subr.mxu0 0.0
          %862 = vmatpush1.msra.mxu0 %v721
          %863 = vmatprep.subr.mxu0 0.0
          %864 = vmatpush1.msra.mxu0 %v724
          %865 = vmatprep.subr.mxu0 0.0
          %866 = vmatpush1.msra.mxu0 %v727
          %867 = vmatprep.subr.mxu0 0.0
          %868 = vmatpush1.msra.mxu0 %v730
          %869 = vmatprep.subr.mxu0 0.0
          %870 = vmatpush1.msra.mxu0 %v733
          %871 = vmatprep.subr.mxu0 0.0
          %872 = vmatpush1.msra.mxu0 %v736
          %873 = vmatprep.subr.mxu0 0.0
          %874 = vmatpush1.msra.mxu0 %v739
          %875 = vmatprep.subr.mxu0 0.0
          %876 = vmatpush1.msra.mxu0 %v742
          %877 = vmatprep.subr.mxu0 0.0
          %878 = vmatpush1.msra.mxu0 %v745
          %879 = vmatprep.subr.mxu0 0.0
          %880 = vmatpush1.msra.mxu0 %v748
          %881 = vmatprep.subr.mxu0 0.0
          %882 = vmatpush1.msra.mxu0 %v751
          %883 = vmatprep.subr.mxu0 0.0
          %884 = vmatpush1.msra.mxu0 %v754
          %885 = vmatprep.subr.mxu0 0.0
          %886 = vmatpush1.msra.mxu0 %v757
          %887 = vmatprep.subr.mxu0 0.0
          %888 = vmatpush1.msra.mxu0 %v760
          %889 = vmatprep.subr.mxu0 0.0
          %890 = vmatpush1.msra.mxu0 %v763
          %891 = vmatprep.subr.mxu0 0.0
          %892 = vmatpush1.msra.mxu0 %v766
          %893 = vmatprep.subr.mxu0 0.0
          %894 = vmatpush1.msra.mxu0 0.0
          %895 = vmatprep.subr.mxu0 0.0
          %896 = vmatpush1.msra.mxu0 0.0
          %897 = vmatprep.subr.mxu0 0.0
          %898 = vmatpush1.msra.mxu0 0.0
          %899 = vmatprep.subr.mxu0 0.0
          %900 = vmatpush1.msra.mxu0 0.0
          %901 = vmatprep.subr.mxu0 0.0
          %902 = vmatpush1.msra.mxu0 0.0
          %903 = vmatprep.subr.mxu0 0.0
          %904 = vmatpush1.msra.mxu0 0.0
          %905 = vmatprep.subr.mxu0 0.0
          %906 = vmatpush1.msra.mxu0 0.0
          %907 = vmatprep.subr.mxu0 0.0
          %908 = vmatpush1.msra.mxu0 0.0
          %909 = vmatprep.subr.mxu0 0.0
          %910 = vmatpush1.msra.mxu0 0.0
          %911 = vmatprep.subr.mxu0 0.0
          %912 = vmatpush1.msra.mxu0 0.0
          %913 = vmatprep.subr.mxu0 0.0
          %914 = vmatpush1.msra.mxu0 0.0
          %915 = vmatprep.subr.mxu0 0.0
          %916 = vmatpush1.msra.mxu0 0.0
          %917 = vmatprep.subr.mxu0 0.0
          %918 = vmatpush1.msra.mxu0 0.0
          %919 = vmatprep.subr.mxu0 0.0
          %920 = vmatpush1.msra.mxu0 0.0
          %921 = vmatprep.subr.mxu0 0.0
          %922 = vmatpush1.msra.mxu0 0.0
          %923 = vmatprep.subr.mxu0 0.0
          %924 = vmatpush1.msra.mxu0 0.0
          %925 = vmatprep.mubr.f32.mxu0 0.0
          %926 = vmatmul.mubr.f32.gmra.mrb[0].mxu0 %v717
          %v927 = vpop.f32.mrb[0].mxu0
          %v928 = vadd.f32 %v780, %v927
          %v929 = vpop.f32.mrb[0].mxu0
          %930 = vmatprep.mubr.f32.mxu0 0.0
          %931 = vmatmul.mubr.f32.gmra.mrb[0].mxu0 %v718
          %v932 = vpop.f32.mrb[0].mxu0
          %v933 = vadd.f32 %v780, %v932
          %v934 = vpop.f32.mrb[0].mxu0
          %935 = vdwg.mxu0
          %938 = vrot.lane.b32.xlu0 %v851, 96
          %v939 = vpop.permute.xlu0 %938
          %940 = vrot.lane.b32.xlu0 %v857, 96
          %v941 = vpop.permute.xlu0 %940
          %942 = vrot.lane.b32.xlu0 %v851, 64
          %v943 = vpop.permute.xlu0 %942
          %944 = vrot.lane.b32.xlu0 %v857, 64
          %v945 = vpop.permute.xlu0 %944
          %946 = vrot.lane.b32.xlu0 %v851, 32
          %v947 = vpop.permute.xlu0 %946
          %948 = vrot.lane.b32.xlu0 %v857, 32
          %v949 = vpop.permute.xlu0 %948
          %952 = vrot.lane.b32.xlu0 %v853, 96
          %v953 = vpop.permute.xlu0 %952
          %954 = vrot.lane.b32.xlu0 %v859, 96
          %v955 = vpop.permute.xlu0 %954
          %956 = vrot.lane.b32.xlu0 %v853, 64
          %v957 = vpop.permute.xlu0 %956
          %958 = vrot.lane.b32.xlu0 %v859, 64
          %v959 = vpop.permute.xlu0 %958
          %960 = vrot.lane.b32.xlu0 %v853, 32
          %v961 = vpop.permute.xlu0 %960
          %962 = vrot.lane.b32.xlu0 %v859, 32
          %v963 = vpop.permute.xlu0 %962
          %966 = vrot.lane.b32.xlu0 %v928, 96
          %v967 = vpop.permute.xlu0 %966
          %968 = vrot.lane.b32.xlu0 %v933, 96
          %v969 = vpop.permute.xlu0 %968
          %972 = vrot.lane.b32.xlu0 %v928, 64
          %v973 = vpop.permute.xlu0 %972
          %974 = vrot.lane.b32.xlu0 %v933, 64
          %v975 = vpop.permute.xlu0 %974
          %978 = vrot.lane.b32.xlu0 %v928, 32
          %v979 = vpop.permute.xlu0 %978
          %980 = vrot.lane.b32.xlu0 %v933, 32
          %v981 = vpop.permute.xlu0 %980
          %vm984 = vcmask 261120
          %v985 = vsel %vm984, %v851, 0
          %v987 = vsel %vm984, %v857, 0
          %v989 = vsel %vm984, %v853, 0
          %v991 = vsel %vm984, %v859, 0
          %993 = vmatprep.subr.mxu0 0.0
          %994 = vmatpush1.xpose.msra.mxu0 %v989
          %995 = vmatprep.subr.mxu0 0.0
          %996 = vmatpush1.xpose.msra.mxu0 %v991
          %997 = vmatprep.subr.mxu0 0.0
          %998 = vmatpush1.xpose.msra.mxu0 0.0
          %999 = vmatprep.subr.mxu0 0.0
          %1000 = vmatpush1.xpose.msra.mxu0 0.0
          %1001 = vmatprep.subr.mxu0 0.0
          %1002 = vmatpush1.xpose.msra.mxu0 0.0
          %1003 = vmatprep.subr.mxu0 0.0
          %1004 = vmatpush1.xpose.msra.mxu0 0.0
          %1005 = vmatprep.subr.mxu0 0.0
          %1006 = vmatpush1.xpose.msra.mxu0 0.0
          %1007 = vmatprep.subr.mxu0 0.0
          %1008 = vmatpush1.xpose.msra.mxu0 0.0
          %1009 = vmatprep.subr.mxu0 0.0
          %1010 = vmatpush1.xpose.msra.mxu0 0.0
          %1011 = vmatprep.subr.mxu0 0.0
          %1012 = vmatpush1.xpose.msra.mxu0 0.0
          %1013 = vmatprep.subr.mxu0 0.0
          %1014 = vmatpush1.xpose.msra.mxu0 0.0
          %1015 = vmatprep.subr.mxu0 0.0
          %1016 = vmatpush1.xpose.msra.mxu0 0.0
          %1017 = vmatprep.subr.mxu0 0.0
          %1018 = vmatpush1.xpose.msra.mxu0 0.0
          %1019 = vmatprep.subr.mxu0 0.0
          %1020 = vmatpush1.xpose.msra.mxu0 0.0
          %1021 = vmatprep.subr.mxu0 0.0
          %1022 = vmatpush1.xpose.msra.mxu0 0.0
          %1023 = vmatprep.subr.mxu0 0.0
          %1024 = vmatpush1.xpose.msra.mxu0 0.0
          %1025 = vmatprep.subr.mxu0 0.0
          %1026 = vmatpush1.xpose.msra.mxu0 0.0
          %1027 = vmatprep.subr.mxu0 0.0
          %1028 = vmatpush1.xpose.msra.mxu0 0.0
          %1029 = vmatprep.subr.mxu0 0.0
          %1030 = vmatpush1.xpose.msra.mxu0 0.0
          %1031 = vmatprep.subr.mxu0 0.0
          %1032 = vmatpush1.xpose.msra.mxu0 0.0
          %1033 = vmatprep.subr.mxu0 0.0
          %1034 = vmatpush1.xpose.msra.mxu0 0.0
          %1035 = vmatprep.subr.mxu0 0.0
          %1036 = vmatpush1.xpose.msra.mxu0 0.0
          %1037 = vmatprep.subr.mxu0 0.0
          %1038 = vmatpush1.xpose.msra.mxu0 0.0
          %1039 = vmatprep.subr.mxu0 0.0
          %1040 = vmatpush1.xpose.msra.mxu0 0.0
          %1041 = vmatprep.subr.mxu0 0.0
          %1042 = vmatpush1.xpose.msra.mxu0 0.0
          %1043 = vmatprep.subr.mxu0 0.0
          %1044 = vmatpush1.xpose.msra.mxu0 0.0
          %1045 = vmatprep.subr.mxu0 0.0
          %1046 = vmatpush1.xpose.msra.mxu0 0.0
          %1047 = vmatprep.subr.mxu0 0.0
          %1048 = vmatpush1.xpose.msra.mxu0 0.0
          %1049 = vmatprep.subr.mxu0 0.0
          %1050 = vmatpush1.xpose.msra.mxu0 0.0
          %1051 = vmatprep.subr.mxu0 0.0
          %1052 = vmatpush1.xpose.msra.mxu0 0.0
          %1053 = vmatprep.subr.mxu0 0.0
          %1054 = vmatpush1.xpose.msra.mxu0 0.0
          %1055 = vmatprep.subr.mxu0 0.0
          %1056 = vmatpush1.xpose.msra.mxu0 0.0
          %1057 = vmatprep.mubr.f32.mxu0 0.0
          %1058 = vmatmul.mubr.f32.gmra.mrb[0].mxu0 %v985
          %v1059 = vpop.f32.mrb[0].mxu0
          %v1060 = vadd.f32 0.0, %v1059
          %v1061 = vpop.f32.mrb[0].mxu0
          %1062 = vmatprep.mubr.f32.mxu0 0.0
          %1063 = vmatmul.mubr.f32.gmra.mrb[0].mxu0 %v987
          %v1064 = vpop.f32.mrb[0].mxu0
          %v1065 = vadd.f32 0.0, %v1064
          %v1066 = vpop.f32.mrb[0].mxu0
          %1067 = vdwg.mxu0
          %v1068 = vsel %vm984, %v939, 0
          %v1070 = vsel %vm984, %v941, 0
          %v1072 = vsel %vm984, %v953, 0
          %v1074 = vsel %vm984, %v955, 0
          %1076 = vmatprep.subr.mxu0 0.0
          %1077 = vmatpush1.xpose.msra.mxu0 %v1072
          %1078 = vmatprep.subr.mxu0 0.0
          %1079 = vmatpush1.xpose.msra.mxu0 %v1074
          %1080 = vmatprep.subr.mxu0 0.0
          %1081 = vmatpush1.xpose.msra.mxu0 0.0
          %1082 = vmatprep.subr.mxu0 0.0
          %1083 = vmatpush1.xpose.msra.mxu0 0.0
          %1084 = vmatprep.subr.mxu0 0.0
          %1085 = vmatpush1.xpose.msra.mxu0 0.0
          %1086 = vmatprep.subr.mxu0 0.0
          %1087 = vmatpush1.xpose.msra.mxu0 0.0
          %1088 = vmatprep.subr.mxu0 0.0
          %1089 = vmatpush1.xpose.msra.mxu0 0.0
          %1090 = vmatprep.subr.mxu0 0.0
          %1091 = vmatpush1.xpose.msra.mxu0 0.0
          %1092 = vmatprep.subr.mxu0 0.0
          %1093 = vmatpush1.xpose.msra.mxu0 0.0
          %1094 = vmatprep.subr.mxu0 0.0
          %1095 = vmatpush1.xpose.msra.mxu0 0.0
          %1096 = vmatprep.subr.mxu0 0.0
          %1097 = vmatpush1.xpose.msra.mxu0 0.0
          %1098 = vmatprep.subr.mxu0 0.0
          %1099 = vmatpush1.xpose.msra.mxu0 0.0
          %1100 = vmatprep.subr.mxu0 0.0
          %1101 = vmatpush1.xpose.msra.mxu0 0.0
          %1102 = vmatprep.subr.mxu0 0.0
          %1103 = vmatpush1.xpose.msra.mxu0 0.0
          %1104 = vmatprep.subr.mxu0 0.0
          %1105 = vmatpush1.xpose.msra.mxu0 0.0
          %1106 = vmatprep.subr.mxu0 0.0
          %1107 = vmatpush1.xpose.msra.mxu0 0.0
          %1108 = vmatprep.subr.mxu0 0.0
          %1109 = vmatpush1.xpose.msra.mxu0 0.0
          %1110 = vmatprep.subr.mxu0 0.0
          %1111 = vmatpush1.xpose.msra.mxu0 0.0
          %1112 = vmatprep.subr.mxu0 0.0
          %1113 = vmatpush1.xpose.msra.mxu0 0.0
          %1114 = vmatprep.subr.mxu0 0.0
          %1115 = vmatpush1.xpose.msra.mxu0 0.0
          %1116 = vmatprep.subr.mxu0 0.0
          %1117 = vmatpush1.xpose.msra.mxu0 0.0
          %1118 = vmatprep.subr.mxu0 0.0
          %1119 = vmatpush1.xpose.msra.mxu0 0.0
          %1120 = vmatprep.subr.mxu0 0.0
          %1121 = vmatpush1.xpose.msra.mxu0 0.0
          %1122 = vmatprep.subr.mxu0 0.0
          %1123 = vmatpush1.xpose.msra.mxu0 0.0
          %1124 = vmatprep.subr.mxu0 0.0
          %1125 = vmatpush1.xpose.msra.mxu0 0.0
          %1126 = vmatprep.subr.mxu0 0.0
          %1127 = vmatpush1.xpose.msra.mxu0 0.0
          %1128 = vmatprep.subr.mxu0 0.0
          %1129 = vmatpush1.xpose.msra.mxu0 0.0
          %1130 = vmatprep.subr.mxu0 0.0
          %1131 = vmatpush1.xpose.msra.mxu0 0.0
          %1132 = vmatprep.subr.mxu0 0.0
          %1133 = vmatpush1.xpose.msra.mxu0 0.0
          %1134 = vmatprep.subr.mxu0 0.0
          %1135 = vmatpush1.xpose.msra.mxu0 0.0
          %1136 = vmatprep.subr.mxu0 0.0
          %1137 = vmatpush1.xpose.msra.mxu0 0.0
          %1138 = vmatprep.subr.mxu0 0.0
          %1139 = vmatpush1.xpose.msra.mxu0 0.0
          %1140 = vmatprep.mubr.f32.mxu0 0.0
          %1141 = vmatmul.mubr.f32.gmra.mrb[0].mxu0 %v1068
          %v1142 = vpop.f32.mrb[0].mxu0
          %v1143 = vadd.f32 0.0, %v1142
          %v1144 = vpop.f32.mrb[0].mxu0
          %1145 = vmatprep.mubr.f32.mxu0 0.0
          %1146 = vmatmul.mubr.f32.gmra.mrb[0].mxu0 %v1070
          %v1147 = vpop.f32.mrb[0].mxu0
          %v1148 = vadd.f32 0.0, %v1147
          %v1149 = vpop.f32.mrb[0].mxu0
          %1150 = vdwg.mxu0
          %v1151 = vsel %vm984, %v943, 0
          %v1153 = vsel %vm984, %v945, 0
          %v1155 = vsel %vm984, %v957, 0
          %v1157 = vsel %vm984, %v959, 0
          %1159 = vmatprep.subr.mxu0 0.0
          %1160 = vmatpush1.xpose.msra.mxu0 %v1155
          %1161 = vmatprep.subr.mxu0 0.0
          %1162 = vmatpush1.xpose.msra.mxu0 %v1157
          %1163 = vmatprep.subr.mxu0 0.0
          %1164 = vmatpush1.xpose.msra.mxu0 0.0
          %1165 = vmatprep.subr.mxu0 0.0
          %1166 = vmatpush1.xpose.msra.mxu0 0.0
          %1167 = vmatprep.subr.mxu0 0.0
          %1168 = vmatpush1.xpose.msra.mxu0 0.0
          %1169 = vmatprep.subr.mxu0 0.0
          %1170 = vmatpush1.xpose.msra.mxu0 0.0
          %1171 = vmatprep.subr.mxu0 0.0
          %1172 = vmatpush1.xpose.msra.mxu0 0.0
          %1173 = vmatprep.subr.mxu0 0.0
          %1174 = vmatpush1.xpose.msra.mxu0 0.0
          %1175 = vmatprep.subr.mxu0 0.0
          %1176 = vmatpush1.xpose.msra.mxu0 0.0
          %1177 = vmatprep.subr.mxu0 0.0
          %1178 = vmatpush1.xpose.msra.mxu0 0.0
          %1179 = vmatprep.subr.mxu0 0.0
          %1180 = vmatpush1.xpose.msra.mxu0 0.0
          %1181 = vmatprep.subr.mxu0 0.0
          %1182 = vmatpush1.xpose.msra.mxu0 0.0
          %1183 = vmatprep.subr.mxu0 0.0
          %1184 = vmatpush1.xpose.msra.mxu0 0.0
          %1185 = vmatprep.subr.mxu0 0.0
          %1186 = vmatpush1.xpose.msra.mxu0 0.0
          %1187 = vmatprep.subr.mxu0 0.0
          %1188 = vmatpush1.xpose.msra.mxu0 0.0
          %1189 = vmatprep.subr.mxu0 0.0
          %1190 = vmatpush1.xpose.msra.mxu0 0.0
          %1191 = vmatprep.subr.mxu0 0.0
          %1192 = vmatpush1.xpose.msra.mxu0 0.0
          %1193 = vmatprep.subr.mxu0 0.0
          %1194 = vmatpush1.xpose.msra.mxu0 0.0
          %1195 = vmatprep.subr.mxu0 0.0
          %1196 = vmatpush1.xpose.msra.mxu0 0.0
          %1197 = vmatprep.subr.mxu0 0.0
          %1198 = vmatpush1.xpose.msra.mxu0 0.0
          %1199 = vmatprep.subr.mxu0 0.0
          %1200 = vmatpush1.xpose.msra.mxu0 0.0
          %1201 = vmatprep.subr.mxu0 0.0
          %1202 = vmatpush1.xpose.msra.mxu0 0.0
          %1203 = vmatprep.subr.mxu0 0.0
          %1204 = vmatpush1.xpose.msra.mxu0 0.0
          %1205 = vmatprep.subr.mxu0 0.0
          %1206 = vmatpush1.xpose.msra.mxu0 0.0
          %1207 = vmatprep.subr.mxu0 0.0
          %1208 = vmatpush1.xpose.msra.mxu0 0.0
          %1209 = vmatprep.subr.mxu0 0.0
          %1210 = vmatpush1.xpose.msra.mxu0 0.0
          %1211 = vmatprep.subr.mxu0 0.0
          %1212 = vmatpush1.xpose.msra.mxu0 0.0
          %1213 = vmatprep.subr.mxu0 0.0
          %1214 = vmatpush1.xpose.msra.mxu0 0.0
          %1215 = vmatprep.subr.mxu0 0.0
          %1216 = vmatpush1.xpose.msra.mxu0 0.0
          %1217 = vmatprep.subr.mxu0 0.0
          %1218 = vmatpush1.xpose.msra.mxu0 0.0
          %1219 = vmatprep.subr.mxu0 0.0
          %1220 = vmatpush1.xpose.msra.mxu0 0.0
          %1221 = vmatprep.subr.mxu0 0.0
          %1222 = vmatpush1.xpose.msra.mxu0 0.0
          %1223 = vmatprep.mubr.f32.mxu0 0.0
          %1224 = vmatmul.mubr.f32.gmra.mrb[0].mxu0 %v1151
          %v1225 = vpop.f32.mrb[0].mxu0
          %v1226 = vadd.f32 0.0, %v1225
          %v1227 = vpop.f32.mrb[0].mxu0
          %1228 = vmatprep.mubr.f32.mxu0 0.0
          %1229 = vmatmul.mubr.f32.gmra.mrb[0].mxu0 %v1153
          %v1230 = vpop.f32.mrb[0].mxu0
          %v1231 = vadd.f32 0.0, %v1230
          %v1232 = vpop.f32.mrb[0].mxu0
          %1233 = vdwg.mxu0
          %v1234 = vsel %vm984, %v947, 0
          %v1236 = vsel %vm984, %v949, 0
          %v1238 = vsel %vm984, %v961, 0
          %v1240 = vsel %vm984, %v963, 0
          %1242 = vmatprep.subr.mxu0 0.0
          %1243 = vmatpush1.xpose.msra.mxu0 %v1238
          %1244 = vmatprep.subr.mxu0 0.0
          %1245 = vmatpush1.xpose.msra.mxu0 %v1240
          %1246 = vmatprep.subr.mxu0 0.0
          %1247 = vmatpush1.xpose.msra.mxu0 0.0
          %1248 = vmatprep.subr.mxu0 0.0
          %1249 = vmatpush1.xpose.msra.mxu0 0.0
          %1250 = vmatprep.subr.mxu0 0.0
          %1251 = vmatpush1.xpose.msra.mxu0 0.0
          %1252 = vmatprep.subr.mxu0 0.0
          %1253 = vmatpush1.xpose.msra.mxu0 0.0
          %1254 = vmatprep.subr.mxu0 0.0
          %1255 = vmatpush1.xpose.msra.mxu0 0.0
          %1256 = vmatprep.subr.mxu0 0.0
          %1257 = vmatpush1.xpose.msra.mxu0 0.0
          %1258 = vmatprep.subr.mxu0 0.0
          %1259 = vmatpush1.xpose.msra.mxu0 0.0
          %1260 = vmatprep.subr.mxu0 0.0
          %1261 = vmatpush1.xpose.msra.mxu0 0.0
          %1262 = vmatprep.subr.mxu0 0.0
          %1263 = vmatpush1.xpose.msra.mxu0 0.0
          %1264 = vmatprep.subr.mxu0 0.0
          %1265 = vmatpush1.xpose.msra.mxu0 0.0
          %1266 = vmatprep.subr.mxu0 0.0
          %1267 = vmatpush1.xpose.msra.mxu0 0.0
          %1268 = vmatprep.subr.mxu0 0.0
          %1269 = vmatpush1.xpose.msra.mxu0 0.0
          %1270 = vmatprep.subr.mxu0 0.0
          %1271 = vmatpush1.xpose.msra.mxu0 0.0
          %1272 = vmatprep.subr.mxu0 0.0
          %1273 = vmatpush1.xpose.msra.mxu0 0.0
          %1274 = vmatprep.subr.mxu0 0.0
          %1275 = vmatpush1.xpose.msra.mxu0 0.0
          %1276 = vmatprep.subr.mxu0 0.0
          %1277 = vmatpush1.xpose.msra.mxu0 0.0
          %1278 = vmatprep.subr.mxu0 0.0
          %1279 = vmatpush1.xpose.msra.mxu0 0.0
          %1280 = vmatprep.subr.mxu0 0.0
          %1281 = vmatpush1.xpose.msra.mxu0 0.0
          %1282 = vmatprep.subr.mxu0 0.0
          %1283 = vmatpush1.xpose.msra.mxu0 0.0
          %1284 = vmatprep.subr.mxu0 0.0
          %1285 = vmatpush1.xpose.msra.mxu0 0.0
          %1286 = vmatprep.subr.mxu0 0.0
          %1287 = vmatpush1.xpose.msra.mxu0 0.0
          %1288 = vmatprep.subr.mxu0 0.0
          %1289 = vmatpush1.xpose.msra.mxu0 0.0
          %1290 = vmatprep.subr.mxu0 0.0
          %1291 = vmatpush1.xpose.msra.mxu0 0.0
          %1292 = vmatprep.subr.mxu0 0.0
          %1293 = vmatpush1.xpose.msra.mxu0 0.0
          %1294 = vmatprep.subr.mxu0 0.0
          %1295 = vmatpush1.xpose.msra.mxu0 0.0
          %1296 = vmatprep.subr.mxu0 0.0
          %1297 = vmatpush1.xpose.msra.mxu0 0.0
          %1298 = vmatprep.subr.mxu0 0.0
          %1299 = vmatpush1.xpose.msra.mxu0 0.0
          %1300 = vmatprep.subr.mxu0 0.0
          %1301 = vmatpush1.xpose.msra.mxu0 0.0
          %1302 = vmatprep.subr.mxu0 0.0
          %1303 = vmatpush1.xpose.msra.mxu0 0.0
          %1304 = vmatprep.subr.mxu0 0.0
          %1305 = vmatpush1.xpose.msra.mxu0 0.0
          %1306 = vmatprep.mubr.f32.mxu0 0.0
          %1307 = vmatmul.mubr.f32.gmra.mrb[0].mxu0 %v1234
          %v1308 = vpop.f32.mrb[0].mxu0
          %v1309 = vadd.f32 0.0, %v1308
          %v1310 = vpop.f32.mrb[0].mxu0
          %1311 = vmatprep.mubr.f32.mxu0 0.0
          %1312 = vmatmul.mubr.f32.gmra.mrb[0].mxu0 %v1236
          %v1313 = vpop.f32.mrb[0].mxu0
          %v1314 = vadd.f32 0.0, %v1313
          %v1315 = vpop.f32.mrb[0].mxu0
          %1316 = vdwg.mxu0
          %v1317 = vmul.f32 %v1060, 0.17677669
          %v1318 = vmul.f32 %v1065, 0.17677669
          %v1319 = vmul.f32 %v1143, 0.17677669
          %v1320 = vmul.f32 %v1148, 0.17677669
          %v1321 = vmul.f32 %v1226, 0.17677669
          %v1322 = vmul.f32 %v1231, 0.17677669
          %v1323 = vmul.f32 %v1309, 0.17677669
          %v1324 = vmul.f32 %v1314, 0.17677669
          %v1325 = vadd.f32 %v1317, %v661
          %v1326 = vadd.f32 %v1318, %v662
          %v1327 = vadd.f32 %v1319, %v661
          %v1328 = vadd.f32 %v1320, %v662
          %v1329 = vadd.f32 %v1321, %v661
          %v1330 = vadd.f32 %v1322, %v662
          %v1331 = vadd.f32 %v1323, %v661
          %v1332 = vadd.f32 %v1324, %v662
          %vm1333 = vcmask 130048
          %v1334 = vsel %vm1333, %v1325, -inf
          %1335 = vmax.xlane.f32.xlu0 %v1334
          %v1336 = vpop.xlane.xlu0 %1335
          %v1337 = vsel %vm1333, %v1326, -inf
          %1338 = vmax.xlane.f32.xlu0 %v1337
          %v1339 = vpop.xlane.xlu0 %1338
          %v1340 = vsel %vm1333, %v1327, -inf
          %1341 = vmax.xlane.f32.xlu0 %v1340
          %v1342 = vpop.xlane.xlu0 %1341
          %v1343 = vsel %vm1333, %v1328, -inf
          %1344 = vmax.xlane.f32.xlu0 %v1343
          %v1345 = vpop.xlane.xlu0 %1344
          %v1346 = vsel %vm1333, %v1329, -inf
          %1347 = vmax.xlane.f32.xlu0 %v1346
          %v1348 = vpop.xlane.xlu0 %1347
          %v1349 = vsel %vm1333, %v1330, -inf
          %1350 = vmax.xlane.f32.xlu0 %v1349
          %v1351 = vpop.xlane.xlu0 %1350
          %v1352 = vsel %vm1333, %v1331, -inf
          %1353 = vmax.xlane.f32.xlu0 %v1352
          %v1354 = vpop.xlane.xlu0 %1353
          %v1355 = vsel %vm1333, %v1332, -inf
          %1356 = vmax.xlane.f32.xlu0 %v1355
          %v1357 = vpop.xlane.xlu0 %1356
          %v1358 = vsub.f32 %v1325, %v1336
          %v1359 = vsub.f32 %v1326, %v1339
          %v1360 = vsub.f32 %v1327, %v1342
          %v1361 = vsub.f32 %v1328, %v1345
          %v1362 = vsub.f32 %v1329, %v1348
          %v1363 = vsub.f32 %v1330, %v1351
          %v1364 = vsub.f32 %v1331, %v1354
          %v1365 = vsub.f32 %v1332, %v1357
          %v1366 = vmul.f32 %v1358, 1.442695
          %v1367 = vpow.pop %v1366
          %v1368 = vmul.f32 %v1359, 1.442695
          %v1369 = vpow.pop %v1368
          %v1370 = vmul.f32 %v1360, 1.442695
          %v1371 = vpow.pop %v1370
          %v1372 = vmul.f32 %v1361, 1.442695
          %v1373 = vpow.pop %v1372
          %v1374 = vmul.f32 %v1362, 1.442695
          %v1375 = vpow.pop %v1374
          %v1376 = vmul.f32 %v1363, 1.442695
          %v1377 = vpow.pop %v1376
          %v1378 = vmul.f32 %v1364, 1.442695
          %v1379 = vpow.pop %v1378
          %v1380 = vmul.f32 %v1365, 1.442695
          %v1381 = vpow.pop %v1380
          %v1382 = vsel %vm1333, %v1367, 0.0
          %1383 = vadd.xlane.f32.xlu0 %v1382
          %v1384 = vpop.xlane.xlu0 %1383
          %v1385 = vsel %vm1333, %v1369, 0.0
          %1386 = vadd.xlane.f32.xlu0 %v1385
          %v1387 = vpop.xlane.xlu0 %1386
          %v1388 = vsel %vm1333, %v1371, 0.0
          %1389 = vadd.xlane.f32.xlu0 %v1388
          %v1390 = vpop.xlane.xlu0 %1389
          %v1391 = vsel %vm1333, %v1373, 0.0
          %1392 = vadd.xlane.f32.xlu0 %v1391
          %v1393 = vpop.xlane.xlu0 %1392
          %v1394 = vsel %vm1333, %v1375, 0.0
          %1395 = vadd.xlane.f32.xlu0 %v1394
          %v1396 = vpop.xlane.xlu0 %1395
          %v1397 = vsel %vm1333, %v1377, 0.0
          %1398 = vadd.xlane.f32.xlu0 %v1397
          %v1399 = vpop.xlane.xlu0 %1398
          %v1400 = vsel %vm1333, %v1379, 0.0
          %1401 = vadd.xlane.f32.xlu0 %v1400
          %v1402 = vpop.xlane.xlu0 %1401
          %v1403 = vsel %vm1333, %v1381, 0.0
          %1404 = vadd.xlane.f32.xlu0 %v1403
          %v1405 = vpop.xlane.xlu0 %1404
          %v1406 = vrcp.pop %v1384
          %v1407 = vmul.f32 %v1367, %v1406
          %v1408 = vrcp.pop %v1387
          %v1409 = vmul.f32 %v1369, %v1408
          %v1410 = vrcp.pop %v1390
          %v1411 = vmul.f32 %v1371, %v1410
          %v1412 = vrcp.pop %v1393
          %v1413 = vmul.f32 %v1373, %v1412
          %v1414 = vrcp.pop %v1396
          %v1415 = vmul.f32 %v1375, %v1414
          %v1416 = vrcp.pop %v1399
          %v1417 = vmul.f32 %v1377, %v1416
          %v1418 = vrcp.pop %v1402
          %v1419 = vmul.f32 %v1379, %v1418
          %v1420 = vrcp.pop %v1405
          %v1421 = vmul.f32 %v1381, %v1420
          %v1423 = vsel %vm1333, %v1407, 0
          %v1426 = vsel %vm1333, %v1409, 0
          %1428 = vmatprep.subr.mxu0 0.0
          %1429 = vmatpush1.msra.mxu0 %v928
          %1430 = vmatprep.subr.mxu0 0.0
          %1431 = vmatpush1.msra.mxu0 %v933
          %1432 = vmatprep.subr.mxu0 0.0
          %1433 = vmatpush1.msra.mxu0 0.0
          %1434 = vmatprep.subr.mxu0 0.0
          %1435 = vmatpush1.msra.mxu0 0.0
          %1436 = vmatprep.subr.mxu0 0.0
          %1437 = vmatpush1.msra.mxu0 0.0
          %1438 = vmatprep.subr.mxu0 0.0
          %1439 = vmatpush1.msra.mxu0 0.0
          %1440 = vmatprep.subr.mxu0 0.0
          %1441 = vmatpush1.msra.mxu0 0.0
          %1442 = vmatprep.subr.mxu0 0.0
          %1443 = vmatpush1.msra.mxu0 0.0
          %1444 = vmatprep.subr.mxu0 0.0
          %1445 = vmatpush1.msra.mxu0 0.0
          %1446 = vmatprep.subr.mxu0 0.0
          %1447 = vmatpush1.msra.mxu0 0.0
          %1448 = vmatprep.subr.mxu0 0.0
          %1449 = vmatpush1.msra.mxu0 0.0
          %1450 = vmatprep.subr.mxu0 0.0
          %1451 = vmatpush1.msra.mxu0 0.0
          %1452 = vmatprep.subr.mxu0 0.0
          %1453 = vmatpush1.msra.mxu0 0.0
          %1454 = vmatprep.subr.mxu0 0.0
          %1455 = vmatpush1.msra.mxu0 0.0
          %1456 = vmatprep.subr.mxu0 0.0
          %1457 = vmatpush1.msra.mxu0 0.0
          %1458 = vmatprep.subr.mxu0 0.0
          %1459 = vmatpush1.msra.mxu0 0.0
          %1460 = vmatprep.subr.mxu0 0.0
          %1461 = vmatpush1.msra.mxu0 0.0
          %1462 = vmatprep.subr.mxu0 0.0
          %1463 = vmatpush1.msra.mxu0 0.0
          %1464 = vmatprep.subr.mxu0 0.0
          %1465 = vmatpush1.msra.mxu0 0.0
          %1466 = vmatprep.subr.mxu0 0.0
          %1467 = vmatpush1.msra.mxu0 0.0
          %1468 = vmatprep.subr.mxu0 0.0
          %1469 = vmatpush1.msra.mxu0 0.0
          %1470 = vmatprep.subr.mxu0 0.0
          %1471 = vmatpush1.msra.mxu0 0.0
          %1472 = vmatprep.subr.mxu0 0.0
          %1473 = vmatpush1.msra.mxu0 0.0
          %1474 = vmatprep.subr.mxu0 0.0
          %1475 = vmatpush1.msra.mxu0 0.0
          %1476 = vmatprep.subr.mxu0 0.0
          %1477 = vmatpush1.msra.mxu0 0.0
          %1478 = vmatprep.subr.mxu0 0.0
          %1479 = vmatpush1.msra.mxu0 0.0
          %1480 = vmatprep.subr.mxu0 0.0
          %1481 = vmatpush1.msra.mxu0 0.0
          %1482 = vmatprep.subr.mxu0 0.0
          %1483 = vmatpush1.msra.mxu0 0.0
          %1484 = vmatprep.subr.mxu0 0.0
          %1485 = vmatpush1.msra.mxu0 0.0
          %1486 = vmatprep.subr.mxu0 0.0
          %1487 = vmatpush1.msra.mxu0 0.0
          %1488 = vmatprep.subr.mxu0 0.0
          %1489 = vmatpush1.msra.mxu0 0.0
          %1490 = vmatprep.subr.mxu0 0.0
          %1491 = vmatpush1.msra.mxu0 0.0
          %1492 = vmatprep.mubr.f32.mxu0 0.0
          %1493 = vmatmul.mubr.f32.gmra.mrb[0].mxu0 %v1423
          %v1494 = vpop.f32.mrb[0].mxu0
          %v1495 = vadd.f32 0.0, %v1494
          %v1496 = vpop.f32.mrb[0].mxu0
          %1497 = vmatprep.mubr.f32.mxu0 0.0
          %1498 = vmatmul.mubr.f32.gmra.mrb[0].mxu0 %v1426
          %v1499 = vpop.f32.mrb[0].mxu0
          %v1500 = vadd.f32 0.0, %v1499
          %v1501 = vpop.f32.mrb[0].mxu0
          %1502 = vdwg.mxu0
          %v1504 = vsel %vm1333, %v1411, 0
          %v1507 = vsel %vm1333, %v1413, 0
          %1509 = vmatprep.subr.mxu0 0.0
          %1510 = vmatpush1.msra.mxu0 %v967
          %1511 = vmatprep.subr.mxu0 0.0
          %1512 = vmatpush1.msra.mxu0 %v969
          %1513 = vmatprep.subr.mxu0 0.0
          %1514 = vmatpush1.msra.mxu0 0.0
          %1515 = vmatprep.subr.mxu0 0.0
          %1516 = vmatpush1.msra.mxu0 0.0
          %1517 = vmatprep.subr.mxu0 0.0
          %1518 = vmatpush1.msra.mxu0 0.0
          %1519 = vmatprep.subr.mxu0 0.0
          %1520 = vmatpush1.msra.mxu0 0.0
          %1521 = vmatprep.subr.mxu0 0.0
          %1522 = vmatpush1.msra.mxu0 0.0
          %1523 = vmatprep.subr.mxu0 0.0
          %1524 = vmatpush1.msra.mxu0 0.0
          %1525 = vmatprep.subr.mxu0 0.0
          %1526 = vmatpush1.msra.mxu0 0.0
          %1527 = vmatprep.subr.mxu0 0.0
          %1528 = vmatpush1.msra.mxu0 0.0
          %1529 = vmatprep.subr.mxu0 0.0
          %1530 = vmatpush1.msra.mxu0 0.0
          %1531 = vmatprep.subr.mxu0 0.0
          %1532 = vmatpush1.msra.mxu0 0.0
          %1533 = vmatprep.subr.mxu0 0.0
          %1534 = vmatpush1.msra.mxu0 0.0
          %1535 = vmatprep.subr.mxu0 0.0
          %1536 = vmatpush1.msra.mxu0 0.0
          %1537 = vmatprep.subr.mxu0 0.0
          %1538 = vmatpush1.msra.mxu0 0.0
          %1539 = vmatprep.subr.mxu0 0.0
          %1540 = vmatpush1.msra.mxu0 0.0
          %1541 = vmatprep.subr.mxu0 0.0
          %1542 = vmatpush1.msra.mxu0 0.0
          %1543 = vmatprep.subr.mxu0 0.0
          %1544 = vmatpush1.msra.mxu0 0.0
          %1545 = vmatprep.subr.mxu0 0.0
          %1546 = vmatpush1.msra.mxu0 0.0
          %1547 = vmatprep.subr.mxu0 0.0
          %1548 = vmatpush1.msra.mxu0 0.0
          %1549 = vmatprep.subr.mxu0 0.0
          %1550 = vmatpush1.msra.mxu0 0.0
          %1551 = vmatprep.subr.mxu0 0.0
          %1552 = vmatpush1.msra.mxu0 0.0
          %1553 = vmatprep.subr.mxu0 0.0
          %1554 = vmatpush1.msra.mxu0 0.0
          %1555 = vmatprep.subr.mxu0 0.0
          %1556 = vmatpush1.msra.mxu0 0.0
          %1557 = vmatprep.subr.mxu0 0.0
          %1558 = vmatpush1.msra.mxu0 0.0
          %1559 = vmatprep.subr.mxu0 0.0
          %1560 = vmatpush1.msra.mxu0 0.0
          %1561 = vmatprep.subr.mxu0 0.0
          %1562 = vmatpush1.msra.mxu0 0.0
          %1563 = vmatprep.subr.mxu0 0.0
          %1564 = vmatpush1.msra.mxu0 0.0
          %1565 = vmatprep.subr.mxu0 0.0
          %1566 = vmatpush1.msra.mxu0 0.0
          %1567 = vmatprep.subr.mxu0 0.0
          %1568 = vmatpush1.msra.mxu0 0.0
          %1569 = vmatprep.subr.mxu0 0.0
          %1570 = vmatpush1.msra.mxu0 0.0
          %1571 = vmatprep.subr.mxu0 0.0
          %1572 = vmatpush1.msra.mxu0 0.0
          %1573 = vmatprep.mubr.f32.mxu0 0.0
          %1574 = vmatmul.mubr.f32.gmra.mrb[0].mxu0 %v1504
          %v1575 = vpop.f32.mrb[0].mxu0
          %v1576 = vadd.f32 0.0, %v1575
          %v1577 = vpop.f32.mrb[0].mxu0
          %1578 = vmatprep.mubr.f32.mxu0 0.0
          %1579 = vmatmul.mubr.f32.gmra.mrb[0].mxu0 %v1507
          %v1580 = vpop.f32.mrb[0].mxu0
          %v1581 = vadd.f32 0.0, %v1580
          %v1582 = vpop.f32.mrb[0].mxu0
          %1583 = vdwg.mxu0
          %v1585 = vsel %vm1333, %v1415, 0
          %v1588 = vsel %vm1333, %v1417, 0
          %1590 = vmatprep.subr.mxu0 0.0
          %1591 = vmatpush1.msra.mxu0 %v973
          %1592 = vmatprep.subr.mxu0 0.0
          %1593 = vmatpush1.msra.mxu0 %v975
          %1594 = vmatprep.subr.mxu0 0.0
          %1595 = vmatpush1.msra.mxu0 0.0
          %1596 = vmatprep.subr.mxu0 0.0
          %1597 = vmatpush1.msra.mxu0 0.0
          %1598 = vmatprep.subr.mxu0 0.0
          %1599 = vmatpush1.msra.mxu0 0.0
          %1600 = vmatprep.subr.mxu0 0.0
          %1601 = vmatpush1.msra.mxu0 0.0
          %1602 = vmatprep.subr.mxu0 0.0
          %1603 = vmatpush1.msra.mxu0 0.0
          %1604 = vmatprep.subr.mxu0 0.0
          %1605 = vmatpush1.msra.mxu0 0.0
          %1606 = vmatprep.subr.mxu0 0.0
          %1607 = vmatpush1.msra.mxu0 0.0
          %1608 = vmatprep.subr.mxu0 0.0
          %1609 = vmatpush1.msra.mxu0 0.0
          %1610 = vmatprep.subr.mxu0 0.0
          %1611 = vmatpush1.msra.mxu0 0.0
          %1612 = vmatprep.subr.mxu0 0.0
          %1613 = vmatpush1.msra.mxu0 0.0
          %1614 = vmatprep.subr.mxu0 0.0
          %1615 = vmatpush1.msra.mxu0 0.0
          %1616 = vmatprep.subr.mxu0 0.0
          %1617 = vmatpush1.msra.mxu0 0.0
          %1618 = vmatprep.subr.mxu0 0.0
          %1619 = vmatpush1.msra.mxu0 0.0
          %1620 = vmatprep.subr.mxu0 0.0
          %1621 = vmatpush1.msra.mxu0 0.0
          %1622 = vmatprep.subr.mxu0 0.0
          %1623 = vmatpush1.msra.mxu0 0.0
          %1624 = vmatprep.subr.mxu0 0.0
          %1625 = vmatpush1.msra.mxu0 0.0
          %1626 = vmatprep.subr.mxu0 0.0
          %1627 = vmatpush1.msra.mxu0 0.0
          %1628 = vmatprep.subr.mxu0 0.0
          %1629 = vmatpush1.msra.mxu0 0.0
          %1630 = vmatprep.subr.mxu0 0.0
          %1631 = vmatpush1.msra.mxu0 0.0
          %1632 = vmatprep.subr.mxu0 0.0
          %1633 = vmatpush1.msra.mxu0 0.0
          %1634 = vmatprep.subr.mxu0 0.0
          %1635 = vmatpush1.msra.mxu0 0.0
          %1636 = vmatprep.subr.mxu0 0.0
          %1637 = vmatpush1.msra.mxu0 0.0
          %1638 = vmatprep.subr.mxu0 0.0
          %1639 = vmatpush1.msra.mxu0 0.0
          %1640 = vmatprep.subr.mxu0 0.0
          %1641 = vmatpush1.msra.mxu0 0.0
          %1642 = vmatprep.subr.mxu0 0.0
          %1643 = vmatpush1.msra.mxu0 0.0
          %1644 = vmatprep.subr.mxu0 0.0
          %1645 = vmatpush1.msra.mxu0 0.0
          %1646 = vmatprep.subr.mxu0 0.0
          %1647 = vmatpush1.msra.mxu0 0.0
          %1648 = vmatprep.subr.mxu0 0.0
          %1649 = vmatpush1.msra.mxu0 0.0
          %1650 = vmatprep.subr.mxu0 0.0
          %1651 = vmatpush1.msra.mxu0 0.0
          %1652 = vmatprep.subr.mxu0 0.0
          %1653 = vmatpush1.msra.mxu0 0.0
          %1654 = vmatprep.mubr.f32.mxu0 0.0
          %1655 = vmatmul.mubr.f32.gmra.mrb[0].mxu0 %v1585
          %v1656 = vpop.f32.mrb[0].mxu0
          %v1657 = vadd.f32 0.0, %v1656
          %v1658 = vpop.f32.mrb[0].mxu0
          %1659 = vmatprep.mubr.f32.mxu0 0.0
          %1660 = vmatmul.mubr.f32.gmra.mrb[0].mxu0 %v1588
          %v1661 = vpop.f32.mrb[0].mxu0
          %v1662 = vadd.f32 0.0, %v1661
          %v1663 = vpop.f32.mrb[0].mxu0
          %1664 = vdwg.mxu0
          %v1666 = vsel %vm1333, %v1419, 0
          %v1669 = vsel %vm1333, %v1421, 0
          %1671 = vmatprep.subr.mxu0 0.0
          %1672 = vmatpush1.msra.mxu0 %v979
          %1673 = vmatprep.subr.mxu0 0.0
          %1674 = vmatpush1.msra.mxu0 %v981
          %1675 = vmatprep.subr.mxu0 0.0
          %1676 = vmatpush1.msra.mxu0 0.0
          %1677 = vmatprep.subr.mxu0 0.0
          %1678 = vmatpush1.msra.mxu0 0.0
          %1679 = vmatprep.subr.mxu0 0.0
          %1680 = vmatpush1.msra.mxu0 0.0
          %1681 = vmatprep.subr.mxu0 0.0
          %1682 = vmatpush1.msra.mxu0 0.0
          %1683 = vmatprep.subr.mxu0 0.0
          %1684 = vmatpush1.msra.mxu0 0.0
          %1685 = vmatprep.subr.mxu0 0.0
          %1686 = vmatpush1.msra.mxu0 0.0
          %1687 = vmatprep.subr.mxu0 0.0
          %1688 = vmatpush1.msra.mxu0 0.0
          %1689 = vmatprep.subr.mxu0 0.0
          %1690 = vmatpush1.msra.mxu0 0.0
          %1691 = vmatprep.subr.mxu0 0.0
          %1692 = vmatpush1.msra.mxu0 0.0
          %1693 = vmatprep.subr.mxu0 0.0
          %1694 = vmatpush1.msra.mxu0 0.0
          %1695 = vmatprep.subr.mxu0 0.0
          %1696 = vmatpush1.msra.mxu0 0.0
          %1697 = vmatprep.subr.mxu0 0.0
          %1698 = vmatpush1.msra.mxu0 0.0
          %1699 = vmatprep.subr.mxu0 0.0
          %1700 = vmatpush1.msra.mxu0 0.0
          %1701 = vmatprep.subr.mxu0 0.0
          %1702 = vmatpush1.msra.mxu0 0.0
          %1703 = vmatprep.subr.mxu0 0.0
          %1704 = vmatpush1.msra.mxu0 0.0
          %1705 = vmatprep.subr.mxu0 0.0
          %1706 = vmatpush1.msra.mxu0 0.0
          %1707 = vmatprep.subr.mxu0 0.0
          %1708 = vmatpush1.msra.mxu0 0.0
          %1709 = vmatprep.subr.mxu0 0.0
          %1710 = vmatpush1.msra.mxu0 0.0
          %1711 = vmatprep.subr.mxu0 0.0
          %1712 = vmatpush1.msra.mxu0 0.0
          %1713 = vmatprep.subr.mxu0 0.0
          %1714 = vmatpush1.msra.mxu0 0.0
          %1715 = vmatprep.subr.mxu0 0.0
          %1716 = vmatpush1.msra.mxu0 0.0
          %1717 = vmatprep.subr.mxu0 0.0
          %1718 = vmatpush1.msra.mxu0 0.0
          %1719 = vmatprep.subr.mxu0 0.0
          %1720 = vmatpush1.msra.mxu0 0.0
          %1721 = vmatprep.subr.mxu0 0.0
          %1722 = vmatpush1.msra.mxu0 0.0
          %1723 = vmatprep.subr.mxu0 0.0
          %1724 = vmatpush1.msra.mxu0 0.0
          %1725 = vmatprep.subr.mxu0 0.0
          %1726 = vmatpush1.msra.mxu0 0.0
          %1727 = vmatprep.subr.mxu0 0.0
          %1728 = vmatpush1.msra.mxu0 0.0
          %1729 = vmatprep.subr.mxu0 0.0
          %1730 = vmatpush1.msra.mxu0 0.0
          %1731 = vmatprep.subr.mxu0 0.0
          %1732 = vmatpush1.msra.mxu0 0.0
          %1733 = vmatprep.subr.mxu0 0.0
          %1734 = vmatpush1.msra.mxu0 0.0
          %1735 = vmatprep.mubr.f32.mxu0 0.0
          %1736 = vmatmul.mubr.f32.gmra.mrb[0].mxu0 %v1666
          %v1737 = vpop.f32.mrb[0].mxu0
          %v1738 = vadd.f32 0.0, %v1737
          %v1739 = vpop.f32.mrb[0].mxu0
          %1740 = vmatprep.mubr.f32.mxu0 0.0
          %1741 = vmatmul.mubr.f32.gmra.mrb[0].mxu0 %v1669
          %v1742 = vpop.f32.mrb[0].mxu0
          %v1743 = vadd.f32 0.0, %v1742
          %v1744 = vpop.f32.mrb[0].mxu0
          %1745 = vdwg.mxu0
          %1748 = vrot.lane.b32.xlu0 %v1576, 32
          %v1749 = vpop.permute.xlu0 %1748
          %1750 = vrot.lane.b32.xlu0 %v1581, 32
          %v1751 = vpop.permute.xlu0 %1750
          %1756 = vrot.lane.b32.xlu0 %v1657, 64
          %v1757 = vpop.permute.xlu0 %1756
          %1758 = vrot.lane.b32.xlu0 %v1662, 64
          %v1759 = vpop.permute.xlu0 %1758
          %1764 = vrot.lane.b32.xlu0 %v1738, 96
          %v1765 = vpop.permute.xlu0 %1764
          %1766 = vrot.lane.b32.xlu0 %v1743, 96
          %v1767 = vpop.permute.xlu0 %1766
          %v1770 = vsel %vm984, %v1495, %v1749
          %v1771 = vsel %vm984, %v1500, %v1751
          %vm1772 = vcmask 523264
          %v1773 = vsel %vm1772, %v1770, %v1757
          %v1774 = vsel %vm1772, %v1771, %v1759
          %vm1775 = vcmask 785408
          %v1776 = vsel %vm1775, %v1773, %v1765
          %v1777 = vsel %vm1775, %v1774, %v1767
          %v1778 = vld [vmem:[#allocation10] sm:$0xff]
          %v1779 = vld [vmem:[#allocation10 + $0x8] sm:$0xff]
          %v1780 = vld [vmem:[#allocation10 + $0x10] sm:$0xff]
          %v1781 = vld [vmem:[#allocation10 + $0x18] sm:$0xff]
          %v1782 = vld [vmem:[#allocation10 + $0x20] sm:$0xff]
          %v1783 = vld [vmem:[#allocation10 + $0x28] sm:$0xff]
          %v1784 = vld [vmem:[#allocation10 + $0x30] sm:$0xff]
          %v1785 = vld [vmem:[#allocation10 + $0x38] sm:$0xff]
          %v1786 = vld [vmem:[#allocation10 + $0x40] sm:$0xff]
          %v1787 = vld [vmem:[#allocation10 + $0x48] sm:$0xff]
          %v1788 = vld [vmem:[#allocation10 + $0x50] sm:$0xff]
          %v1789 = vld [vmem:[#allocation10 + $0x58] sm:$0xff]
          %v1790 = vld [vmem:[#allocation10 + $0x60] sm:$0xff]
          %v1791 = vld [vmem:[#allocation10 + $0x68] sm:$0xff]
          %v1792 = vld [vmem:[#allocation10 + $0x70] sm:$0xff]
          %v1793 = vld [vmem:[#allocation10 + $0x78] sm:$0xff]
          %v1794 = vld [vmem:[%s7] sm:$0x1]
          %v1796 = vlaneseq
          %v1797 = vshrl.u32 %v1796, 7
          %v1798 = vsub.s32 0, %v1797
          %v1799 = vrot.slane %v1794, %v1798
          %1801 = vmatprep.subr.mxu0 0.0
          %1802 = vmatpush1.msra.mxu0 %v1778
          %1803 = vmatprep.subr.mxu0 0.0
          %1804 = vmatpush1.msra.mxu0 %v1779
          %1805 = vmatprep.subr.mxu0 0.0
          %1806 = vmatpush1.msra.mxu0 %v1780
          %1807 = vmatprep.subr.mxu0 0.0
          %1808 = vmatpush1.msra.mxu0 %v1781
          %1809 = vmatprep.subr.mxu0 0.0
          %1810 = vmatpush1.msra.mxu0 %v1782
          %1811 = vmatprep.subr.mxu0 0.0
          %1812 = vmatpush1.msra.mxu0 %v1783
          %1813 = vmatprep.subr.mxu0 0.0
          %1814 = vmatpush1.msra.mxu0 %v1784
          %1815 = vmatprep.subr.mxu0 0.0
          %1816 = vmatpush1.msra.mxu0 %v1785
          %1817 = vmatprep.subr.mxu0 0.0
          %1818 = vmatpush1.msra.mxu0 %v1786
          %1819 = vmatprep.subr.mxu0 0.0
          %1820 = vmatpush1.msra.mxu0 %v1787
          %1821 = vmatprep.subr.mxu0 0.0
          %1822 = vmatpush1.msra.mxu0 %v1788
          %1823 = vmatprep.subr.mxu0 0.0
          %1824 = vmatpush1.msra.mxu0 %v1789
          %1825 = vmatprep.subr.mxu0 0.0
          %1826 = vmatpush1.msra.mxu0 %v1790
          %1827 = vmatprep.subr.mxu0 0.0
          %1828 = vmatpush1.msra.mxu0 %v1791
          %1829 = vmatprep.subr.mxu0 0.0
          %1830 = vmatpush1.msra.mxu0 %v1792
          %1831 = vmatprep.subr.mxu0 0.0
          %1832 = vmatpush1.msra.mxu0 %v1793
          %1833 = vmatprep.subr.mxu0 0.0
          %1834 = vmatpush1.msra.mxu0 0.0
          %1835 = vmatprep.subr.mxu0 0.0
          %1836 = vmatpush1.msra.mxu0 0.0
          %1837 = vmatprep.subr.mxu0 0.0
          %1838 = vmatpush1.msra.mxu0 0.0
          %1839 = vmatprep.subr.mxu0 0.0
          %1840 = vmatpush1.msra.mxu0 0.0
          %1841 = vmatprep.subr.mxu0 0.0
          %1842 = vmatpush1.msra.mxu0 0.0
          %1843 = vmatprep.subr.mxu0 0.0
          %1844 = vmatpush1.msra.mxu0 0.0
          %1845 = vmatprep.subr.mxu0 0.0
          %1846 = vmatpush1.msra.mxu0 0.0
          %1847 = vmatprep.subr.mxu0 0.0
          %1848 = vmatpush1.msra.mxu0 0.0
          %1849 = vmatprep.subr.mxu0 0.0
          %1850 = vmatpush1.msra.mxu0 0.0
          %1851 = vmatprep.subr.mxu0 0.0
          %1852 = vmatpush1.msra.mxu0 0.0
          %1853 = vmatprep.subr.mxu0 0.0
          %1854 = vmatpush1.msra.mxu0 0.0
          %1855 = vmatprep.subr.mxu0 0.0
          %1856 = vmatpush1.msra.mxu0 0.0
          %1857 = vmatprep.subr.mxu0 0.0
          %1858 = vmatpush1.msra.mxu0 0.0
          %1859 = vmatprep.subr.mxu0 0.0
          %1860 = vmatpush1.msra.mxu0 0.0
          %1861 = vmatprep.subr.mxu0 0.0
          %1862 = vmatpush1.msra.mxu0 0.0
          %1863 = vmatprep.subr.mxu0 0.0
          %1864 = vmatpush1.msra.mxu0 0.0
          %1865 = vmatprep.mubr.f32.mxu0 0.0
          %1866 = vmatmul.mubr.f32.gmra.mrb[0].mxu0 %v1776
          %v1867 = vpop.f32.mrb[0].mxu0
          %v1868 = vadd.f32 %v1799, %v1867
          %v1869 = vpop.f32.mrb[0].mxu0
          %1870 = vmatprep.mubr.f32.mxu0 0.0
          %1871 = vmatmul.mubr.f32.gmra.mrb[0].mxu0 %v1777
          %v1872 = vpop.f32.mrb[0].mxu0
          %v1873 = vadd.f32 %v1799, %v1872
          %v1874 = vpop.f32.mrb[0].mxu0
          %1875 = vdwg.mxu0
          %v1876 = vadd.f32 %v659, %v1868
          %v1877 = vadd.f32 %v660, %v1873
          %v1878 = vld [vmem:[%s13] sm:$0x1]
          %v1880 = vlaneseq
          %v1881 = vshrl.u32 %v1880, 7
          %v1882 = vsub.s32 0, %v1881
          %v1883 = vrot.slane %v1878, %v1882
          %v1885 = vadd.f32 %v1876, %v1883
          %v1886 = vadd.f32 %v1877, %v1883
          %1887 = vst [vmem:[#allocation2] sm:$0xff] %v1885
          %1888 = vst [vmem:[#allocation2 + $0x8] sm:$0xff] %v1886
          %v1889 = vld [vmem:[%s8] sm:$0x1]
          %v1890 = vld [vmem:[%s9] sm:$0x1]
          %1891 = vadd.xlane.f32.xlu0 %v1876
          %v1892 = vpop.xlane.xlu0 %1891
          %1893 = vadd.xlane.f32.xlu0 %v1877
          %v1894 = vpop.xlane.xlu0 %1893
          %v1895 = vmul.f32 %v1892, %v669
          %v1896 = vmul.f32 %v1894, %v669
          %v1897 = vsub.f32 %v1876, %v1895
          %v1898 = vsub.f32 %v1877, %v1896
          %v1899 = vmul.f32 %v1897, %v1897
          %v1900 = vmul.f32 %v1898, %v1898
          %1901 = vadd.xlane.f32.xlu0 %v1899
          %v1902 = vpop.xlane.xlu0 %1901
          %1903 = vadd.xlane.f32.xlu0 %v1900
          %v1904 = vpop.xlane.xlu0 %1903
          %v1905 = vmul.f32 %v1902, %v680
          %v1906 = vmul.f32 %v1904, %v680
          %v1907 = vrsqrt.pop %v1905
          %v1908 = vmul.f32 %v1905, %v1907
          %vm1909 = vcmp.eq.f32.partialorder %v1905, inf
          %v1910 = vsel %vm1909, %v1905, %v1908
          %vm1911 = vcmp.eq.f32.partialorder %v1905, 0.0
          %v1912 = vand.u32 %v1905, 2147483648
          %v1913 = vsel %vm1911, %v1912, %v1910
          %v1914 = vrsqrt.pop %v1906
          %v1915 = vmul.f32 %v1906, %v1914
          %vm1916 = vcmp.eq.f32.partialorder %v1906, inf
          %v1917 = vsel %vm1916, %v1906, %v1915
          %vm1918 = vcmp.eq.f32.partialorder %v1906, 0.0
          %v1919 = vand.u32 %v1906, 2147483648
          %v1920 = vsel %vm1918, %v1919, %v1917
          %v1921 = vadd.f32 %v1913, 1e-06
          %v1922 = vadd.f32 %v1920, 1e-06
          %v1924 = vlaneseq
          %v1925 = vshrl.u32 %v1924, 7
          %v1926 = vsub.s32 0, %v1925
          %v1927 = vrot.slane %v1889, %v1926
          %v1929 = vmul.f32 %v1927, %v1897
          %v1930 = vmul.f32 %v1927, %v1898
          %v1931 = vrcp.pop %v1921
          %v1932 = vmul.f32 %v1929, %v1931
          %v1933 = vrcp.pop %v1922
          %v1934 = vmul.f32 %v1930, %v1933
          %v1936 = vlaneseq
          %v1937 = vshrl.u32 %v1936, 7
          %v1938 = vsub.s32 0, %v1937
          %v1939 = vrot.slane %v1890, %v1938
          %v1941 = vadd.f32 %v1932, %v1939
          %v1942 = vadd.f32 %v1934, %v1939
          %1943 = vst [vmem:[#allocation3] sm:$0xff] %v1941
          %1944 = vst [vmem:[#allocation3 + $0x8] sm:$0xff] %v1942
        $region104: #{tpu_custom_call.1} parent=75 // pred_fallthru
          _
        %v1945 = vld [vmem:[#allocation3] sm:$0xff]
        %v1946 = vld [vmem:[#allocation3 + $0x8] sm:$0xff]
        %v1947 = vld [vmem:[%s579] sm:$0xff]
        %v1948 = vld [vmem:[%s579 + $0x8] sm:$0xff]
        %v1949 = vld [vmem:[%s579 + $0x10] sm:$0xff]
        %v1950 = vld [vmem:[%s579 + $0x18] sm:$0xff]
        %v1951 = vld [vmem:[%s579 + $0x20] sm:$0xff]
        %v1952 = vld [vmem:[%s579 + $0x28] sm:$0xff]
        %v1953 = vld [vmem:[%s579 + $0x30] sm:$0xff]
        %v1954 = vld [vmem:[%s579 + $0x38] sm:$0xff]
        %v1955 = vld [vmem:[%s579 + $0x40] sm:$0xff]
        %v1956 = vld [vmem:[%s579 + $0x48] sm:$0xff]
        %v1957 = vld [vmem:[%s579 + $0x50] sm:$0xff]
        %v1958 = vld [vmem:[%s579 + $0x58] sm:$0xff]
        %v1959 = vld [vmem:[%s579 + $0x60] sm:$0xff]
        %v1960 = vld [vmem:[%s579 + $0x68] sm:$0xff]
        %v1961 = vld [vmem:[%s579 + $0x70] sm:$0xff]
        %v1962 = vld [vmem:[%s579 + $0x78] sm:$0xff]
        %v1963 = vld [vmem:[%s653] sm:$0x1]
        %v1965 = vlaneseq
        %v1966 = vshrl.u32 %v1965, 7
        %v1967 = vsub.s32 0, %v1966
        %v1968 = vrot.slane %v1963, %v1967
        %1970 = vmatprep.subr.mxu0 0.0
        %1971 = vmatpush1.msra.mxu0 %v1947
        %1972 = vmatprep.subr.mxu0 0.0
        %1973 = vmatpush1.msra.mxu0 %v1948
        %1974 = vmatprep.subr.mxu0 0.0
        %1975 = vmatpush1.msra.mxu0 %v1949
        %1976 = vmatprep.subr.mxu0 0.0
        %1977 = vmatpush1.msra.mxu0 %v1950
        %1978 = vmatprep.subr.mxu0 0.0
        %1979 = vmatpush1.msra.mxu0 %v1951
        %1980 = vmatprep.subr.mxu0 0.0
        %1981 = vmatpush1.msra.mxu0 %v1952
        %1982 = vmatprep.subr.mxu0 0.0
        %1983 = vmatpush1.msra.mxu0 %v1953
        %1984 = vmatprep.subr.mxu0 0.0
        %1985 = vmatpush1.msra.mxu0 %v1954
        %1986 = vmatprep.subr.mxu0 0.0
        %1987 = vmatpush1.msra.mxu0 %v1955
        %1988 = vmatprep.subr.mxu0 0.0
        %1989 = vmatpush1.msra.mxu0 %v1956
        %1990 = vmatprep.subr.mxu0 0.0
        %1991 = vmatpush1.msra.mxu0 %v1957
        %1992 = vmatprep.subr.mxu0 0.0
        %1993 = vmatpush1.msra.mxu0 %v1958
        %1994 = vmatprep.subr.mxu0 0.0
        %1995 = vmatpush1.msra.mxu0 %v1959
        %1996 = vmatprep.subr.mxu0 0.0
        %1997 = vmatpush1.msra.mxu0 %v1960
        %1998 = vmatprep.subr.mxu0 0.0
        %1999 = vmatpush1.msra.mxu0 %v1961
        %2000 = vmatprep.subr.mxu0 0.0
        %2001 = vmatpush1.msra.mxu0 %v1962
        %2002 = vmatprep.subr.mxu0 0.0
        %2003 = vmatpush1.msra.mxu0 0.0
        %2004 = vmatprep.subr.mxu0 0.0
        %2005 = vmatpush1.msra.mxu0 0.0
        %2006 = vmatprep.subr.mxu0 0.0
        %2007 = vmatpush1.msra.mxu0 0.0
        %2008 = vmatprep.subr.mxu0 0.0
        %2009 = vmatpush1.msra.mxu0 0.0
        %2010 = vmatprep.subr.mxu0 0.0
        %2011 = vmatpush1.msra.mxu0 0.0
        %2012 = vmatprep.subr.mxu0 0.0
        %2013 = vmatpush1.msra.mxu0 0.0
        %2014 = vmatprep.subr.mxu0 0.0
        %2015 = vmatpush1.msra.mxu0 0.0
        %2016 = vmatprep.subr.mxu0 0.0
        %2017 = vmatpush1.msra.mxu0 0.0
        %2018 = vmatprep.subr.mxu0 0.0
        %2019 = vmatpush1.msra.mxu0 0.0
        %2020 = vmatprep.subr.mxu0 0.0
        %2021 = vmatpush1.msra.mxu0 0.0
        %2022 = vmatprep.subr.mxu0 0.0
        %2023 = vmatpush1.msra.mxu0 0.0
        %2024 = vmatprep.subr.mxu0 0.0
        %2025 = vmatpush1.msra.mxu0 0.0
        %2026 = vmatprep.subr.mxu0 0.0
        %2027 = vmatpush1.msra.mxu0 0.0
        %2028 = vmatprep.subr.mxu0 0.0
        %2029 = vmatpush1.msra.mxu0 0.0
        %2030 = vmatprep.subr.mxu0 0.0
        %2031 = vmatpush1.msra.mxu0 0.0
        %2032 = vmatprep.subr.mxu0 0.0
        %2033 = vmatpush1.msra.mxu0 0.0
        %2034 = vmatprep.mubr.f32.mxu0 0.0
        %2035 = vmatmul.mubr.f32.gmra.mrb[0].mxu0 %v1945
        %v2036 = vpop.f32.mrb[0].mxu0
        %v2037 = vadd.f32 %v1968, %v2036
        %v2038 = vpop.f32.mrb[0].mxu0
        %2039 = vmatprep.mubr.f32.mxu0 0.0
        %2040 = vmatmul.mubr.f32.gmra.mrb[0].mxu0 %v1946
        %v2041 = vpop.f32.mrb[0].mxu0
        %v2042 = vadd.f32 %v1968, %v2041
        %v2043 = vpop.f32.mrb[0].mxu0
        %2044 = vdwg.mxu0
        %v2045 = vmax.f32 %v2037, 0.0
        %v2046 = vmax.f32 %v2042, 0.0
        %v2047 = vld [vmem:[#allocation2] sm:$0xff]
        %v2048 = vld [vmem:[#allocation2 + $0x8] sm:$0xff]
        %v2049 = vld [vmem:[%s588] sm:$0xff]
        %v2050 = vld [vmem:[%s588 + $0x8] sm:$0xff]
        %v2051 = vld [vmem:[%s588 + $0x10] sm:$0xff]
        %v2052 = vld [vmem:[%s588 + $0x18] sm:$0xff]
        %v2053 = vld [vmem:[%s588 + $0x20] sm:$0xff]
        %v2054 = vld [vmem:[%s588 + $0x28] sm:$0xff]
        %v2055 = vld [vmem:[%s588 + $0x30] sm:$0xff]
        %v2056 = vld [vmem:[%s588 + $0x38] sm:$0xff]
        %v2057 = vld [vmem:[%s588 + $0x40] sm:$0xff]
        %v2058 = vld [vmem:[%s588 + $0x48] sm:$0xff]
        %v2059 = vld [vmem:[%s588 + $0x50] sm:$0xff]
        %v2060 = vld [vmem:[%s588 + $0x58] sm:$0xff]
        %v2061 = vld [vmem:[%s588 + $0x60] sm:$0xff]
        %v2062 = vld [vmem:[%s588 + $0x68] sm:$0xff]
        %v2063 = vld [vmem:[%s588 + $0x70] sm:$0xff]
        %v2064 = vld [vmem:[%s588 + $0x78] sm:$0xff]
        %2065 = vmatprep.subr.mxu0 0.0
        %2066 = vmatpush1.msra.mxu0 %v2049
        %2067 = vmatprep.subr.mxu0 0.0
        %2068 = vmatpush1.msra.mxu0 %v2050
        %2069 = vmatprep.subr.mxu0 0.0
        %2070 = vmatpush1.msra.mxu0 %v2051
        %2071 = vmatprep.subr.mxu0 0.0
        %2072 = vmatpush1.msra.mxu0 %v2052
        %2073 = vmatprep.subr.mxu0 0.0
        %2074 = vmatpush1.msra.mxu0 %v2053
        %2075 = vmatprep.subr.mxu0 0.0
        %2076 = vmatpush1.msra.mxu0 %v2054
        %2077 = vmatprep.subr.mxu0 0.0
        %2078 = vmatpush1.msra.mxu0 %v2055
        %2079 = vmatprep.subr.mxu0 0.0
        %2080 = vmatpush1.msra.mxu0 %v2056
        %2081 = vmatprep.subr.mxu0 0.0
        %2082 = vmatpush1.msra.mxu0 %v2057
        %2083 = vmatprep.subr.mxu0 0.0
        %2084 = vmatpush1.msra.mxu0 %v2058
        %2085 = vmatprep.subr.mxu0 0.0
        %2086 = vmatpush1.msra.mxu0 %v2059
        %2087 = vmatprep.subr.mxu0 0.0
        %2088 = vmatpush1.msra.mxu0 %v2060
        %2089 = vmatprep.subr.mxu0 0.0
        %2090 = vmatpush1.msra.mxu0 %v2061
        %2091 = vmatprep.subr.mxu0 0.0
        %2092 = vmatpush1.msra.mxu0 %v2062
        %2093 = vmatprep.subr.mxu0 0.0
        %2094 = vmatpush1.msra.mxu0 %v2063
        %2095 = vmatprep.subr.mxu0 0.0
        %2096 = vmatpush1.msra.mxu0 %v2064
        %2097 = vmatprep.subr.mxu0 0.0
        %2098 = vmatpush1.msra.mxu0 0.0
        %2099 = vmatprep.subr.mxu0 0.0
        %2100 = vmatpush1.msra.mxu0 0.0
        %2101 = vmatprep.subr.mxu0 0.0
        %2102 = vmatpush1.msra.mxu0 0.0
        %2103 = vmatprep.subr.mxu0 0.0
        %2104 = vmatpush1.msra.mxu0 0.0
        %2105 = vmatprep.subr.mxu0 0.0
        %2106 = vmatpush1.msra.mxu0 0.0
        %2107 = vmatprep.subr.mxu0 0.0
        %2108 = vmatpush1.msra.mxu0 0.0
        %2109 = vmatprep.subr.mxu0 0.0
        %2110 = vmatpush1.msra.mxu0 0.0
        %2111 = vmatprep.subr.mxu0 0.0
        %2112 = vmatpush1.msra.mxu0 0.0
        %2113 = vmatprep.subr.mxu0 0.0
        %2114 = vmatpush1.msra.mxu0 0.0
        %2115 = vmatprep.subr.mxu0 0.0
        %2116 = vmatpush1.msra.mxu0 0.0
        %2117 = vmatprep.subr.mxu0 0.0
        %2118 = vmatpush1.msra.mxu0 0.0
        %2119 = vmatprep.subr.mxu0 0.0
        %2120 = vmatpush1.msra.mxu0 0.0
        %2121 = vmatprep.subr.mxu0 0.0
        %2122 = vmatpush1.msra.mxu0 0.0
        %2123 = vmatprep.subr.mxu0 0.0
        %2124 = vmatpush1.msra.mxu0 0.0
        %2125 = vmatprep.subr.mxu0 0.0
        %2126 = vmatpush1.msra.mxu0 0.0
        %2127 = vmatprep.subr.mxu0 0.0
        %2128 = vmatpush1.msra.mxu0 0.0
        %2129 = vmatprep.mubr.f32.mxu0 0.0
        %2130 = vmatmul.mubr.f32.gmra.mrb[0].mxu0 %v2045
        %v2131 = vpop.f32.mrb[0].mxu0
        %v2132 = vadd.f32 0.0, %v2131
        %v2133 = vpop.f32.mrb[0].mxu0
        %2134 = vmatprep.mubr.f32.mxu0 0.0
        %2135 = vmatmul.mubr.f32.gmra.mrb[0].mxu0 %v2046
        %v2136 = vpop.f32.mrb[0].mxu0
        %v2137 = vadd.f32 0.0, %v2136
        %v2138 = vpop.f32.mrb[0].mxu0
        %2139 = vdwg.mxu0
        %v2140 = vadd.f32 %v2047, %v2132
        %v2141 = vadd.f32 %v2048, %v2137
        %2142 = vst [vmem:[#allocation2] sm:$0xff] %v2140
        %2143 = vst [vmem:[#allocation2 + $0x8] sm:$0xff] %v2141
        %p2144 = scmp.eq.s32.totalorder %s40, 1
        // Predicated region
        $region105: #{tpu_custom_call.1} parent=75 // pred_check
          %p2145 = pneg %p2144
        $region106: #{tpu_custom_call.1} parent=75 // pred_check_branch
          %2147 = sbr.rel (%p2145) target = $region108
        $region107: #{tpu_custom_call.1} parent=75 // pred_region
          %v2148 = vld [vmem:[#allocation2] sm:$0xff]
          %v2149 = vld [vmem:[#allocation2 + $0x8] sm:$0xff]
          %2150 = vst [vmem:[%s650] sm:$0xff] %v2148
          %2151 = vst [vmem:[%s650 + $0x8] sm:$0xff] %v2149
        $region108: #{tpu_custom_call.1} parent=75 // pred_fallthru
          _
        %s2152 = sand.u32 %s374, 1
        %s2153 = scalar_lea.sflag [#allocation6], %s2152
        %s2154 = sand.u32 %s374, 1
        %s2155 = smul.addr %s2154, 16
        %s2156 = scalar_lea.vmem [#allocation14], %s2155
        // Predicated region
        $region109: #{tpu_custom_call.1} parent=75 // pred_check
          %p2157 = pneg %p384
        $region110: #{tpu_custom_call.1} parent=75 // pred_check_branch
          %2159 = sbr.rel (%p2157) target = $region112
        $region111: #{tpu_custom_call.1} parent=75 // pred_region
          %s2161 = ssub.s32 256, 256
          %2162 = vsyncadd %s2153, %s2161
          %s2163 = smul.addr %s39, 2
          %s2164 = smul.addr %s2163, 128
          %s2165 = scalar_lea.hbm %s14, %s2164
          %s2166 = sshll.u32 %s2156, 4
          %s2167 = int_to_ptr.vmem [resolvable:$true] %s2166
          %2172 = dma.vmem_to_hbm [thread:$0]  %s2167, 256, %s2165, %s2153, 128, 128, 8
        $region112: #{tpu_custom_call.1} parent=75 // pred_fallthru
          _
      $region76: #{tpu_custom_call.1} parent=5 // pred_fallthru
        _
      %p2173 = scmp.le.s32.totalorder 2, %s30
      // Predicated region
      $region113: #{tpu_custom_call.1} parent=5 // pred_check
        %p2174 = pneg %p2173
      $region114: #{tpu_custom_call.1} parent=5 // pred_check_branch
        %2176 = sbr.rel (%p2174) target = $region116
      $region115: #{tpu_custom_call.1} parent=5 // pred_region
        %s2177 = ssub.s32 %s30, 2
        // Predicated region
        $region117: #{tpu_custom_call.1} parent=115 // pred_check
          %p2178 = pneg %p390
        $region118: #{tpu_custom_call.1} parent=115 // pred_check_branch
          %2180 = sbr.rel (%p2178) target = $region120
        $region119: #{tpu_custom_call.1} parent=115 // pred_region
          %s2181 = sand.u32 %s375, 1
          %s2182 = scalar_lea.sflag [#allocation6], %s2181
          %s2183 = sand.u32 %s375, 1
          %s2184 = smul.addr %s2183, 16
          %s2185 = scalar_lea.vmem [#allocation14], %s2184
          %2186 = dma.done %s2182, 256
        $region120: #{tpu_custom_call.1} parent=115 // pred_fallthru
          _
      $region116: #{tpu_custom_call.1} parent=5 // pred_fallthru
        _
    $region6: #{tpu_custom_call.1} parent=1 // loop_footer
      %s34 = sadd.s32 1, %s30
    $region7: #{tpu_custom_call.1} parent=1 // loop_footer_branch
      %29 = sbr.rel target = $region3
    $region8: #{tpu_custom_call.1} parent=1 // loop_exit
      _
    %2187 = vsyncpa [#allocation5], 1
    %s2188 = scalar_lea.sflag [#allocation5], 1
    %2189 = vsyncpa %s2188, 1
    %2190 = vsyncpa [#allocation8], 1
    %s2191 = scalar_lea.sflag [#allocation8], 1
    %2192 = vsyncpa %s2191, 1
    %2193 = vsyncpa [#allocation11], 1
    %2194 = vsyncpa [#allocation6], 1
    %s2195 = scalar_lea.sflag [#allocation6], 1
    %2196 = vsyncpa %s2195, 1

</llo_original>
